<compile_context>
chip_gen: v7x
topology: tpu7x:2x2x1
jax: 0.10.0
libtpu: 0.0.40
codegen_flags: <defaults>
</compile_context>

<pallas_src>
import math

import jax
import jax.numpy as jnp
from jax import lax
from jax.experimental import pallas as pl
from jax.experimental.pallas import tpu as pltpu


def musigma_kernel(x_ref, wl_ref, bl_ref, wih_ref, whh_ref, b_ref,
                   mu_ref, sigma_ref,
                   gin_ref, hs_ref):
    """One BN tile: batched linear+tanh+input-gates, LSTM over T, attention, mu/sigma."""
    T, H, bt = hs_ref.shape
    TB = T * bt
    H4 = 4 * H

    # ---- Phase 1: batched input projection (two large-N MXU calls, off the
    #      recurrence critical path). X is (4, T*bt) lane-dense.
    #   Z   = tanh(Wl @ X + bl)          (H,  T*bt)
    #   Gin = Wih @ Z + (b_ih + b_hh)    (4H, T*bt)
    z = jnp.tanh(
        jnp.dot(wl_ref[...], x_ref[...], preferred_element_type=jnp.float32)
        + bl_ref[...])
    gin_ref[...] = (
        jnp.dot(wih_ref[...], z, preferred_element_type=jnp.float32) + b_ref[...])

    # ---- Phase 2: LSTM recurrence (PyTorch gate order i,f,g,o; zero init state).
    # h/c are carried as values (vregs), only hs_ref[t] is stored.
    whh = whh_ref[...]                                    # (4H, H)
    unroll = True if T <= 16 else 4

    def step(t, carry):
        h, c = carry
        start = pl.multiple_of(t * bt, 128)               # bt is a multiple of 128
        gates = gin_ref[:, pl.ds(start, bt)] + jnp.dot(
            whh, h, preferred_element_type=jnp.float32)   # (4H, bt)
        # Gate extraction = static sublane slices (H is a multiple of 8).
        i = jax.nn.sigmoid(gates[0 * H:1 * H])
        f = jax.nn.sigmoid(gates[1 * H:2 * H])
        g = jnp.tanh(gates[2 * H:3 * H])
        o = jax.nn.sigmoid(gates[3 * H:4 * H])
        c_new = f * c + i * g
        h_new = o * jnp.tanh(c_new)
        hs_ref[t] = h_new
        return (h_new, c_new)

    h0 = jnp.zeros((H, bt), jnp.float32)
    c0 = jnp.zeros((H, bt), jnp.float32)
    h_last, _ = lax.fori_loop(0, T, step, (h0, c0), unroll=unroll)

    # ---- Phase 3: attention over time (streamed, no full-hs load), then weighted
    #      mean / std of feature 3 (direct ref slices of the returns row).
    score_rows = []
    for t in range(T):                                    # T is small & static
        score_rows.append(
            jnp.sum(hs_ref[t] * h_last, axis=0, keepdims=True))      # (1, bt)
    scores = jnp.concatenate(score_rows, axis=0)                      # (T, bt)

    m = jnp.max(scores, axis=0, keepdims=True)
    e = jnp.exp(scores - m)
    denom = jnp.sum(e, axis=0, keepdims=True)
    attn = e * pl.reciprocal(denom, approx=False)                     # (T, bt)

    r_rows = []
    for t in range(T):
        r_rows.append(x_ref[pl.ds(3, 1), pl.ds(t * bt, bt)])          # (1, bt)
    r = jnp.concatenate(r_rows, axis=0)                               # (T, bt)

    mu = jnp.sum(attn * r, axis=0, keepdims=True)                     # (1, bt)
    sigma = jnp.sqrt(jnp.sum(attn * (r - mu) ** 2, axis=0, keepdims=True))
    mu_ref[...] = mu
    sigma_ref[...] = sigma


def _round_up(n, m):
    return -(-n // m) * m


def _pick_bn_tile(bn, T, H):
    """Pick the BN tile from the real per-lane VMEM footprint.

    per-lane-column bytes: gin (4H) + hs (H) + z temp (H) in f32, plus the
    double-buffered x block (4 features padded to 8 sublanes).
    """
    bn_pad = _round_up(bn, 128)
    per_col = 4 * T * (6 * H) + 2 * 8 * T * 4
    budget = 12 * 1024 * 1024                     # variable-scratch budget per tile
    max_bt = max(128, (budget // max(per_col, 1)) // 128 * 128)
    bt = min(bn_pad, 2048, max_bt)
    # Guarantee >= 2 grid steps when possible so ("parallel",) can shard across
    # the two TensorCores on v7x.
    if bn_pad >= 256:
        bt = min(bt, _round_up(bn_pad // 2, 128))
    bn_pad = _round_up(bn_pad, bt)
    return bn_pad, bt, per_col


def mu_sigma_forward(x, params):
    """Matches MuSigma.forward: x is (B, T, 4) or (B, N, T, 4); returns (mu, sigma)."""
    x = x.astype(jnp.float32)
    x_size = x.shape
    size_4 = (len(x_size) == 4)
    if size_4:
        xf = x.reshape(x_size[0] * x_size[1], x_size[2], x_size[3])
    else:
        xf = x
    BN, T, F = xf.shape
    assert F == 4
    H = params["wl"].shape[0]

    bn_pad, bt, per_col = _pick_bn_tile(BN, T, H)
    num_tiles = bn_pad // bt

    # Wrapper-side layout plumbing: pad BN, then present each tile as a lane-dense
    # (4, T*bt) slab:  x_tiles[j, f, t*bt + b] = xf[j*bt + b, t, f].
    if bn_pad != BN:
        xf = jnp.pad(xf, ((0, bn_pad - BN), (0, 0), (0, 0)))
    x_tiles = (xf.reshape(num_tiles, bt, T, F)
                 .transpose(0, 3, 2, 1)
                 .reshape(num_tiles, F, T * bt))

    # VMEM limit derived from the actual per-tile footprint (scratch + double-
    # buffered x block) plus double-buffered weights and margin.
    def _lane(n): return _round_up(n, 128)
    def _sub(n): return _round_up(n, 8)
    wbytes = 4 * (_sub(H) * _lane(F) + _sub(H) * _lane(1)
                  + 2 * _sub(4 * H) * _lane(H) + _sub(4 * H) * _lane(1))
    var_bytes = per_col * bt
    vmem_limit = int(min(32 * 1024 * 1024,
                         max(8 * 1024 * 1024, var_bytes + 2 * wbytes + 4 * 1024 * 1024)))

    grid = (num_tiles,)

    mu, sigma = pl.pallas_call(
        musigma_kernel,
        out_shape=(jax.ShapeDtypeStruct((1, bn_pad), jnp.float32),
                   jax.ShapeDtypeStruct((1, bn_pad), jnp.float32)),
        grid=grid,
        in_specs=[
            pl.BlockSpec((None, F, T * bt), lambda j: (j, 0, 0)),   # x tile (4, T*bt)
            pl.BlockSpec((H, F), lambda j: (0, 0)),                 # wl
            pl.BlockSpec((H, 1), lambda j: (0, 0)),                 # bl
            pl.BlockSpec((4 * H, H), lambda j: (0, 0)),             # wih
            pl.BlockSpec((4 * H, H), lambda j: (0, 0)),             # whh
            pl.BlockSpec((4 * H, 1), lambda j: (0, 0)),             # b (combined bias)
        ],
        out_specs=(pl.BlockSpec((1, bt), lambda j: (0, j)),
                   pl.BlockSpec((1, bt), lambda j: (0, j))),
        scratch_shapes=[
            pltpu.VMEM((4 * H, T * bt), jnp.float32),   # gin: hoisted input gates
            pltpu.VMEM((T, H, bt), jnp.float32),        # hs: all LSTM hidden states
        ],
        compiler_params=pltpu.CompilerParams(
            dimension_semantics=("parallel",),
            vmem_limit_bytes=vmem_limit),
    )(x_tiles, params["wl"], params["bl"], params["wih"], params["whh"], params["b"])

    mu = mu[0, :BN]
    sigma = sigma[0, :BN]
    if size_4:
        return (mu.reshape(x_size[0], x_size[1]),
                sigma.reshape(x_size[0], x_size[1]))
    return mu, sigma


def init_params(key, hidden_size):
    """Deterministic synthetic params mirroring nn.Linear(4, H) + nn.LSTM(H, H, 1)."""
    H = hidden_size
    k = jax.random.split(key, 6)
    lin_bound = 1.0 / math.sqrt(4.0)
    lstm_bound = 1.0 / math.sqrt(float(H))
    w_lin = jax.random.uniform(k[0], (H, 4), jnp.float32, -lin_bound, lin_bound)
    b_lin = jax.random.uniform(k[1], (H,), jnp.float32, -lin_bound, lin_bound)
    w_ih = jax.random.uniform(k[2], (4 * H, H), jnp.float32, -lstm_bound, lstm_bound)
    w_hh = jax.random.uniform(k[3], (4 * H, H), jnp.float32, -lstm_bound, lstm_bound)
    b_ih = jax.random.uniform(k[4], (4 * H,), jnp.float32, -lstm_bound, lstm_bound)
    b_hh = jax.random.uniform(k[5], (4 * H,), jnp.float32, -lstm_bound, lstm_bound)
    return {
        "wl": w_lin,                      # (H, 4)   == nn.Linear(4, H).weight
        "bl": b_lin[:, None],             # (H, 1)
        "wih": w_ih,                      # (4H, H)  == lstm.weight_ih_l0
        "whh": w_hh,                      # (4H, H)  == lstm.weight_hh_l0
        "b": (b_ih + b_hh)[:, None],      # (4H, 1)
    }


def ref_forward(x, params):
    """Pure-JAX reference matching the PyTorch forward exactly."""
    x = x.astype(jnp.float32)
    x_size = x.shape
    size_4 = (len(x_size) == 4)
    xf = x.reshape(-1, x_size[-2], x_size[-1]) if size_4 else x
    BN, T, _ = xf.shape
    H = params["wl"].shape[0]
    z = jnp.tanh(xf @ params["wl"].T + params["bl"][:, 0])    # (BN, T, H)

    def step(carry, zt):
        h, c = carry
        gates = zt @ params["wih"].T + h @ params["whh"].T + params["b"][:, 0]
        i = jax.nn.sigmoid(gates[:, :H])
        f = jax.nn.sigmoid(gates[:, H:2 * H])
        g = jnp.tanh(gates[:, 2 * H:3 * H])
        o = jax.nn.sigmoid(gates[:, 3 * H:])
        c = f * c + i * g
        h = o * jnp.tanh(c)
        return (h, c), h

    (h_last, _), hs = lax.scan(
        step, (jnp.zeros((BN, H)), jnp.zeros((BN, H))), jnp.transpose(z, (1, 0, 2)))
    scores = jnp.einsum("tbh,bh->bt", hs, h_last)
    attn = jax.nn.softmax(scores, axis=1)
    r = xf[:, :, 3]
    mu = jnp.sum(attn * r, axis=1)
    sigma = jnp.sqrt(jnp.sum(attn * (r - mu[:, None]) ** 2, axis=1))
    if size_4:
        return mu.reshape(x_size[0], x_size[1]), sigma.reshape(x_size[0], x_size[1])
    return mu, sigma


if __name__ == "__main__":
    B, N, T, F = 2, 4, 8, 4
    hidden_size = 32

    key = jax.random.PRNGKey(0)
    k_x, k_p = jax.random.split(key)
    x = jax.random.normal(k_x, (B, N, T, F), jnp.float32)
    params = init_params(k_p, hidden_size)

    mu, sigma = mu_sigma_forward(x, params)
    mu = jax.block_until_ready(mu)
    sigma = jax.block_until_ready(sigma)

    mu_ref, sigma_ref = ref_forward(x, params)
    assert mu.shape == (B, N) and sigma.shape == (B, N)
    assert jnp.allclose(mu, mu_ref, atol=1e-4, rtol=1e-4)
    assert jnp.allclose(sigma, sigma_ref, atol=1e-4, rtol=1e-4)

    print("KERNEL_OK")
</pallas_src>

<mosaic_0001>
module attributes {stable_mosaic.version = 11 : i64} {
  func.func @musigma_kernel(%arg0: i32, %arg1: memref<1x4x1024xf32, #tpu.memory_space<vmem>>, %arg2: memref<32x4xf32, #tpu.memory_space<vmem>>, %arg3: memref<32x1xf32, #tpu.memory_space<vmem>>, %arg4: memref<128x32xf32, #tpu.memory_space<vmem>>, %arg5: memref<128x32xf32, #tpu.memory_space<vmem>>, %arg6: memref<128x1xf32, #tpu.memory_space<vmem>>, %arg7: memref<1x128xf32, #tpu.memory_space<vmem>>, %arg8: memref<1x128xf32, #tpu.memory_space<vmem>>, %arg9: memref<128x1024xf32, #tpu.memory_space<vmem>>, %arg10: memref<8x32x128xf32, #tpu.memory_space<vmem>>) attributes {dimension_semantics = [#tpu.dimension_semantics<parallel>], iteration_bounds = array<i64: 1>, scalar_prefetch = 0 : i64, scratch_operands = 2 : i64, tpu.core_type = #tpu.core_type<tc>, window_params = [{transform_indices = @transform_0, window_bounds = array<i64: 1, 4, 1024>}, {pipeline_mode = #tpu.pipeline_mode<synchronous>, transform_indices = @transform_1, window_bounds = array<i64: 32, 4>}, {pipeline_mode = #tpu.pipeline_mode<synchronous>, transform_indices = @transform_2, window_bounds = array<i64: 32, 1>}, {pipeline_mode = #tpu.pipeline_mode<synchronous>, transform_indices = @transform_3, window_bounds = array<i64: 128, 32>}, {pipeline_mode = #tpu.pipeline_mode<synchronous>, transform_indices = @transform_4, window_bounds = array<i64: 128, 32>}, {pipeline_mode = #tpu.pipeline_mode<synchronous>, transform_indices = @transform_5, window_bounds = array<i64: 128, 1>}, {transform_indices = @transform_6, window_bounds = array<i64: 1, 128>}, {transform_indices = @transform_7, window_bounds = array<i64: 1, 128>}]} {
    %c0 = arith.constant 0 : index
    %c0_0 = arith.constant 0 : index
    %0 = vector.load %arg2[%c0, %c0_0] : memref<32x4xf32, #tpu.memory_space<vmem>>, vector<32x4xf32>
    %c0_1 = arith.constant 0 : index
    %c0_2 = arith.constant 0 : index
    %c0_3 = arith.constant 0 : index
    %1 = vector.load %arg1[%c0_1, %c0_2, %c0_3] : memref<1x4x1024xf32, #tpu.memory_space<vmem>>, vector<1x4x1024xf32>
    %2 = vector.shape_cast %1 : vector<1x4x1024xf32> to vector<4x1024xf32>
    %cst = arith.constant dense<0.000000e+00> : vector<32x1024xf32>
    %3 = tpu.matmul %0, %2, %cst {dimension_numbers = #tpu.dot_dimension_numbers<[1], [0], [0], [1], [0, 0, 1, 1], [], []>} : vector<32x4xf32>, vector<4x1024xf32>, vector<32x1024xf32> -> vector<32x1024xf32>
    %c0_4 = arith.constant 0 : index
    %c0_5 = arith.constant 0 : index
    %4 = vector.load %arg3[%c0_4, %c0_5] : memref<32x1xf32, #tpu.memory_space<vmem>>, vector<32x1xf32>
    %5 = vector.broadcast %4 : vector<32x1xf32> to vector<32x1024xf32>
    %6 = arith.addf %3, %5 : vector<32x1024xf32>
    %7 = math.tanh %6 : vector<32x1024xf32>
    %c0_6 = arith.constant 0 : index
    %c0_7 = arith.constant 0 : index
    %8 = vector.load %arg4[%c0_6, %c0_7] : memref<128x32xf32, #tpu.memory_space<vmem>>, vector<128x32xf32>
    %cst_8 = arith.constant dense<0.000000e+00> : vector<128x1024xf32>
    %9 = tpu.matmul %8, %7, %cst_8 {dimension_numbers = #tpu.dot_dimension_numbers<[1], [0], [0], [1], [0, 0, 1, 1], [], []>} : vector<128x32xf32>, vector<32x1024xf32>, vector<128x1024xf32> -> vector<128x1024xf32>
    %c0_9 = arith.constant 0 : index
    %c0_10 = arith.constant 0 : index
    %10 = vector.load %arg6[%c0_9, %c0_10] : memref<128x1xf32, #tpu.memory_space<vmem>>, vector<128x1xf32>
    %11 = vector.broadcast %10 : vector<128x1xf32> to vector<128x1024xf32>
    %12 = arith.addf %9, %11 : vector<128x1024xf32>
    %c0_11 = arith.constant 0 : index
    %c0_12 = arith.constant 0 : index
    %13 = vector.load %arg9[%c0_11, %c0_12] : memref<128x1024xf32, #tpu.memory_space<vmem>>, vector<128x1024xf32>
    tpu.vector_store %arg9[%c0_11, %c0_12], %12 {strides = array<i32>} : memref<128x1024xf32, #tpu.memory_space<vmem>>, vector<128x1024xf32>,
    %c0_13 = arith.constant 0 : index
    %c0_14 = arith.constant 0 : index
    %14 = vector.load %arg5[%c0_13, %c0_14] : memref<128x32xf32, #tpu.memory_space<vmem>>, vector<128x32xf32>
    %cst_15 = arith.constant 0.000000e+00 : f32
    %15 = vector.broadcast %cst_15 : f32 to vector<32x128xf32>
    %cst_16 = arith.constant 0.000000e+00 : f32
    %16 = vector.broadcast %cst_16 : f32 to vector<32x128xf32>
    %c0_i32 = arith.constant 0 : i32
    %c128_i32 = arith.constant 128 : i32
    %17 = arith.muli %c0_i32, %c128_i32 : i32
    %18 = tpu.assume_multiple %17, 128 : i32
    %c0_17 = arith.constant 0 : index
    %19 = arith.index_cast %18 : i32 to index
    %20 = vector.load %arg9[%c0_17, %19] : memref<128x1024xf32, #tpu.memory_space<vmem>>, vector<128x128xf32>
    %cst_18 = arith.constant dense<0.000000e+00> : vector<128x128xf32>
    %21 = tpu.matmul %14, %15, %cst_18 {dimension_numbers = #tpu.dot_dimension_numbers<[1], [0], [0], [1], [0, 0, 1, 1], [], []>} : vector<128x32xf32>, vector<32x128xf32>, vector<128x128xf32> -> vector<128x128xf32>
    %22 = arith.addf %20, %21 : vector<128x128xf32>
    %23 = vector.extract_strided_slice %22 {offsets = [0, 0], sizes = [32, 128], strides = [1, 1]} : vector<128x128xf32> to vector<32x128xf32>
    %24 = arith.negf %23 : vector<32x128xf32>
    %25 = math.exp %24 : vector<32x128xf32>
    %cst_19 = arith.constant 1.000000e+00 : f32
    %26 = vector.broadcast %cst_19 : f32 to vector<32x128xf32>
    %27 = arith.addf %26, %25 : vector<32x128xf32>
    %28 = arith.divf %26, %27 : vector<32x128xf32>
    %29 = vector.extract_strided_slice %22 {offsets = [32, 0], sizes = [32, 128], strides = [1, 1]} : vector<128x128xf32> to vector<32x128xf32>
    %30 = arith.negf %29 : vector<32x128xf32>
    %31 = math.exp %30 : vector<32x128xf32>
    %cst_20 = arith.constant 1.000000e+00 : f32
    %32 = vector.broadcast %cst_20 : f32 to vector<32x128xf32>
    %33 = arith.addf %32, %31 : vector<32x128xf32>
    %34 = arith.divf %32, %33 : vector<32x128xf32>
    %35 = vector.extract_strided_slice %22 {offsets = [64, 0], sizes = [32, 128], strides = [1, 1]} : vector<128x128xf32> to vector<32x128xf32>
    %36 = math.tanh %35 : vector<32x128xf32>
    %37 = vector.extract_strided_slice %22 {offsets = [96, 0], sizes = [32, 128], strides = [1, 1]} : vector<128x128xf32> to vector<32x128xf32>
    %38 = arith.negf %37 : vector<32x128xf32>
    %39 = math.exp %38 : vector<32x128xf32>
    %cst_21 = arith.constant 1.000000e+00 : f32
    %40 = vector.broadcast %cst_21 : f32 to vector<32x128xf32>
    %41 = arith.addf %40, %39 : vector<32x128xf32>
    %42 = arith.divf %40, %41 : vector<32x128xf32>
    %43 = arith.mulf %34, %16 : vector<32x128xf32>
    %44 = arith.mulf %28, %36 : vector<32x128xf32>
    %45 = arith.addf %43, %44 : vector<32x128xf32>
    %46 = math.tanh %45 : vector<32x128xf32>
    %47 = arith.mulf %42, %46 : vector<32x128xf32>
    %48 = arith.index_cast %c0_i32 : i32 to index
    %c0_22 = arith.constant 0 : index
    %c0_23 = arith.constant 0 : index
    %49 = vector.load %arg10[%48, %c0_22, %c0_23] : memref<8x32x128xf32, #tpu.memory_space<vmem>>, vector<1x32x128xf32>
    %50 = vector.shape_cast %49 : vector<1x32x128xf32> to vector<32x128xf32>
    %51 = vector.shape_cast %47 : vector<32x128xf32> to vector<1x32x128xf32>
    tpu.vector_store %arg10[%48, %c0_22, %c0_23], %51 {strides = array<i32>} : memref<8x32x128xf32, #tpu.memory_space<vmem>>, vector<1x32x128xf32>,
    %c1_i32 = arith.constant 1 : i32
    %c128_i32_24 = arith.constant 128 : i32
    %52 = arith.muli %c1_i32, %c128_i32_24 : i32
    %53 = tpu.assume_multiple %52, 128 : i32
    %c0_25 = arith.constant 0 : index
    %54 = arith.index_cast %53 : i32 to index
    %55 = vector.load %arg9[%c0_25, %54] : memref<128x1024xf32, #tpu.memory_space<vmem>>, vector<128x128xf32>
    %cst_26 = arith.constant dense<0.000000e+00> : vector<128x128xf32>
    %56 = tpu.matmul %14, %47, %cst_26 {dimension_numbers = #tpu.dot_dimension_numbers<[1], [0], [0], [1], [0, 0, 1, 1], [], []>} : vector<128x32xf32>, vector<32x128xf32>, vector<128x128xf32> -> vector<128x128xf32>
    %57 = arith.addf %55, %56 : vector<128x128xf32>
    %58 = vector.extract_strided_slice %57 {offsets = [0, 0], sizes = [32, 128], strides = [1, 1]} : vector<128x128xf32> to vector<32x128xf32>
    %59 = arith.negf %58 : vector<32x128xf32>
    %60 = math.exp %59 : vector<32x128xf32>
    %cst_27 = arith.constant 1.000000e+00 : f32
    %61 = vector.broadcast %cst_27 : f32 to vector<32x128xf32>
    %62 = arith.addf %61, %60 : vector<32x128xf32>
    %63 = arith.divf %61, %62 : vector<32x128xf32>
    %64 = vector.extract_strided_slice %57 {offsets = [32, 0], sizes = [32, 128], strides = [1, 1]} : vector<128x128xf32> to vector<32x128xf32>
    %65 = arith.negf %64 : vector<32x128xf32>
    %66 = math.exp %65 : vector<32x128xf32>
    %cst_28 = arith.constant 1.000000e+00 : f32
    %67 = vector.broadcast %cst_28 : f32 to vector<32x128xf32>
    %68 = arith.addf %67, %66 : vector<32x128xf32>
    %69 = arith.divf %67, %68 : vector<32x128xf32>
    %70 = vector.extract_strided_slice %57 {offsets = [64, 0], sizes = [32, 128], strides = [1, 1]} : vector<128x128xf32> to vector<32x128xf32>
    %71 = math.tanh %70 : vector<32x128xf32>
    %72 = vector.extract_strided_slice %57 {offsets = [96, 0], sizes = [32, 128], strides = [1, 1]} : vector<128x128xf32> to vector<32x128xf32>
    %73 = arith.negf %72 : vector<32x128xf32>
    %74 = math.exp %73 : vector<32x128xf32>
    %cst_29 = arith.constant 1.000000e+00 : f32
    %75 = vector.broadcast %cst_29 : f32 to vector<32x128xf32>
    %76 = arith.addf %75, %74 : vector<32x128xf32>
    %77 = arith.divf %75, %76 : vector<32x128xf32>
    %78 = arith.mulf %69, %45 : vector<32x128xf32>
    %79 = arith.mulf %63, %71 : vector<32x128xf32>
    %80 = arith.addf %78, %79 : vector<32x128xf32>
    %81 = math.tanh %80 : vector<32x128xf32>
    %82 = arith.mulf %77, %81 : vector<32x128xf32>
    %83 = arith.index_cast %c1_i32 : i32 to index
    %c0_30 = arith.constant 0 : index
    %c0_31 = arith.constant 0 : index
    %84 = vector.load %arg10[%83, %c0_30, %c0_31] : memref<8x32x128xf32, #tpu.memory_space<vmem>>, vector<1x32x128xf32>
    %85 = vector.shape_cast %84 : vector<1x32x128xf32> to vector<32x128xf32>
    %86 = vector.shape_cast %82 : vector<32x128xf32> to vector<1x32x128xf32>
    tpu.vector_store %arg10[%83, %c0_30, %c0_31], %86 {strides = array<i32>} : memref<8x32x128xf32, #tpu.memory_space<vmem>>, vector<1x32x128xf32>,
    %c2_i32 = arith.constant 2 : i32
    %c128_i32_32 = arith.constant 128 : i32
    %87 = arith.muli %c2_i32, %c128_i32_32 : i32
    %88 = tpu.assume_multiple %87, 128 : i32
    %c0_33 = arith.constant 0 : index
    %89 = arith.index_cast %88 : i32 to index
    %90 = vector.load %arg9[%c0_33, %89] : memref<128x1024xf32, #tpu.memory_space<vmem>>, vector<128x128xf32>
    %cst_34 = arith.constant dense<0.000000e+00> : vector<128x128xf32>
    %91 = tpu.matmul %14, %82, %cst_34 {dimension_numbers = #tpu.dot_dimension_numbers<[1], [0], [0], [1], [0, 0, 1, 1], [], []>} : vector<128x32xf32>, vector<32x128xf32>, vector<128x128xf32> -> vector<128x128xf32>
    %92 = arith.addf %90, %91 : vector<128x128xf32>
    %93 = vector.extract_strided_slice %92 {offsets = [0, 0], sizes = [32, 128], strides = [1, 1]} : vector<128x128xf32> to vector<32x128xf32>
    %94 = arith.negf %93 : vector<32x128xf32>
    %95 = math.exp %94 : vector<32x128xf32>
    %cst_35 = arith.constant 1.000000e+00 : f32
    %96 = vector.broadcast %cst_35 : f32 to vector<32x128xf32>
    %97 = arith.addf %96, %95 : vector<32x128xf32>
    %98 = arith.divf %96, %97 : vector<32x128xf32>
    %99 = vector.extract_strided_slice %92 {offsets = [32, 0], sizes = [32, 128], strides = [1, 1]} : vector<128x128xf32> to vector<32x128xf32>
    %100 = arith.negf %99 : vector<32x128xf32>
    %101 = math.exp %100 : vector<32x128xf32>
    %cst_36 = arith.constant 1.000000e+00 : f32
    %102 = vector.broadcast %cst_36 : f32 to vector<32x128xf32>
    %103 = arith.addf %102, %101 : vector<32x128xf32>
    %104 = arith.divf %102, %103 : vector<32x128xf32>
    %105 = vector.extract_strided_slice %92 {offsets = [64, 0], sizes = [32, 128], strides = [1, 1]} : vector<128x128xf32> to vector<32x128xf32>
    %106 = math.tanh %105 : vector<32x128xf32>
    %107 = vector.extract_strided_slice %92 {offsets = [96, 0], sizes = [32, 128], strides = [1, 1]} : vector<128x128xf32> to vector<32x128xf32>
    %108 = arith.negf %107 : vector<32x128xf32>
    %109 = math.exp %108 : vector<32x128xf32>
    %cst_37 = arith.constant 1.000000e+00 : f32
    %110 = vector.broadcast %cst_37 : f32 to vector<32x128xf32>
    %111 = arith.addf %110, %109 : vector<32x128xf32>
    %112 = arith.divf %110, %111 : vector<32x128xf32>
    %113 = arith.mulf %104, %80 : vector<32x128xf32>
    %114 = arith.mulf %98, %106 : vector<32x128xf32>
    %115 = arith.addf %113, %114 : vector<32x128xf32>
    %116 = math.tanh %115 : vector<32x128xf32>
    %117 = arith.mulf %112, %116 : vector<32x128xf32>
    %118 = arith.index_cast %c2_i32 : i32 to index
    %c0_38 = arith.constant 0 : index
    %c0_39 = arith.constant 0 : index
    %119 = vector.load %arg10[%118, %c0_38, %c0_39] : memref<8x32x128xf32, #tpu.memory_space<vmem>>, vector<1x32x128xf32>
    %120 = vector.shape_cast %119 : vector<1x32x128xf32> to vector<32x128xf32>
    %121 = vector.shape_cast %117 : vector<32x128xf32> to vector<1x32x128xf32>
    tpu.vector_store %arg10[%118, %c0_38, %c0_39], %121 {strides = array<i32>} : memref<8x32x128xf32, #tpu.memory_space<vmem>>, vector<1x32x128xf32>,
    %c3_i32 = arith.constant 3 : i32
    %c128_i32_40 = arith.constant 128 : i32
    %122 = arith.muli %c3_i32, %c128_i32_40 : i32
    %123 = tpu.assume_multiple %122, 128 : i32
    %c0_41 = arith.constant 0 : index
    %124 = arith.index_cast %123 : i32 to index
    %125 = vector.load %arg9[%c0_41, %124] : memref<128x1024xf32, #tpu.memory_space<vmem>>, vector<128x128xf32>
    %cst_42 = arith.constant dense<0.000000e+00> : vector<128x128xf32>
    %126 = tpu.matmul %14, %117, %cst_42 {dimension_numbers = #tpu.dot_dimension_numbers<[1], [0], [0], [1], [0, 0, 1, 1], [], []>} : vector<128x32xf32>, vector<32x128xf32>, vector<128x128xf32> -> vector<128x128xf32>
    %127 = arith.addf %125, %126 : vector<128x128xf32>
    %128 = vector.extract_strided_slice %127 {offsets = [0, 0], sizes = [32, 128], strides = [1, 1]} : vector<128x128xf32> to vector<32x128xf32>
    %129 = arith.negf %128 : vector<32x128xf32>
    %130 = math.exp %129 : vector<32x128xf32>
    %cst_43 = arith.constant 1.000000e+00 : f32
    %131 = vector.broadcast %cst_43 : f32 to vector<32x128xf32>
    %132 = arith.addf %131, %130 : vector<32x128xf32>
    %133 = arith.divf %131, %132 : vector<32x128xf32>
    %134 = vector.extract_strided_slice %127 {offsets = [32, 0], sizes = [32, 128], strides = [1, 1]} : vector<128x128xf32> to vector<32x128xf32>
    %135 = arith.negf %134 : vector<32x128xf32>
    %136 = math.exp %135 : vector<32x128xf32>
    %cst_44 = arith.constant 1.000000e+00 : f32
    %137 = vector.broadcast %cst_44 : f32 to vector<32x128xf32>
    %138 = arith.addf %137, %136 : vector<32x128xf32>
    %139 = arith.divf %137, %138 : vector<32x128xf32>
    %140 = vector.extract_strided_slice %127 {offsets = [64, 0], sizes = [32, 128], strides = [1, 1]} : vector<128x128xf32> to vector<32x128xf32>
    %141 = math.tanh %140 : vector<32x128xf32>
    %142 = vector.extract_strided_slice %127 {offsets = [96, 0], sizes = [32, 128], strides = [1, 1]} : vector<128x128xf32> to vector<32x128xf32>
    %143 = arith.negf %142 : vector<32x128xf32>
    %144 = math.exp %143 : vector<32x128xf32>
    %cst_45 = arith.constant 1.000000e+00 : f32
    %145 = vector.broadcast %cst_45 : f32 to vector<32x128xf32>
    %146 = arith.addf %145, %144 : vector<32x128xf32>
    %147 = arith.divf %145, %146 : vector<32x128xf32>
    %148 = arith.mulf %139, %115 : vector<32x128xf32>
    %149 = arith.mulf %133, %141 : vector<32x128xf32>
    %150 = arith.addf %148, %149 : vector<32x128xf32>
    %151 = math.tanh %150 : vector<32x128xf32>
    %152 = arith.mulf %147, %151 : vector<32x128xf32>
    %153 = arith.index_cast %c3_i32 : i32 to index
    %c0_46 = arith.constant 0 : index
    %c0_47 = arith.constant 0 : index
    %154 = vector.load %arg10[%153, %c0_46, %c0_47] : memref<8x32x128xf32, #tpu.memory_space<vmem>>, vector<1x32x128xf32>
    %155 = vector.shape_cast %154 : vector<1x32x128xf32> to vector<32x128xf32>
    %156 = vector.shape_cast %152 : vector<32x128xf32> to vector<1x32x128xf32>
    tpu.vector_store %arg10[%153, %c0_46, %c0_47], %156 {strides = array<i32>} : memref<8x32x128xf32, #tpu.memory_space<vmem>>, vector<1x32x128xf32>,
    %c4_i32 = arith.constant 4 : i32
    %c128_i32_48 = arith.constant 128 : i32
    %157 = arith.muli %c4_i32, %c128_i32_48 : i32
    %158 = tpu.assume_multiple %157, 128 : i32
    %c0_49 = arith.constant 0 : index
    %159 = arith.index_cast %158 : i32 to index
    %160 = vector.load %arg9[%c0_49, %159] : memref<128x1024xf32, #tpu.memory_space<vmem>>, vector<128x128xf32>
    %cst_50 = arith.constant dense<0.000000e+00> : vector<128x128xf32>
    %161 = tpu.matmul %14, %152, %cst_50 {dimension_numbers = #tpu.dot_dimension_numbers<[1], [0], [0], [1], [0, 0, 1, 1], [], []>} : vector<128x32xf32>, vector<32x128xf32>, vector<128x128xf32> -> vector<128x128xf32>
    %162 = arith.addf %160, %161 : vector<128x128xf32>
    %163 = vector.extract_strided_slice %162 {offsets = [0, 0], sizes = [32, 128], strides = [1, 1]} : vector<128x128xf32> to vector<32x128xf32>
    %164 = arith.negf %163 : vector<32x128xf32>
    %165 = math.exp %164 : vector<32x128xf32>
    %cst_51 = arith.constant 1.000000e+00 : f32
    %166 = vector.broadcast %cst_51 : f32 to vector<32x128xf32>
    %167 = arith.addf %166, %165 : vector<32x128xf32>
    %168 = arith.divf %166, %167 : vector<32x128xf32>
    %169 = vector.extract_strided_slice %162 {offsets = [32, 0], sizes = [32, 128], strides = [1, 1]} : vector<128x128xf32> to vector<32x128xf32>
    %170 = arith.negf %169 : vector<32x128xf32>
    %171 = math.exp %170 : vector<32x128xf32>
    %cst_52 = arith.constant 1.000000e+00 : f32
    %172 = vector.broadcast %cst_52 : f32 to vector<32x128xf32>
    %173 = arith.addf %172, %171 : vector<32x128xf32>
    %174 = arith.divf %172, %173 : vector<32x128xf32>
    %175 = vector.extract_strided_slice %162 {offsets = [64, 0], sizes = [32, 128], strides = [1, 1]} : vector<128x128xf32> to vector<32x128xf32>
    %176 = math.tanh %175 : vector<32x128xf32>
    %177 = vector.extract_strided_slice %162 {offsets = [96, 0], sizes = [32, 128], strides = [1, 1]} : vector<128x128xf32> to vector<32x128xf32>
    %178 = arith.negf %177 : vector<32x128xf32>
    %179 = math.exp %178 : vector<32x128xf32>
    %cst_53 = arith.constant 1.000000e+00 : f32
    %180 = vector.broadcast %cst_53 : f32 to vector<32x128xf32>
    %181 = arith.addf %180, %179 : vector<32x128xf32>
    %182 = arith.divf %180, %181 : vector<32x128xf32>
    %183 = arith.mulf %174, %150 : vector<32x128xf32>
    %184 = arith.mulf %168, %176 : vector<32x128xf32>
    %185 = arith.addf %183, %184 : vector<32x128xf32>
    %186 = math.tanh %185 : vector<32x128xf32>
    %187 = arith.mulf %182, %186 : vector<32x128xf32>
    %188 = arith.index_cast %c4_i32 : i32 to index
    %c0_54 = arith.constant 0 : index
    %c0_55 = arith.constant 0 : index
    %189 = vector.load %arg10[%188, %c0_54, %c0_55] : memref<8x32x128xf32, #tpu.memory_space<vmem>>, vector<1x32x128xf32>
    %190 = vector.shape_cast %189 : vector<1x32x128xf32> to vector<32x128xf32>
    %191 = vector.shape_cast %187 : vector<32x128xf32> to vector<1x32x128xf32>
    tpu.vector_store %arg10[%188, %c0_54, %c0_55], %191 {strides = array<i32>} : memref<8x32x128xf32, #tpu.memory_space<vmem>>, vector<1x32x128xf32>,
    %c5_i32 = arith.constant 5 : i32
    %c128_i32_56 = arith.constant 128 : i32
    %192 = arith.muli %c5_i32, %c128_i32_56 : i32
    %193 = tpu.assume_multiple %192, 128 : i32
    %c0_57 = arith.constant 0 : index
    %194 = arith.index_cast %193 : i32 to index
    %195 = vector.load %arg9[%c0_57, %194] : memref<128x1024xf32, #tpu.memory_space<vmem>>, vector<128x128xf32>
    %cst_58 = arith.constant dense<0.000000e+00> : vector<128x128xf32>
    %196 = tpu.matmul %14, %187, %cst_58 {dimension_numbers = #tpu.dot_dimension_numbers<[1], [0], [0], [1], [0, 0, 1, 1], [], []>} : vector<128x32xf32>, vector<32x128xf32>, vector<128x128xf32> -> vector<128x128xf32>
    %197 = arith.addf %195, %196 : vector<128x128xf32>
    %198 = vector.extract_strided_slice %197 {offsets = [0, 0], sizes = [32, 128], strides = [1, 1]} : vector<128x128xf32> to vector<32x128xf32>
    %199 = arith.negf %198 : vector<32x128xf32>
    %200 = math.exp %199 : vector<32x128xf32>
    %cst_59 = arith.constant 1.000000e+00 : f32
    %201 = vector.broadcast %cst_59 : f32 to vector<32x128xf32>
    %202 = arith.addf %201, %200 : vector<32x128xf32>
    %203 = arith.divf %201, %202 : vector<32x128xf32>
    %204 = vector.extract_strided_slice %197 {offsets = [32, 0], sizes = [32, 128], strides = [1, 1]} : vector<128x128xf32> to vector<32x128xf32>
    %205 = arith.negf %204 : vector<32x128xf32>
    %206 = math.exp %205 : vector<32x128xf32>
    %cst_60 = arith.constant 1.000000e+00 : f32
    %207 = vector.broadcast %cst_60 : f32 to vector<32x128xf32>
    %208 = arith.addf %207, %206 : vector<32x128xf32>
    %209 = arith.divf %207, %208 : vector<32x128xf32>
    %210 = vector.extract_strided_slice %197 {offsets = [64, 0], sizes = [32, 128], strides = [1, 1]} : vector<128x128xf32> to vector<32x128xf32>
    %211 = math.tanh %210 : vector<32x128xf32>
    %212 = vector.extract_strided_slice %197 {offsets = [96, 0], sizes = [32, 128], strides = [1, 1]} : vector<128x128xf32> to vector<32x128xf32>
    %213 = arith.negf %212 : vector<32x128xf32>
    %214 = math.exp %213 : vector<32x128xf32>
    %cst_61 = arith.constant 1.000000e+00 : f32
    %215 = vector.broadcast %cst_61 : f32 to vector<32x128xf32>
    %216 = arith.addf %215, %214 : vector<32x128xf32>
    %217 = arith.divf %215, %216 : vector<32x128xf32>
    %218 = arith.mulf %209, %185 : vector<32x128xf32>
    %219 = arith.mulf %203, %211 : vector<32x128xf32>
    %220 = arith.addf %218, %219 : vector<32x128xf32>
    %221 = math.tanh %220 : vector<32x128xf32>
    %222 = arith.mulf %217, %221 : vector<32x128xf32>
    %223 = arith.index_cast %c5_i32 : i32 to index
    %c0_62 = arith.constant 0 : index
    %c0_63 = arith.constant 0 : index
    %224 = vector.load %arg10[%223, %c0_62, %c0_63] : memref<8x32x128xf32, #tpu.memory_space<vmem>>, vector<1x32x128xf32>
    %225 = vector.shape_cast %224 : vector<1x32x128xf32> to vector<32x128xf32>
    %226 = vector.shape_cast %222 : vector<32x128xf32> to vector<1x32x128xf32>
    tpu.vector_store %arg10[%223, %c0_62, %c0_63], %226 {strides = array<i32>} : memref<8x32x128xf32, #tpu.memory_space<vmem>>, vector<1x32x128xf32>,
    %c6_i32 = arith.constant 6 : i32
    %c128_i32_64 = arith.constant 128 : i32
    %227 = arith.muli %c6_i32, %c128_i32_64 : i32
    %228 = tpu.assume_multiple %227, 128 : i32
    %c0_65 = arith.constant 0 : index
    %229 = arith.index_cast %228 : i32 to index
    %230 = vector.load %arg9[%c0_65, %229] : memref<128x1024xf32, #tpu.memory_space<vmem>>, vector<128x128xf32>
    %cst_66 = arith.constant dense<0.000000e+00> : vector<128x128xf32>
    %231 = tpu.matmul %14, %222, %cst_66 {dimension_numbers = #tpu.dot_dimension_numbers<[1], [0], [0], [1], [0, 0, 1, 1], [], []>} : vector<128x32xf32>, vector<32x128xf32>, vector<128x128xf32> -> vector<128x128xf32>
    %232 = arith.addf %230, %231 : vector<128x128xf32>
    %233 = vector.extract_strided_slice %232 {offsets = [0, 0], sizes = [32, 128], strides = [1, 1]} : vector<128x128xf32> to vector<32x128xf32>
    %234 = arith.negf %233 : vector<32x128xf32>
    %235 = math.exp %234 : vector<32x128xf32>
    %cst_67 = arith.constant 1.000000e+00 : f32
    %236 = vector.broadcast %cst_67 : f32 to vector<32x128xf32>
    %237 = arith.addf %236, %235 : vector<32x128xf32>
    %238 = arith.divf %236, %237 : vector<32x128xf32>
    %239 = vector.extract_strided_slice %232 {offsets = [32, 0], sizes = [32, 128], strides = [1, 1]} : vector<128x128xf32> to vector<32x128xf32>
    %240 = arith.negf %239 : vector<32x128xf32>
    %241 = math.exp %240 : vector<32x128xf32>
    %cst_68 = arith.constant 1.000000e+00 : f32
    %242 = vector.broadcast %cst_68 : f32 to vector<32x128xf32>
    %243 = arith.addf %242, %241 : vector<32x128xf32>
    %244 = arith.divf %242, %243 : vector<32x128xf32>
    %245 = vector.extract_strided_slice %232 {offsets = [64, 0], sizes = [32, 128], strides = [1, 1]} : vector<128x128xf32> to vector<32x128xf32>
    %246 = math.tanh %245 : vector<32x128xf32>
    %247 = vector.extract_strided_slice %232 {offsets = [96, 0], sizes = [32, 128], strides = [1, 1]} : vector<128x128xf32> to vector<32x128xf32>
    %248 = arith.negf %247 : vector<32x128xf32>
    %249 = math.exp %248 : vector<32x128xf32>
    %cst_69 = arith.constant 1.000000e+00 : f32
    %250 = vector.broadcast %cst_69 : f32 to vector<32x128xf32>
    %251 = arith.addf %250, %249 : vector<32x128xf32>
    %252 = arith.divf %250, %251 : vector<32x128xf32>
    %253 = arith.mulf %244, %220 : vector<32x128xf32>
    %254 = arith.mulf %238, %246 : vector<32x128xf32>
    %255 = arith.addf %253, %254 : vector<32x128xf32>
    %256 = math.tanh %255 : vector<32x128xf32>
    %257 = arith.mulf %252, %256 : vector<32x128xf32>
    %258 = arith.index_cast %c6_i32 : i32 to index
    %c0_70 = arith.constant 0 : index
    %c0_71 = arith.constant 0 : index
    %259 = vector.load %arg10[%258, %c0_70, %c0_71] : memref<8x32x128xf32, #tpu.memory_space<vmem>>, vector<1x32x128xf32>
    %260 = vector.shape_cast %259 : vector<1x32x128xf32> to vector<32x128xf32>
    %261 = vector.shape_cast %257 : vector<32x128xf32> to vector<1x32x128xf32>
    tpu.vector_store %arg10[%258, %c0_70, %c0_71], %261 {strides = array<i32>} : memref<8x32x128xf32, #tpu.memory_space<vmem>>, vector<1x32x128xf32>,
    %c7_i32 = arith.constant 7 : i32
    %c128_i32_72 = arith.constant 128 : i32
    %262 = arith.muli %c7_i32, %c128_i32_72 : i32
    %263 = tpu.assume_multiple %262, 128 : i32
    %c0_73 = arith.constant 0 : index
    %264 = arith.index_cast %263 : i32 to index
    %265 = vector.load %arg9[%c0_73, %264] : memref<128x1024xf32, #tpu.memory_space<vmem>>, vector<128x128xf32>
    %cst_74 = arith.constant dense<0.000000e+00> : vector<128x128xf32>
    %266 = tpu.matmul %14, %257, %cst_74 {dimension_numbers = #tpu.dot_dimension_numbers<[1], [0], [0], [1], [0, 0, 1, 1], [], []>} : vector<128x32xf32>, vector<32x128xf32>, vector<128x128xf32> -> vector<128x128xf32>
    %267 = arith.addf %265, %266 : vector<128x128xf32>
    %268 = vector.extract_strided_slice %267 {offsets = [0, 0], sizes = [32, 128], strides = [1, 1]} : vector<128x128xf32> to vector<32x128xf32>
    %269 = arith.negf %268 : vector<32x128xf32>
    %270 = math.exp %269 : vector<32x128xf32>
    %cst_75 = arith.constant 1.000000e+00 : f32
    %271 = vector.broadcast %cst_75 : f32 to vector<32x128xf32>
    %272 = arith.addf %271, %270 : vector<32x128xf32>
    %273 = arith.divf %271, %272 : vector<32x128xf32>
    %274 = vector.extract_strided_slice %267 {offsets = [32, 0], sizes = [32, 128], strides = [1, 1]} : vector<128x128xf32> to vector<32x128xf32>
    %275 = arith.negf %274 : vector<32x128xf32>
    %276 = math.exp %275 : vector<32x128xf32>
    %cst_76 = arith.constant 1.000000e+00 : f32
    %277 = vector.broadcast %cst_76 : f32 to vector<32x128xf32>
    %278 = arith.addf %277, %276 : vector<32x128xf32>
    %279 = arith.divf %277, %278 : vector<32x128xf32>
    %280 = vector.extract_strided_slice %267 {offsets = [64, 0], sizes = [32, 128], strides = [1, 1]} : vector<128x128xf32> to vector<32x128xf32>
    %281 = math.tanh %280 : vector<32x128xf32>
    %282 = vector.extract_strided_slice %267 {offsets = [96, 0], sizes = [32, 128], strides = [1, 1]} : vector<128x128xf32> to vector<32x128xf32>
    %283 = arith.negf %282 : vector<32x128xf32>
    %284 = math.exp %283 : vector<32x128xf32>
    %cst_77 = arith.constant 1.000000e+00 : f32
    %285 = vector.broadcast %cst_77 : f32 to vector<32x128xf32>
    %286 = arith.addf %285, %284 : vector<32x128xf32>
    %287 = arith.divf %285, %286 : vector<32x128xf32>
    %288 = arith.mulf %279, %255 : vector<32x128xf32>
    %289 = arith.mulf %273, %281 : vector<32x128xf32>
    %290 = arith.addf %288, %289 : vector<32x128xf32>
    %291 = math.tanh %290 : vector<32x128xf32>
    %292 = arith.mulf %287, %291 : vector<32x128xf32>
    %293 = arith.index_cast %c7_i32 : i32 to index
    %c0_78 = arith.constant 0 : index
    %c0_79 = arith.constant 0 : index
    %294 = vector.load %arg10[%293, %c0_78, %c0_79] : memref<8x32x128xf32, #tpu.memory_space<vmem>>, vector<1x32x128xf32>
    %295 = vector.shape_cast %294 : vector<1x32x128xf32> to vector<32x128xf32>
    %296 = vector.shape_cast %292 : vector<32x128xf32> to vector<1x32x128xf32>
    tpu.vector_store %arg10[%293, %c0_78, %c0_79], %296 {strides = array<i32>} : memref<8x32x128xf32, #tpu.memory_space<vmem>>, vector<1x32x128xf32>,
    %c8_i32 = arith.constant 8 : i32
    %c0_80 = arith.constant 0 : index
    %c0_81 = arith.constant 0 : index
    %c0_82 = arith.constant 0 : index
    %297 = vector.load %arg10[%c0_80, %c0_81, %c0_82] : memref<8x32x128xf32, #tpu.memory_space<vmem>>, vector<1x32x128xf32>
    %298 = vector.shape_cast %297 : vector<1x32x128xf32> to vector<32x128xf32>
    %299 = arith.mulf %298, %292 : vector<32x128xf32>
    %cst_83 = arith.constant dense<0.000000e+00> : vector<128xf32>
    %300 = vector.multi_reduction <add>, %299, %cst_83 [0] : vector<32x128xf32> to vector<128xf32>
    %301 = vector.shape_cast %300 : vector<128xf32> to vector<1x128xf32>
    %c1 = arith.constant 1 : index
    %c0_84 = arith.constant 0 : index
    %c0_85 = arith.constant 0 : index
    %302 = vector.load %arg10[%c1, %c0_84, %c0_85] : memref<8x32x128xf32, #tpu.memory_space<vmem>>, vector<1x32x128xf32>
    %303 = vector.shape_cast %302 : vector<1x32x128xf32> to vector<32x128xf32>
    %304 = arith.mulf %303, %292 : vector<32x128xf32>
    %cst_86 = arith.constant dense<0.000000e+00> : vector<128xf32>
    %305 = vector.multi_reduction <add>, %304, %cst_86 [0] : vector<32x128xf32> to vector<128xf32>
    %306 = vector.shape_cast %305 : vector<128xf32> to vector<1x128xf32>
    %c2 = arith.constant 2 : index
    %c0_87 = arith.constant 0 : index
    %c0_88 = arith.constant 0 : index
    %307 = vector.load %arg10[%c2, %c0_87, %c0_88] : memref<8x32x128xf32, #tpu.memory_space<vmem>>, vector<1x32x128xf32>
    %308 = vector.shape_cast %307 : vector<1x32x128xf32> to vector<32x128xf32>
    %309 = arith.mulf %308, %292 : vector<32x128xf32>
    %cst_89 = arith.constant dense<0.000000e+00> : vector<128xf32>
    %310 = vector.multi_reduction <add>, %309, %cst_89 [0] : vector<32x128xf32> to vector<128xf32>
    %311 = vector.shape_cast %310 : vector<128xf32> to vector<1x128xf32>
    %c3 = arith.constant 3 : index
    %c0_90 = arith.constant 0 : index
    %c0_91 = arith.constant 0 : index
    %312 = vector.load %arg10[%c3, %c0_90, %c0_91] : memref<8x32x128xf32, #tpu.memory_space<vmem>>, vector<1x32x128xf32>
    %313 = vector.shape_cast %312 : vector<1x32x128xf32> to vector<32x128xf32>
    %314 = arith.mulf %313, %292 : vector<32x128xf32>
    %cst_92 = arith.constant dense<0.000000e+00> : vector<128xf32>
    %315 = vector.multi_reduction <add>, %314, %cst_92 [0] : vector<32x128xf32> to vector<128xf32>
    %316 = vector.shape_cast %315 : vector<128xf32> to vector<1x128xf32>
    %c4 = arith.constant 4 : index
    %c0_93 = arith.constant 0 : index
    %c0_94 = arith.constant 0 : index
    %317 = vector.load %arg10[%c4, %c0_93, %c0_94] : memref<8x32x128xf32, #tpu.memory_space<vmem>>, vector<1x32x128xf32>
    %318 = vector.shape_cast %317 : vector<1x32x128xf32> to vector<32x128xf32>
    %319 = arith.mulf %318, %292 : vector<32x128xf32>
    %cst_95 = arith.constant dense<0.000000e+00> : vector<128xf32>
    %320 = vector.multi_reduction <add>, %319, %cst_95 [0] : vector<32x128xf32> to vector<128xf32>
    %321 = vector.shape_cast %320 : vector<128xf32> to vector<1x128xf32>
    %c5 = arith.constant 5 : index
    %c0_96 = arith.constant 0 : index
    %c0_97 = arith.constant 0 : index
    %322 = vector.load %arg10[%c5, %c0_96, %c0_97] : memref<8x32x128xf32, #tpu.memory_space<vmem>>, vector<1x32x128xf32>
    %323 = vector.shape_cast %322 : vector<1x32x128xf32> to vector<32x128xf32>
    %324 = arith.mulf %323, %292 : vector<32x128xf32>
    %cst_98 = arith.constant dense<0.000000e+00> : vector<128xf32>
    %325 = vector.multi_reduction <add>, %324, %cst_98 [0] : vector<32x128xf32> to vector<128xf32>
    %326 = vector.shape_cast %325 : vector<128xf32> to vector<1x128xf32>
    %c6 = arith.constant 6 : index
    %c0_99 = arith.constant 0 : index
    %c0_100 = arith.constant 0 : index
    %327 = vector.load %arg10[%c6, %c0_99, %c0_100] : memref<8x32x128xf32, #tpu.memory_space<vmem>>, vector<1x32x128xf32>
    %328 = vector.shape_cast %327 : vector<1x32x128xf32> to vector<32x128xf32>
    %329 = arith.mulf %328, %292 : vector<32x128xf32>
    %cst_101 = arith.constant dense<0.000000e+00> : vector<128xf32>
    %330 = vector.multi_reduction <add>, %329, %cst_101 [0] : vector<32x128xf32> to vector<128xf32>
    %331 = vector.shape_cast %330 : vector<128xf32> to vector<1x128xf32>
    %c7 = arith.constant 7 : index
    %c0_102 = arith.constant 0 : index
    %c0_103 = arith.constant 0 : index
    %332 = vector.load %arg10[%c7, %c0_102, %c0_103] : memref<8x32x128xf32, #tpu.memory_space<vmem>>, vector<1x32x128xf32>
    %333 = vector.shape_cast %332 : vector<1x32x128xf32> to vector<32x128xf32>
    %334 = arith.mulf %333, %292 : vector<32x128xf32>
    %cst_104 = arith.constant dense<0.000000e+00> : vector<128xf32>
    %335 = vector.multi_reduction <add>, %334, %cst_104 [0] : vector<32x128xf32> to vector<128xf32>
    %336 = vector.shape_cast %335 : vector<128xf32> to vector<1x128xf32>
    %337 = tpu.concatenate %301, %306, %311, %316, %321, %326, %331, %336 in 0 : vector<1x128xf32>, vector<1x128xf32>, vector<1x128xf32>, vector<1x128xf32>, vector<1x128xf32>, vector<1x128xf32>, vector<1x128xf32>, vector<1x128xf32> -> vector<8x128xf32>
    %cst_105 = arith.constant dense<0xFF800000> : vector<128xf32>
    %338 = vector.multi_reduction <maximumf>, %337, %cst_105 [0] : vector<8x128xf32> to vector<128xf32>
    %339 = vector.shape_cast %338 : vector<128xf32> to vector<1x128xf32>
    %340 = vector.broadcast %339 : vector<1x128xf32> to vector<8x128xf32>
    %341 = arith.subf %337, %340 : vector<8x128xf32>
    %342 = math.exp %341 : vector<8x128xf32>
    %cst_106 = arith.constant dense<0.000000e+00> : vector<128xf32>
    %343 = vector.multi_reduction <add>, %342, %cst_106 [0] : vector<8x128xf32> to vector<128xf32>
    %344 = vector.shape_cast %343 : vector<128xf32> to vector<1x128xf32>
    %345 = tpu.reciprocal %344 : vector<1x128xf32> -> vector<1x128xf32>
    %346 = vector.broadcast %345 : vector<1x128xf32> to vector<8x128xf32>
    %347 = arith.mulf %342, %346 : vector<8x128xf32>
    %c0_107 = arith.constant 0 : index
    %c3_108 = arith.constant 3 : index
    %c0_109 = arith.constant 0 : index
    %348 = vector.load %arg1[%c0_107, %c3_108, %c0_109] : memref<1x4x1024xf32, #tpu.memory_space<vmem>>, vector<1x1x128xf32>
    %349 = vector.shape_cast %348 : vector<1x1x128xf32> to vector<1x128xf32>
    %c0_110 = arith.constant 0 : index
    %c3_111 = arith.constant 3 : index
    %c128 = arith.constant 128 : index
    %350 = vector.load %arg1[%c0_110, %c3_111, %c128] : memref<1x4x1024xf32, #tpu.memory_space<vmem>>, vector<1x1x128xf32>
    %351 = vector.shape_cast %350 : vector<1x1x128xf32> to vector<1x128xf32>
    %c0_112 = arith.constant 0 : index
    %c3_113 = arith.constant 3 : index
    %c256 = arith.constant 256 : index
    %352 = vector.load %arg1[%c0_112, %c3_113, %c256] : memref<1x4x1024xf32, #tpu.memory_space<vmem>>, vector<1x1x128xf32>
    %353 = vector.shape_cast %352 : vector<1x1x128xf32> to vector<1x128xf32>
    %c0_114 = arith.constant 0 : index
    %c3_115 = arith.constant 3 : index
    %c384 = arith.constant 384 : index
    %354 = vector.load %arg1[%c0_114, %c3_115, %c384] : memref<1x4x1024xf32, #tpu.memory_space<vmem>>, vector<1x1x128xf32>
    %355 = vector.shape_cast %354 : vector<1x1x128xf32> to vector<1x128xf32>
    %c0_116 = arith.constant 0 : index
    %c3_117 = arith.constant 3 : index
    %c512 = arith.constant 512 : index
    %356 = vector.load %arg1[%c0_116, %c3_117, %c512] : memref<1x4x1024xf32, #tpu.memory_space<vmem>>, vector<1x1x128xf32>
    %357 = vector.shape_cast %356 : vector<1x1x128xf32> to vector<1x128xf32>
    %c0_118 = arith.constant 0 : index
    %c3_119 = arith.constant 3 : index
    %c640 = arith.constant 640 : index
    %358 = vector.load %arg1[%c0_118, %c3_119, %c640] : memref<1x4x1024xf32, #tpu.memory_space<vmem>>, vector<1x1x128xf32>
    %359 = vector.shape_cast %358 : vector<1x1x128xf32> to vector<1x128xf32>
    %c0_120 = arith.constant 0 : index
    %c3_121 = arith.constant 3 : index
    %c768 = arith.constant 768 : index
    %360 = vector.load %arg1[%c0_120, %c3_121, %c768] : memref<1x4x1024xf32, #tpu.memory_space<vmem>>, vector<1x1x128xf32>
    %361 = vector.shape_cast %360 : vector<1x1x128xf32> to vector<1x128xf32>
    %c0_122 = arith.constant 0 : index
    %c3_123 = arith.constant 3 : index
    %c896 = arith.constant 896 : index
    %362 = vector.load %arg1[%c0_122, %c3_123, %c896] : memref<1x4x1024xf32, #tpu.memory_space<vmem>>, vector<1x1x128xf32>
    %363 = vector.shape_cast %362 : vector<1x1x128xf32> to vector<1x128xf32>
    %364 = tpu.concatenate %349, %351, %353, %355, %357, %359, %361, %363 in 0 : vector<1x128xf32>, vector<1x128xf32>, vector<1x128xf32>, vector<1x128xf32>, vector<1x128xf32>, vector<1x128xf32>, vector<1x128xf32>, vector<1x128xf32> -> vector<8x128xf32>
    %365 = arith.mulf %347, %364 : vector<8x128xf32>
    %cst_124 = arith.constant dense<0.000000e+00> : vector<128xf32>
    %366 = vector.multi_reduction <add>, %365, %cst_124 [0] : vector<8x128xf32> to vector<128xf32>
    %367 = vector.shape_cast %366 : vector<128xf32> to vector<1x128xf32>
    %368 = vector.broadcast %367 : vector<1x128xf32> to vector<8x128xf32>
    %369 = arith.subf %364, %368 : vector<8x128xf32>
    %370 = arith.mulf %369, %369 : vector<8x128xf32>
    %371 = arith.mulf %347, %370 : vector<8x128xf32>
    %cst_125 = arith.constant dense<0.000000e+00> : vector<128xf32>
    %372 = vector.multi_reduction <add>, %371, %cst_125 [0] : vector<8x128xf32> to vector<128xf32>
    %373 = vector.shape_cast %372 : vector<128xf32> to vector<1x128xf32>
    %374 = math.sqrt %373 : vector<1x128xf32>
    %c0_126 = arith.constant 0 : index
    %c0_127 = arith.constant 0 : index
    %375 = vector.load %arg7[%c0_126, %c0_127] : memref<1x128xf32, #tpu.memory_space<vmem>>, vector<1x128xf32>
    tpu.vector_store %arg7[%c0_126, %c0_127], %367 {strides = array<i32>} : memref<1x128xf32, #tpu.memory_space<vmem>>, vector<1x128xf32>,
    %c0_128 = arith.constant 0 : index
    %c0_129 = arith.constant 0 : index
    %376 = vector.load %arg8[%c0_128, %c0_129] : memref<1x128xf32, #tpu.memory_space<vmem>>, vector<1x128xf32>
    tpu.vector_store %arg8[%c0_128, %c0_129], %374 {strides = array<i32>} : memref<1x128xf32, #tpu.memory_space<vmem>>, vector<1x128xf32>,
    return
  }
  func.func @transform_0(%arg0: i32) -> (i32, i32, i32) {
    %c0_i32 = arith.constant 0 : i32
    %c0_i32_0 = arith.constant 0 : i32
    %c0_i32_1 = arith.constant 0 : i32
    return %arg0, %c0_i32, %c0_i32_0 : i32, i32, i32
  }
  func.func @transform_1(%arg0: i32) -> (i32, i32) {
    %c0_i32 = arith.constant 0 : i32
    %c0_i32_0 = arith.constant 0 : i32
    %c0_i32_1 = arith.constant 0 : i32
    return %c0_i32, %c0_i32_0 : i32, i32
  }
  func.func @transform_2(%arg0: i32) -> (i32, i32) {
    %c0_i32 = arith.constant 0 : i32
    %c0_i32_0 = arith.constant 0 : i32
    %c0_i32_1 = arith.constant 0 : i32
    return %c0_i32, %c0_i32_0 : i32, i32
  }
  func.func @transform_3(%arg0: i32) -> (i32, i32) {
    %c0_i32 = arith.constant 0 : i32
    %c0_i32_0 = arith.constant 0 : i32
    %c0_i32_1 = arith.constant 0 : i32
    return %c0_i32, %c0_i32_0 : i32, i32
  }
  func.func @transform_4(%arg0: i32) -> (i32, i32) {
    %c0_i32 = arith.constant 0 : i32
    %c0_i32_0 = arith.constant 0 : i32
    %c0_i32_1 = arith.constant 0 : i32
    return %c0_i32, %c0_i32_0 : i32, i32
  }
  func.func @transform_5(%arg0: i32) -> (i32, i32) {
    %c0_i32 = arith.constant 0 : i32
    %c0_i32_0 = arith.constant 0 : i32
    %c0_i32_1 = arith.constant 0 : i32
    return %c0_i32, %c0_i32_0 : i32, i32
  }
  func.func @transform_6(%arg0: i32) -> (i32, i32) {
    %c0_i32 = arith.constant 0 : i32
    %c0_i32_0 = arith.constant 0 : i32
    return %c0_i32, %arg0 : i32, i32
  }
  func.func @transform_7(%arg0: i32) -> (i32, i32) {
    %c0_i32 = arith.constant 0 : i32
    %c0_i32_0 = arith.constant 0 : i32
    return %c0_i32, %arg0 : i32, i32
  }
}

</mosaic_0001>

<llo_original>
// kernel: tpu_custom_call.1
$region0: #{tpu_custom_call.1}
  #allocation0 [shape = 'u32[]', space=smem, size = 0x4, offset = 0x4, fixed_abs, tag = 'smem constant byte address 0x4 - core index']
  #allocation1 [shape = 'u32[144,128]{1,0:T(1,128)}', space=vmem, size = 0x12000, scoped, tag = 'internal scratch']
  #allocation2 [shape = 'f32[128,1024]{1,0:T(8,128)}', space=vmem, size = 0x80000, scoped, tag = 'scratch operand']
  #allocation3 [shape = 'f32[8,32,128]{2,1,0:T(8,128)}', space=vmem, size = 0x20000, scoped, tag = 'scratch operand']
  %s0 = inlined_call_operand.vmem [shape: f32[1,4,1024], index: 0, kind: input, shape index: {}]
  %s1 = inlined_call_operand.vmem [shape: f32[32,4], index: 1, kind: input, shape index: {}]
  %s2 = inlined_call_operand.vmem [shape: f32[32,1], index: 2, kind: input, shape index: {}]
  %s3 = inlined_call_operand.vmem [shape: f32[128,32], index: 3, kind: input, shape index: {}]
  %s4 = inlined_call_operand.vmem [shape: f32[128,32], index: 4, kind: input, shape index: {}]
  %s5 = inlined_call_operand.vmem [shape: f32[128,1], index: 5, kind: input, shape index: {}]
  %s6 = inlined_call_operand.hbm [shape: f32[1,128], index: 6, kind: output, shape index: {0}]
  %s7 = inlined_call_operand.hbm [shape: f32[1,128], index: 7, kind: output, shape index: {1}]
  %8 = xla_tuple %s6, %s7
  %s9 = sld [smem:[#allocation0]]
  $region42: #{tpu_custom_call.1} parent=0
    _
  %s11 = ssub.s32 1, %s9
  %s12 = scalar_select 0, %s11, %s9
  $region1: #{tpu_custom_call.1} parent=0
    #allocation4 [shape = 'u8[512]{0}', space=vmem, size = 0x400, scoped, tag = 'output window, operand 0, single buffered']
    #allocation5 [shape = 's32[1]{0}', space=sflag, size = 0x4, scoped, tag = 'scoped memory for tpu_custom_call.1']
    #allocation6 [shape = 'u8[512]{0}', space=vmem, size = 0x400, scoped, tag = 'output window, operand 1, single buffered']
    #allocation7 [shape = 's32[1]{0}', space=sflag, size = 0x4, scoped, tag = 'scoped memory for tpu_custom_call.1']
    %13 = vsyncpa [#allocation5], 0
    %14 = vsyncpa [#allocation7], 0
    // Predicated region
    $region2: #{tpu_custom_call.1} parent=1 // pred_check
      _
    $region3: #{tpu_custom_call.1} parent=1 // pred_check_branch
      %16 = sbr.rel (0) target = $region5
    $region4: #{tpu_custom_call.1} parent=1 // pred_region
      _
    $region5: #{tpu_custom_call.1} parent=1 // pred_fallthru
      _
    // Predicated region
    $region6: #{tpu_custom_call.1} parent=1 // pred_check
      _
    $region7: #{tpu_custom_call.1} parent=1 // pred_check_branch
      %18 = sbr.rel (0) target = $region9
    $region8: #{tpu_custom_call.1} parent=1 // pred_region
      _
    $region9: #{tpu_custom_call.1} parent=1 // pred_fallthru
      _
    // Predicated region
    $region10: #{tpu_custom_call.1} parent=1 // pred_check
      _
    $region11: #{tpu_custom_call.1} parent=1 // pred_check_branch
      %20 = sbr.rel (0) target = $region13
    $region12: #{tpu_custom_call.1} parent=1 // pred_region
      _
    $region13: #{tpu_custom_call.1} parent=1 // pred_fallthru
      _
    // Predicated region
    $region14: #{tpu_custom_call.1} parent=1 // pred_check
      _
    $region15: #{tpu_custom_call.1} parent=1 // pred_check_branch
      %22 = sbr.rel (0) target = $region17
    $region16: #{tpu_custom_call.1} parent=1 // pred_region
      _
    $region17: #{tpu_custom_call.1} parent=1 // pred_fallthru
      _
    // Predicated region
    $region18: #{tpu_custom_call.1} parent=1 // pred_check
      _
    $region19: #{tpu_custom_call.1} parent=1 // pred_check_branch
      %24 = sbr.rel (0) target = $region21
    $region20: #{tpu_custom_call.1} parent=1 // pred_region
      _
    $region21: #{tpu_custom_call.1} parent=1 // pred_fallthru
      _
    // Predicated region
    $region22: #{tpu_custom_call.1} parent=1 // pred_check
      _
    $region23: #{tpu_custom_call.1} parent=1 // pred_check_branch
      %26 = sbr.rel (0) target = $region25
    $region24: #{tpu_custom_call.1} parent=1 // pred_region
      _
    $region25: #{tpu_custom_call.1} parent=1 // pred_fallthru
      _
    %v27 = vld [vmem:[%s1] sm:$0xff]
    %v28 = vld [vmem:[%s1 + $0x8] sm:$0xff]
    %v29 = vld [vmem:[%s1 + $0x10] sm:$0xff]
    %v30 = vld [vmem:[%s1 + $0x18] sm:$0xff]
    %v31 = vld [vmem:[%s0] sm:$0xff]
    %v32 = vld [vmem:[%s0 + $0x8] sm:$0xff]
    %v33 = vld [vmem:[%s0 + $0x10] sm:$0xff]
    %v34 = vld [vmem:[%s0 + $0x18] sm:$0xff]
    %v35 = vld [vmem:[%s2] sm:$0xff]
    %v36 = vld [vmem:[%s2 + $0x8] sm:$0xff]
    %v37 = vld [vmem:[%s2 + $0x10] sm:$0xff]
    %v38 = vld [vmem:[%s2 + $0x18] sm:$0xff]
    %40 = vset.pattern.permute.xlu0 0
    %41 = vperm.xlu0 %40, %v35
    %v42 = vpop.permute.xlu0 %41
    %45 = vset.pattern.permute.xlu0 0
    %46 = vperm.xlu0 %45, %v36
    %v47 = vpop.permute.xlu0 %46
    %50 = vset.pattern.permute.xlu0 0
    %51 = vperm.xlu0 %50, %v37
    %v52 = vpop.permute.xlu0 %51
    %55 = vset.pattern.permute.xlu0 0
    %56 = vperm.xlu0 %55, %v38
    %v57 = vpop.permute.xlu0 %56
    %v63 = vcombine.high %v31, %v31
    %v64 = vcombine.high %v32, %v32
    %v65 = vcombine.high %v33, %v33
    %v66 = vcombine.high %v34, %v34
    %vm67 = vcmask 31744
    %v69 = vsel %vm67, %v27, 0
    %v72 = vsel %vm67, %v28, 0
    %v75 = vsel %vm67, %v29, 0
    %v78 = vsel %vm67, %v30, 0
    %vm80 = vcmask 1043456
    %v81 = vsel %vm80, %v31, 0
    %v83 = vsel %vm80, %v63, 0
    %v85 = vsel %vm80, %v32, 0
    %v87 = vsel %vm80, %v64, 0
    %v89 = vsel %vm80, %v33, 0
    %v91 = vsel %vm80, %v65, 0
    %v93 = vsel %vm80, %v34, 0
    %v95 = vsel %vm80, %v66, 0
    %97 = vmatprep.subr.mxu0 %v83
    %98 = vmatpush1.msra.mxu0 %v81
    %99 = vmatprep.subr.mxu0 0.0
    %100 = vmatpush1.msra.mxu0 0.0
    %101 = vmatprep.subr.mxu0 0.0
    %102 = vmatpush1.msra.mxu0 0.0
    %103 = vmatprep.subr.mxu0 0.0
    %104 = vmatpush1.msra.mxu0 0.0
    %105 = vmatprep.subr.mxu0 0.0
    %106 = vmatpush1.msra.mxu0 0.0
    %107 = vmatprep.subr.mxu0 0.0
    %108 = vmatpush1.msra.mxu0 0.0
    %109 = vmatprep.subr.mxu0 0.0
    %110 = vmatpush1.msra.mxu0 0.0
    %111 = vmatprep.subr.mxu0 0.0
    %112 = vmatpush1.msra.mxu0 0.0
    %113 = vmatprep.subr.mxu0 0.0
    %114 = vmatpush1.msra.mxu0 0.0
    %115 = vmatprep.subr.mxu0 0.0
    %116 = vmatpush1.msra.mxu0 0.0
    %117 = vmatprep.subr.mxu0 0.0
    %118 = vmatpush1.msra.mxu0 0.0
    %119 = vmatprep.subr.mxu0 0.0
    %120 = vmatpush1.msra.mxu0 0.0
    %121 = vmatprep.subr.mxu0 0.0
    %122 = vmatpush1.msra.mxu0 0.0
    %123 = vmatprep.subr.mxu0 0.0
    %124 = vmatpush1.msra.mxu0 0.0
    %125 = vmatprep.subr.mxu0 0.0
    %126 = vmatpush1.msra.mxu0 0.0
    %127 = vmatprep.subr.mxu0 0.0
    %128 = vmatpush1.msra.mxu0 0.0
    %129 = vmatprep.subr.mxu0 0.0
    %130 = vmatpush1.msra.mxu0 0.0
    %131 = vmatprep.subr.mxu0 0.0
    %132 = vmatpush1.msra.mxu0 0.0
    %133 = vmatprep.subr.mxu0 0.0
    %134 = vmatpush1.msra.mxu0 0.0
    %135 = vmatprep.subr.mxu0 0.0
    %136 = vmatpush1.msra.mxu0 0.0
    %137 = vmatprep.subr.mxu0 0.0
    %138 = vmatpush1.msra.mxu0 0.0
    %139 = vmatprep.subr.mxu0 0.0
    %140 = vmatpush1.msra.mxu0 0.0
    %141 = vmatprep.subr.mxu0 0.0
    %142 = vmatpush1.msra.mxu0 0.0
    %143 = vmatprep.subr.mxu0 0.0
    %144 = vmatpush1.msra.mxu0 0.0
    %145 = vmatprep.subr.mxu0 0.0
    %146 = vmatpush1.msra.mxu0 0.0
    %147 = vmatprep.subr.mxu0 0.0
    %148 = vmatpush1.msra.mxu0 0.0
    %149 = vmatprep.subr.mxu0 0.0
    %150 = vmatpush1.msra.mxu0 0.0
    %151 = vmatprep.subr.mxu0 0.0
    %152 = vmatpush1.msra.mxu0 0.0
    %153 = vmatprep.subr.mxu0 0.0
    %154 = vmatpush1.msra.mxu0 0.0
    %155 = vmatprep.subr.mxu0 0.0
    %156 = vmatpush1.msra.mxu0 0.0
    %157 = vmatprep.subr.mxu0 0.0
    %158 = vmatpush1.msra.mxu0 0.0
    %159 = vmatprep.subr.mxu0 0.0
    %160 = vmatpush1.msra.mxu0 0.0
    %161 = vmatprep.mubr.f32.mxu0 0.0
    %162 = vmatmul.mubr.f32.gmra.mrb[0].mxu0 %v69
    %v163 = vpop.f32.mrb[0].mxu0
    %v164 = vadd.f32 %v42, %v163
    %v165 = vpop.f32.mrb[0].mxu0
    %v166 = vadd.f32 %v42, %v165
    %167 = vmatprep.mubr.f32.mxu0 0.0
    %168 = vmatmul.mubr.f32.gmra.mrb[0].mxu0 %v72
    %v169 = vpop.f32.mrb[0].mxu0
    %v170 = vadd.f32 %v47, %v169
    %v171 = vpop.f32.mrb[0].mxu0
    %v172 = vadd.f32 %v47, %v171
    %173 = vmatprep.mubr.f32.mxu0 0.0
    %174 = vmatmul.mubr.f32.gmra.mrb[0].mxu0 %v75
    %v175 = vpop.f32.mrb[0].mxu0
    %v176 = vadd.f32 %v52, %v175
    %v177 = vpop.f32.mrb[0].mxu0
    %v178 = vadd.f32 %v52, %v177
    %179 = vmatprep.mubr.f32.mxu0 0.0
    %180 = vmatmul.mubr.f32.gmra.mrb[0].mxu0 %v78
    %v181 = vpop.f32.mrb[0].mxu0
    %v182 = vadd.f32 %v57, %v181
    %v183 = vpop.f32.mrb[0].mxu0
    %v184 = vadd.f32 %v57, %v183
    %185 = vdwg.mxu0
    %186 = vmatprep.subr.mxu0 %v87
    %187 = vmatpush1.msra.mxu0 %v85
    %188 = vmatprep.subr.mxu0 0.0
    %189 = vmatpush1.msra.mxu0 0.0
    %190 = vmatprep.subr.mxu0 0.0
    %191 = vmatpush1.msra.mxu0 0.0
    %192 = vmatprep.subr.mxu0 0.0
    %193 = vmatpush1.msra.mxu0 0.0
    %194 = vmatprep.subr.mxu0 0.0
    %195 = vmatpush1.msra.mxu0 0.0
    %196 = vmatprep.subr.mxu0 0.0
    %197 = vmatpush1.msra.mxu0 0.0
    %198 = vmatprep.subr.mxu0 0.0
    %199 = vmatpush1.msra.mxu0 0.0
    %200 = vmatprep.subr.mxu0 0.0
    %201 = vmatpush1.msra.mxu0 0.0
    %202 = vmatprep.subr.mxu0 0.0
    %203 = vmatpush1.msra.mxu0 0.0
    %204 = vmatprep.subr.mxu0 0.0
    %205 = vmatpush1.msra.mxu0 0.0
    %206 = vmatprep.subr.mxu0 0.0
    %207 = vmatpush1.msra.mxu0 0.0
    %208 = vmatprep.subr.mxu0 0.0
    %209 = vmatpush1.msra.mxu0 0.0
    %210 = vmatprep.subr.mxu0 0.0
    %211 = vmatpush1.msra.mxu0 0.0
    %212 = vmatprep.subr.mxu0 0.0
    %213 = vmatpush1.msra.mxu0 0.0
    %214 = vmatprep.subr.mxu0 0.0
    %215 = vmatpush1.msra.mxu0 0.0
    %216 = vmatprep.subr.mxu0 0.0
    %217 = vmatpush1.msra.mxu0 0.0
    %218 = vmatprep.subr.mxu0 0.0
    %219 = vmatpush1.msra.mxu0 0.0
    %220 = vmatprep.subr.mxu0 0.0
    %221 = vmatpush1.msra.mxu0 0.0
    %222 = vmatprep.subr.mxu0 0.0
    %223 = vmatpush1.msra.mxu0 0.0
    %224 = vmatprep.subr.mxu0 0.0
    %225 = vmatpush1.msra.mxu0 0.0
    %226 = vmatprep.subr.mxu0 0.0
    %227 = vmatpush1.msra.mxu0 0.0
    %228 = vmatprep.subr.mxu0 0.0
    %229 = vmatpush1.msra.mxu0 0.0
    %230 = vmatprep.subr.mxu0 0.0
    %231 = vmatpush1.msra.mxu0 0.0
    %232 = vmatprep.subr.mxu0 0.0
    %233 = vmatpush1.msra.mxu0 0.0
    %234 = vmatprep.subr.mxu0 0.0
    %235 = vmatpush1.msra.mxu0 0.0
    %236 = vmatprep.subr.mxu0 0.0
    %237 = vmatpush1.msra.mxu0 0.0
    %238 = vmatprep.subr.mxu0 0.0
    %239 = vmatpush1.msra.mxu0 0.0
    %240 = vmatprep.subr.mxu0 0.0
    %241 = vmatpush1.msra.mxu0 0.0
    %242 = vmatprep.subr.mxu0 0.0
    %243 = vmatpush1.msra.mxu0 0.0
    %244 = vmatprep.subr.mxu0 0.0
    %245 = vmatpush1.msra.mxu0 0.0
    %246 = vmatprep.subr.mxu0 0.0
    %247 = vmatpush1.msra.mxu0 0.0
    %248 = vmatprep.subr.mxu0 0.0
    %249 = vmatpush1.msra.mxu0 0.0
    %250 = vmatprep.mubr.f32.mxu0 0.0
    %251 = vmatmul.mubr.f32.gmra.mrb[0].mxu0 %v69
    %v252 = vpop.f32.mrb[0].mxu0
    %v253 = vadd.f32 %v42, %v252
    %v254 = vpop.f32.mrb[0].mxu0
    %v255 = vadd.f32 %v42, %v254
    %256 = vmatprep.mubr.f32.mxu0 0.0
    %257 = vmatmul.mubr.f32.gmra.mrb[0].mxu0 %v72
    %v258 = vpop.f32.mrb[0].mxu0
    %v259 = vadd.f32 %v47, %v258
    %v260 = vpop.f32.mrb[0].mxu0
    %v261 = vadd.f32 %v47, %v260
    %262 = vmatprep.mubr.f32.mxu0 0.0
    %263 = vmatmul.mubr.f32.gmra.mrb[0].mxu0 %v75
    %v264 = vpop.f32.mrb[0].mxu0
    %v265 = vadd.f32 %v52, %v264
    %v266 = vpop.f32.mrb[0].mxu0
    %v267 = vadd.f32 %v52, %v266
    %268 = vmatprep.mubr.f32.mxu0 0.0
    %269 = vmatmul.mubr.f32.gmra.mrb[0].mxu0 %v78
    %v270 = vpop.f32.mrb[0].mxu0
    %v271 = vadd.f32 %v57, %v270
    %v272 = vpop.f32.mrb[0].mxu0
    %v273 = vadd.f32 %v57, %v272
    %274 = vdwg.mxu0
    %275 = vmatprep.subr.mxu0 %v91
    %276 = vmatpush1.msra.mxu0 %v89
    %277 = vmatprep.subr.mxu0 0.0
    %278 = vmatpush1.msra.mxu0 0.0
    %279 = vmatprep.subr.mxu0 0.0
    %280 = vmatpush1.msra.mxu0 0.0
    %281 = vmatprep.subr.mxu0 0.0
    %282 = vmatpush1.msra.mxu0 0.0
    %283 = vmatprep.subr.mxu0 0.0
    %284 = vmatpush1.msra.mxu0 0.0
    %285 = vmatprep.subr.mxu0 0.0
    %286 = vmatpush1.msra.mxu0 0.0
    %287 = vmatprep.subr.mxu0 0.0
    %288 = vmatpush1.msra.mxu0 0.0
    %289 = vmatprep.subr.mxu0 0.0
    %290 = vmatpush1.msra.mxu0 0.0
    %291 = vmatprep.subr.mxu0 0.0
    %292 = vmatpush1.msra.mxu0 0.0
    %293 = vmatprep.subr.mxu0 0.0
    %294 = vmatpush1.msra.mxu0 0.0
    %295 = vmatprep.subr.mxu0 0.0
    %296 = vmatpush1.msra.mxu0 0.0
    %297 = vmatprep.subr.mxu0 0.0
    %298 = vmatpush1.msra.mxu0 0.0
    %299 = vmatprep.subr.mxu0 0.0
    %300 = vmatpush1.msra.mxu0 0.0
    %301 = vmatprep.subr.mxu0 0.0
    %302 = vmatpush1.msra.mxu0 0.0
    %303 = vmatprep.subr.mxu0 0.0
    %304 = vmatpush1.msra.mxu0 0.0
    %305 = vmatprep.subr.mxu0 0.0
    %306 = vmatpush1.msra.mxu0 0.0
    %307 = vmatprep.subr.mxu0 0.0
    %308 = vmatpush1.msra.mxu0 0.0
    %309 = vmatprep.subr.mxu0 0.0
    %310 = vmatpush1.msra.mxu0 0.0
    %311 = vmatprep.subr.mxu0 0.0
    %312 = vmatpush1.msra.mxu0 0.0
    %313 = vmatprep.subr.mxu0 0.0
    %314 = vmatpush1.msra.mxu0 0.0
    %315 = vmatprep.subr.mxu0 0.0
    %316 = vmatpush1.msra.mxu0 0.0
    %317 = vmatprep.subr.mxu0 0.0
    %318 = vmatpush1.msra.mxu0 0.0
    %319 = vmatprep.subr.mxu0 0.0
    %320 = vmatpush1.msra.mxu0 0.0
    %321 = vmatprep.subr.mxu0 0.0
    %322 = vmatpush1.msra.mxu0 0.0
    %323 = vmatprep.subr.mxu0 0.0
    %324 = vmatpush1.msra.mxu0 0.0
    %325 = vmatprep.subr.mxu0 0.0
    %326 = vmatpush1.msra.mxu0 0.0
    %327 = vmatprep.subr.mxu0 0.0
    %328 = vmatpush1.msra.mxu0 0.0
    %329 = vmatprep.subr.mxu0 0.0
    %330 = vmatpush1.msra.mxu0 0.0
    %331 = vmatprep.subr.mxu0 0.0
    %332 = vmatpush1.msra.mxu0 0.0
    %333 = vmatprep.subr.mxu0 0.0
    %334 = vmatpush1.msra.mxu0 0.0
    %335 = vmatprep.subr.mxu0 0.0
    %336 = vmatpush1.msra.mxu0 0.0
    %337 = vmatprep.subr.mxu0 0.0
    %338 = vmatpush1.msra.mxu0 0.0
    %339 = vmatprep.mubr.f32.mxu0 0.0
    %340 = vmatmul.mubr.f32.gmra.mrb[0].mxu0 %v69
    %v341 = vpop.f32.mrb[0].mxu0
    %v342 = vadd.f32 %v42, %v341
    %v343 = vpop.f32.mrb[0].mxu0
    %v344 = vadd.f32 %v42, %v343
    %345 = vmatprep.mubr.f32.mxu0 0.0
    %346 = vmatmul.mubr.f32.gmra.mrb[0].mxu0 %v72
    %v347 = vpop.f32.mrb[0].mxu0
    %v348 = vadd.f32 %v47, %v347
    %v349 = vpop.f32.mrb[0].mxu0
    %v350 = vadd.f32 %v47, %v349
    %351 = vmatprep.mubr.f32.mxu0 0.0
    %352 = vmatmul.mubr.f32.gmra.mrb[0].mxu0 %v75
    %v353 = vpop.f32.mrb[0].mxu0
    %v354 = vadd.f32 %v52, %v353
    %v355 = vpop.f32.mrb[0].mxu0
    %v356 = vadd.f32 %v52, %v355
    %357 = vmatprep.mubr.f32.mxu0 0.0
    %358 = vmatmul.mubr.f32.gmra.mrb[0].mxu0 %v78
    %v359 = vpop.f32.mrb[0].mxu0
    %v360 = vadd.f32 %v57, %v359
    %v361 = vpop.f32.mrb[0].mxu0
    %v362 = vadd.f32 %v57, %v361
    %363 = vdwg.mxu0
    %364 = vmatprep.subr.mxu0 %v95
    %365 = vmatpush1.msra.mxu0 %v93
    %366 = vmatprep.subr.mxu0 0.0
    %367 = vmatpush1.msra.mxu0 0.0
    %368 = vmatprep.subr.mxu0 0.0
    %369 = vmatpush1.msra.mxu0 0.0
    %370 = vmatprep.subr.mxu0 0.0
    %371 = vmatpush1.msra.mxu0 0.0
    %372 = vmatprep.subr.mxu0 0.0
    %373 = vmatpush1.msra.mxu0 0.0
    %374 = vmatprep.subr.mxu0 0.0
    %375 = vmatpush1.msra.mxu0 0.0
    %376 = vmatprep.subr.mxu0 0.0
    %377 = vmatpush1.msra.mxu0 0.0
    %378 = vmatprep.subr.mxu0 0.0
    %379 = vmatpush1.msra.mxu0 0.0
    %380 = vmatprep.subr.mxu0 0.0
    %381 = vmatpush1.msra.mxu0 0.0
    %382 = vmatprep.subr.mxu0 0.0
    %383 = vmatpush1.msra.mxu0 0.0
    %384 = vmatprep.subr.mxu0 0.0
    %385 = vmatpush1.msra.mxu0 0.0
    %386 = vmatprep.subr.mxu0 0.0
    %387 = vmatpush1.msra.mxu0 0.0
    %388 = vmatprep.subr.mxu0 0.0
    %389 = vmatpush1.msra.mxu0 0.0
    %390 = vmatprep.subr.mxu0 0.0
    %391 = vmatpush1.msra.mxu0 0.0
    %392 = vmatprep.subr.mxu0 0.0
    %393 = vmatpush1.msra.mxu0 0.0
    %394 = vmatprep.subr.mxu0 0.0
    %395 = vmatpush1.msra.mxu0 0.0
    %396 = vmatprep.subr.mxu0 0.0
    %397 = vmatpush1.msra.mxu0 0.0
    %398 = vmatprep.subr.mxu0 0.0
    %399 = vmatpush1.msra.mxu0 0.0
    %400 = vmatprep.subr.mxu0 0.0
    %401 = vmatpush1.msra.mxu0 0.0
    %402 = vmatprep.subr.mxu0 0.0
    %403 = vmatpush1.msra.mxu0 0.0
    %404 = vmatprep.subr.mxu0 0.0
    %405 = vmatpush1.msra.mxu0 0.0
    %406 = vmatprep.subr.mxu0 0.0
    %407 = vmatpush1.msra.mxu0 0.0
    %408 = vmatprep.subr.mxu0 0.0
    %409 = vmatpush1.msra.mxu0 0.0
    %410 = vmatprep.subr.mxu0 0.0
    %411 = vmatpush1.msra.mxu0 0.0
    %412 = vmatprep.subr.mxu0 0.0
    %413 = vmatpush1.msra.mxu0 0.0
    %414 = vmatprep.subr.mxu0 0.0
    %415 = vmatpush1.msra.mxu0 0.0
    %416 = vmatprep.subr.mxu0 0.0
    %417 = vmatpush1.msra.mxu0 0.0
    %418 = vmatprep.subr.mxu0 0.0
    %419 = vmatpush1.msra.mxu0 0.0
    %420 = vmatprep.subr.mxu0 0.0
    %421 = vmatpush1.msra.mxu0 0.0
    %422 = vmatprep.subr.mxu0 0.0
    %423 = vmatpush1.msra.mxu0 0.0
    %424 = vmatprep.subr.mxu0 0.0
    %425 = vmatpush1.msra.mxu0 0.0
    %426 = vmatprep.subr.mxu0 0.0
    %427 = vmatpush1.msra.mxu0 0.0
    %428 = vmatprep.mubr.f32.mxu0 0.0
    %429 = vmatmul.mubr.f32.gmra.mrb[0].mxu0 %v69
    %v430 = vpop.f32.mrb[0].mxu0
    %v431 = vadd.f32 %v42, %v430
    %v432 = vpop.f32.mrb[0].mxu0
    %v433 = vadd.f32 %v42, %v432
    %434 = vmatprep.mubr.f32.mxu0 0.0
    %435 = vmatmul.mubr.f32.gmra.mrb[0].mxu0 %v72
    %v436 = vpop.f32.mrb[0].mxu0
    %v437 = vadd.f32 %v47, %v436
    %v438 = vpop.f32.mrb[0].mxu0
    %v439 = vadd.f32 %v47, %v438
    %440 = vmatprep.mubr.f32.mxu0 0.0
    %441 = vmatmul.mubr.f32.gmra.mrb[0].mxu0 %v75
    %v442 = vpop.f32.mrb[0].mxu0
    %v443 = vadd.f32 %v52, %v442
    %v444 = vpop.f32.mrb[0].mxu0
    %v445 = vadd.f32 %v52, %v444
    %446 = vmatprep.mubr.f32.mxu0 0.0
    %447 = vmatmul.mubr.f32.gmra.mrb[0].mxu0 %v78
    %v448 = vpop.f32.mrb[0].mxu0
    %v449 = vadd.f32 %v57, %v448
    %v450 = vpop.f32.mrb[0].mxu0
    %v451 = vadd.f32 %v57, %v450
    %452 = vdwg.mxu0
    %v453 = vtanh.pop %v164
    %v454 = vtanh.pop %v166
    %v455 = vtanh.pop %v253
    %v456 = vtanh.pop %v255
    %v457 = vtanh.pop %v342
    %v458 = vtanh.pop %v344
    %v459 = vtanh.pop %v431
    %v460 = vtanh.pop %v433
    %v461 = vtanh.pop %v170
    %v462 = vtanh.pop %v172
    %v463 = vtanh.pop %v259
    %v464 = vtanh.pop %v261
    %v465 = vtanh.pop %v348
    %v466 = vtanh.pop %v350
    %v467 = vtanh.pop %v437
    %v468 = vtanh.pop %v439
    %v469 = vtanh.pop %v176
    %v470 = vtanh.pop %v178
    %v471 = vtanh.pop %v265
    %v472 = vtanh.pop %v267
    %v473 = vtanh.pop %v354
    %v474 = vtanh.pop %v356
    %v475 = vtanh.pop %v443
    %v476 = vtanh.pop %v445
    %v477 = vtanh.pop %v182
    %v478 = vtanh.pop %v184
    %v479 = vtanh.pop %v271
    %v480 = vtanh.pop %v273
    %v481 = vtanh.pop %v360
    %v482 = vtanh.pop %v362
    %v483 = vtanh.pop %v449
    %v484 = vtanh.pop %v451
    %v485 = vld [vmem:[%s3] sm:$0xff]
    %v486 = vld [vmem:[%s3 + $0x8] sm:$0xff]
    %v487 = vld [vmem:[%s3 + $0x10] sm:$0xff]
    %v488 = vld [vmem:[%s3 + $0x18] sm:$0xff]
    %v489 = vld [vmem:[%s3 + $0x20] sm:$0xff]
    %v490 = vld [vmem:[%s3 + $0x28] sm:$0xff]
    %v491 = vld [vmem:[%s3 + $0x30] sm:$0xff]
    %v492 = vld [vmem:[%s3 + $0x38] sm:$0xff]
    %v493 = vld [vmem:[%s3 + $0x40] sm:$0xff]
    %v494 = vld [vmem:[%s3 + $0x48] sm:$0xff]
    %v495 = vld [vmem:[%s3 + $0x50] sm:$0xff]
    %v496 = vld [vmem:[%s3 + $0x58] sm:$0xff]
    %v497 = vld [vmem:[%s3 + $0x60] sm:$0xff]
    %v498 = vld [vmem:[%s3 + $0x68] sm:$0xff]
    %v499 = vld [vmem:[%s3 + $0x70] sm:$0xff]
    %v500 = vld [vmem:[%s3 + $0x78] sm:$0xff]
    %v501 = vld [vmem:[%s5] sm:$0xff]
    %v502 = vld [vmem:[%s5 + $0x8] sm:$0xff]
    %v503 = vld [vmem:[%s5 + $0x10] sm:$0xff]
    %v504 = vld [vmem:[%s5 + $0x18] sm:$0xff]
    %v505 = vld [vmem:[%s5 + $0x20] sm:$0xff]
    %v506 = vld [vmem:[%s5 + $0x28] sm:$0xff]
    %v507 = vld [vmem:[%s5 + $0x30] sm:$0xff]
    %v508 = vld [vmem:[%s5 + $0x38] sm:$0xff]
    %v509 = vld [vmem:[%s5 + $0x40] sm:$0xff]
    %v510 = vld [vmem:[%s5 + $0x48] sm:$0xff]
    %v511 = vld [vmem:[%s5 + $0x50] sm:$0xff]
    %v512 = vld [vmem:[%s5 + $0x58] sm:$0xff]
    %v513 = vld [vmem:[%s5 + $0x60] sm:$0xff]
    %v514 = vld [vmem:[%s5 + $0x68] sm:$0xff]
    %v515 = vld [vmem:[%s5 + $0x70] sm:$0xff]
    %v516 = vld [vmem:[%s5 + $0x78] sm:$0xff]
    %518 = vset.pattern.permute.xlu0 0
    %519 = vperm.xlu0 %518, %v501
    %v520 = vpop.permute.xlu0 %519
    %523 = vset.pattern.permute.xlu0 0
    %524 = vperm.xlu0 %523, %v502
    %v525 = vpop.permute.xlu0 %524
    %528 = vset.pattern.permute.xlu0 0
    %529 = vperm.xlu0 %528, %v503
    %v530 = vpop.permute.xlu0 %529
    %533 = vset.pattern.permute.xlu0 0
    %534 = vperm.xlu0 %533, %v504
    %v535 = vpop.permute.xlu0 %534
    %538 = vset.pattern.permute.xlu0 0
    %539 = vperm.xlu0 %538, %v505
    %v540 = vpop.permute.xlu0 %539
    %543 = vset.pattern.permute.xlu0 0
    %544 = vperm.xlu0 %543, %v506
    %v545 = vpop.permute.xlu0 %544
    %548 = vset.pattern.permute.xlu0 0
    %549 = vperm.xlu0 %548, %v507
    %v550 = vpop.permute.xlu0 %549
    %553 = vset.pattern.permute.xlu0 0
    %554 = vperm.xlu0 %553, %v508
    %v555 = vpop.permute.xlu0 %554
    %558 = vset.pattern.permute.xlu0 0
    %559 = vperm.xlu0 %558, %v509
    %v560 = vpop.permute.xlu0 %559
    %563 = vset.pattern.permute.xlu0 0
    %564 = vperm.xlu0 %563, %v510
    %v565 = vpop.permute.xlu0 %564
    %568 = vset.pattern.permute.xlu0 0
    %569 = vperm.xlu0 %568, %v511
    %v570 = vpop.permute.xlu0 %569
    %573 = vset.pattern.permute.xlu0 0
    %574 = vperm.xlu0 %573, %v512
    %v575 = vpop.permute.xlu0 %574
    %578 = vset.pattern.permute.xlu0 0
    %579 = vperm.xlu0 %578, %v513
    %v580 = vpop.permute.xlu0 %579
    %583 = vset.pattern.permute.xlu0 0
    %584 = vperm.xlu0 %583, %v514
    %v585 = vpop.permute.xlu0 %584
    %588 = vset.pattern.permute.xlu0 0
    %589 = vperm.xlu0 %588, %v515
    %v590 = vpop.permute.xlu0 %589
    %593 = vset.pattern.permute.xlu0 0
    %594 = vperm.xlu0 %593, %v516
    %v595 = vpop.permute.xlu0 %594
    %vm597 = vcmask 261120
    %v599 = vsel %vm597, %v485, 0
    %v602 = vsel %vm597, %v486, 0
    %v605 = vsel %vm597, %v487, 0
    %v608 = vsel %vm597, %v488, 0
    %v611 = vsel %vm597, %v489, 0
    %v614 = vsel %vm597, %v490, 0
    %v617 = vsel %vm597, %v491, 0
    %v620 = vsel %vm597, %v492, 0
    %v623 = vsel %vm597, %v493, 0
    %v626 = vsel %vm597, %v494, 0
    %v629 = vsel %vm597, %v495, 0
    %v632 = vsel %vm597, %v496, 0
    %v635 = vsel %vm597, %v497, 0
    %v638 = vsel %vm597, %v498, 0
    %v641 = vsel %vm597, %v499, 0
    %v644 = vsel %vm597, %v500, 0
    %646 = vmatprep.subr.mxu0 %v454
    %647 = vmatpush1.msra.mxu0 %v453
    %648 = vmatprep.subr.mxu0 %v462
    %649 = vmatpush1.msra.mxu0 %v461
    %650 = vmatprep.subr.mxu0 %v470
    %651 = vmatpush1.msra.mxu0 %v469
    %652 = vmatprep.subr.mxu0 %v478
    %653 = vmatpush1.msra.mxu0 %v477
    %654 = vmatprep.subr.mxu0 0.0
    %655 = vmatpush1.msra.mxu0 0.0
    %656 = vmatprep.subr.mxu0 0.0
    %657 = vmatpush1.msra.mxu0 0.0
    %658 = vmatprep.subr.mxu0 0.0
    %659 = vmatpush1.msra.mxu0 0.0
    %660 = vmatprep.subr.mxu0 0.0
    %661 = vmatpush1.msra.mxu0 0.0
    %662 = vmatprep.subr.mxu0 0.0
    %663 = vmatpush1.msra.mxu0 0.0
    %664 = vmatprep.subr.mxu0 0.0
    %665 = vmatpush1.msra.mxu0 0.0
    %666 = vmatprep.subr.mxu0 0.0
    %667 = vmatpush1.msra.mxu0 0.0
    %668 = vmatprep.subr.mxu0 0.0
    %669 = vmatpush1.msra.mxu0 0.0
    %670 = vmatprep.subr.mxu0 0.0
    %671 = vmatpush1.msra.mxu0 0.0
    %672 = vmatprep.subr.mxu0 0.0
    %673 = vmatpush1.msra.mxu0 0.0
    %674 = vmatprep.subr.mxu0 0.0
    %675 = vmatpush1.msra.mxu0 0.0
    %676 = vmatprep.subr.mxu0 0.0
    %677 = vmatpush1.msra.mxu0 0.0
    %678 = vmatprep.subr.mxu0 0.0
    %679 = vmatpush1.msra.mxu0 0.0
    %680 = vmatprep.subr.mxu0 0.0
    %681 = vmatpush1.msra.mxu0 0.0
    %682 = vmatprep.subr.mxu0 0.0
    %683 = vmatpush1.msra.mxu0 0.0
    %684 = vmatprep.subr.mxu0 0.0
    %685 = vmatpush1.msra.mxu0 0.0
    %686 = vmatprep.subr.mxu0 0.0
    %687 = vmatpush1.msra.mxu0 0.0
    %688 = vmatprep.subr.mxu0 0.0
    %689 = vmatpush1.msra.mxu0 0.0
    %690 = vmatprep.subr.mxu0 0.0
    %691 = vmatpush1.msra.mxu0 0.0
    %692 = vmatprep.subr.mxu0 0.0
    %693 = vmatpush1.msra.mxu0 0.0
    %694 = vmatprep.subr.mxu0 0.0
    %695 = vmatpush1.msra.mxu0 0.0
    %696 = vmatprep.subr.mxu0 0.0
    %697 = vmatpush1.msra.mxu0 0.0
    %698 = vmatprep.subr.mxu0 0.0
    %699 = vmatpush1.msra.mxu0 0.0
    %700 = vmatprep.subr.mxu0 0.0
    %701 = vmatpush1.msra.mxu0 0.0
    %702 = vmatprep.subr.mxu0 0.0
    %703 = vmatpush1.msra.mxu0 0.0
    %704 = vmatprep.subr.mxu0 0.0
    %705 = vmatpush1.msra.mxu0 0.0
    %706 = vmatprep.subr.mxu0 0.0
    %707 = vmatpush1.msra.mxu0 0.0
    %708 = vmatprep.subr.mxu0 0.0
    %709 = vmatpush1.msra.mxu0 0.0
    %710 = vmatprep.mubr.f32.mxu0 0.0
    %711 = vmatmul.mubr.f32.gmra.mrb[0].mxu0 %v599
    %v712 = vpop.f32.mrb[0].mxu0
    %v713 = vadd.f32 %v520, %v712
    %v714 = vpop.f32.mrb[0].mxu0
    %v715 = vadd.f32 %v520, %v714
    %716 = vmatprep.mubr.f32.mxu0 0.0
    %717 = vmatmul.mubr.f32.gmra.mrb[0].mxu0 %v602
    %v718 = vpop.f32.mrb[0].mxu0
    %v719 = vadd.f32 %v525, %v718
    %v720 = vpop.f32.mrb[0].mxu0
    %v721 = vadd.f32 %v525, %v720
    %722 = vmatprep.mubr.f32.mxu0 0.0
    %723 = vmatmul.mubr.f32.gmra.mrb[0].mxu0 %v605
    %v724 = vpop.f32.mrb[0].mxu0
    %v725 = vadd.f32 %v530, %v724
    %v726 = vpop.f32.mrb[0].mxu0
    %v727 = vadd.f32 %v530, %v726
    %728 = vmatprep.mubr.f32.mxu0 0.0
    %729 = vmatmul.mubr.f32.gmra.mrb[0].mxu0 %v608
    %v730 = vpop.f32.mrb[0].mxu0
    %v731 = vadd.f32 %v535, %v730
    %v732 = vpop.f32.mrb[0].mxu0
    %v733 = vadd.f32 %v535, %v732
    %734 = vmatprep.mubr.f32.mxu0 0.0
    %735 = vmatmul.mubr.f32.gmra.mrb[0].mxu0 %v611
    %v736 = vpop.f32.mrb[0].mxu0
    %v737 = vadd.f32 %v540, %v736
    %v738 = vpop.f32.mrb[0].mxu0
    %v739 = vadd.f32 %v540, %v738
    %740 = vmatprep.mubr.f32.mxu0 0.0
    %741 = vmatmul.mubr.f32.gmra.mrb[0].mxu0 %v614
    %v742 = vpop.f32.mrb[0].mxu0
    %v743 = vadd.f32 %v545, %v742
    %v744 = vpop.f32.mrb[0].mxu0
    %v745 = vadd.f32 %v545, %v744
    %746 = vmatprep.mubr.f32.mxu0 0.0
    %747 = vmatmul.mubr.f32.gmra.mrb[0].mxu0 %v617
    %v748 = vpop.f32.mrb[0].mxu0
    %v749 = vadd.f32 %v550, %v748
    %v750 = vpop.f32.mrb[0].mxu0
    %v751 = vadd.f32 %v550, %v750
    %752 = vmatprep.mubr.f32.mxu0 0.0
    %753 = vmatmul.mubr.f32.gmra.mrb[0].mxu0 %v620
    %v754 = vpop.f32.mrb[0].mxu0
    %v755 = vadd.f32 %v555, %v754
    %v756 = vpop.f32.mrb[0].mxu0
    %v757 = vadd.f32 %v555, %v756
    %758 = vmatprep.mubr.f32.mxu0 0.0
    %759 = vmatmul.mubr.f32.gmra.mrb[0].mxu0 %v623
    %v760 = vpop.f32.mrb[0].mxu0
    %v761 = vadd.f32 %v560, %v760
    %v762 = vpop.f32.mrb[0].mxu0
    %v763 = vadd.f32 %v560, %v762
    %764 = vmatprep.mubr.f32.mxu0 0.0
    %765 = vmatmul.mubr.f32.gmra.mrb[0].mxu0 %v626
    %v766 = vpop.f32.mrb[0].mxu0
    %v767 = vadd.f32 %v565, %v766
    %v768 = vpop.f32.mrb[0].mxu0
    %v769 = vadd.f32 %v565, %v768
    %770 = vmatprep.mubr.f32.mxu0 0.0
    %771 = vmatmul.mubr.f32.gmra.mrb[0].mxu0 %v629
    %v772 = vpop.f32.mrb[0].mxu0
    %v773 = vadd.f32 %v570, %v772
    %v774 = vpop.f32.mrb[0].mxu0
    %v775 = vadd.f32 %v570, %v774
    %776 = vmatprep.mubr.f32.mxu0 0.0
    %777 = vmatmul.mubr.f32.gmra.mrb[0].mxu0 %v632
    %v778 = vpop.f32.mrb[0].mxu0
    %v779 = vadd.f32 %v575, %v778
    %v780 = vpop.f32.mrb[0].mxu0
    %v781 = vadd.f32 %v575, %v780
    %782 = vmatprep.mubr.f32.mxu0 0.0
    %783 = vmatmul.mubr.f32.gmra.mrb[0].mxu0 %v635
    %v784 = vpop.f32.mrb[0].mxu0
    %v785 = vadd.f32 %v580, %v784
    %v786 = vpop.f32.mrb[0].mxu0
    %v787 = vadd.f32 %v580, %v786
    %788 = vmatprep.mubr.f32.mxu0 0.0
    %789 = vmatmul.mubr.f32.gmra.mrb[0].mxu0 %v638
    %v790 = vpop.f32.mrb[0].mxu0
    %v791 = vadd.f32 %v585, %v790
    %v792 = vpop.f32.mrb[0].mxu0
    %v793 = vadd.f32 %v585, %v792
    %794 = vmatprep.mubr.f32.mxu0 0.0
    %795 = vmatmul.mubr.f32.gmra.mrb[0].mxu0 %v641
    %v796 = vpop.f32.mrb[0].mxu0
    %v797 = vadd.f32 %v590, %v796
    %v798 = vpop.f32.mrb[0].mxu0
    %v799 = vadd.f32 %v590, %v798
    %800 = vmatprep.mubr.f32.mxu0 0.0
    %801 = vmatmul.mubr.f32.gmra.mrb[0].mxu0 %v644
    %v802 = vpop.f32.mrb[0].mxu0
    %v803 = vadd.f32 %v595, %v802
    %v804 = vpop.f32.mrb[0].mxu0
    %v805 = vadd.f32 %v595, %v804
    %806 = vdwg.mxu0
    %807 = vmatprep.subr.mxu0 %v456
    %808 = vmatpush1.msra.mxu0 %v455
    %809 = vmatprep.subr.mxu0 %v464
    %810 = vmatpush1.msra.mxu0 %v463
    %811 = vmatprep.subr.mxu0 %v472
    %812 = vmatpush1.msra.mxu0 %v471
    %813 = vmatprep.subr.mxu0 %v480
    %814 = vmatpush1.msra.mxu0 %v479
    %815 = vmatprep.subr.mxu0 0.0
    %816 = vmatpush1.msra.mxu0 0.0
    %817 = vmatprep.subr.mxu0 0.0
    %818 = vmatpush1.msra.mxu0 0.0
    %819 = vmatprep.subr.mxu0 0.0
    %820 = vmatpush1.msra.mxu0 0.0
    %821 = vmatprep.subr.mxu0 0.0
    %822 = vmatpush1.msra.mxu0 0.0
    %823 = vmatprep.subr.mxu0 0.0
    %824 = vmatpush1.msra.mxu0 0.0
    %825 = vmatprep.subr.mxu0 0.0
    %826 = vmatpush1.msra.mxu0 0.0
    %827 = vmatprep.subr.mxu0 0.0
    %828 = vmatpush1.msra.mxu0 0.0
    %829 = vmatprep.subr.mxu0 0.0
    %830 = vmatpush1.msra.mxu0 0.0
    %831 = vmatprep.subr.mxu0 0.0
    %832 = vmatpush1.msra.mxu0 0.0
    %833 = vmatprep.subr.mxu0 0.0
    %834 = vmatpush1.msra.mxu0 0.0
    %835 = vmatprep.subr.mxu0 0.0
    %836 = vmatpush1.msra.mxu0 0.0
    %837 = vmatprep.subr.mxu0 0.0
    %838 = vmatpush1.msra.mxu0 0.0
    %839 = vmatprep.subr.mxu0 0.0
    %840 = vmatpush1.msra.mxu0 0.0
    %841 = vmatprep.subr.mxu0 0.0
    %842 = vmatpush1.msra.mxu0 0.0
    %843 = vmatprep.subr.mxu0 0.0
    %844 = vmatpush1.msra.mxu0 0.0
    %845 = vmatprep.subr.mxu0 0.0
    %846 = vmatpush1.msra.mxu0 0.0
    %847 = vmatprep.subr.mxu0 0.0
    %848 = vmatpush1.msra.mxu0 0.0
    %849 = vmatprep.subr.mxu0 0.0
    %850 = vmatpush1.msra.mxu0 0.0
    %851 = vmatprep.subr.mxu0 0.0
    %852 = vmatpush1.msra.mxu0 0.0
    %853 = vmatprep.subr.mxu0 0.0
    %854 = vmatpush1.msra.mxu0 0.0
    %855 = vmatprep.subr.mxu0 0.0
    %856 = vmatpush1.msra.mxu0 0.0
    %857 = vmatprep.subr.mxu0 0.0
    %858 = vmatpush1.msra.mxu0 0.0
    %859 = vmatprep.subr.mxu0 0.0
    %860 = vmatpush1.msra.mxu0 0.0
    %861 = vmatprep.subr.mxu0 0.0
    %862 = vmatpush1.msra.mxu0 0.0
    %863 = vmatprep.subr.mxu0 0.0
    %864 = vmatpush1.msra.mxu0 0.0
    %865 = vmatprep.subr.mxu0 0.0
    %866 = vmatpush1.msra.mxu0 0.0
    %867 = vmatprep.subr.mxu0 0.0
    %868 = vmatpush1.msra.mxu0 0.0
    %869 = vmatprep.subr.mxu0 0.0
    %870 = vmatpush1.msra.mxu0 0.0
    %871 = vmatprep.mubr.f32.mxu0 0.0
    %872 = vmatmul.mubr.f32.gmra.mrb[0].mxu0 %v599
    %v873 = vpop.f32.mrb[0].mxu0
    %v874 = vadd.f32 %v520, %v873
    %v875 = vpop.f32.mrb[0].mxu0
    %v876 = vadd.f32 %v520, %v875
    %877 = vmatprep.mubr.f32.mxu0 0.0
    %878 = vmatmul.mubr.f32.gmra.mrb[0].mxu0 %v602
    %v879 = vpop.f32.mrb[0].mxu0
    %v880 = vadd.f32 %v525, %v879
    %v881 = vpop.f32.mrb[0].mxu0
    %v882 = vadd.f32 %v525, %v881
    %883 = vmatprep.mubr.f32.mxu0 0.0
    %884 = vmatmul.mubr.f32.gmra.mrb[0].mxu0 %v605
    %v885 = vpop.f32.mrb[0].mxu0
    %v886 = vadd.f32 %v530, %v885
    %v887 = vpop.f32.mrb[0].mxu0
    %v888 = vadd.f32 %v530, %v887
    %889 = vmatprep.mubr.f32.mxu0 0.0
    %890 = vmatmul.mubr.f32.gmra.mrb[0].mxu0 %v608
    %v891 = vpop.f32.mrb[0].mxu0
    %v892 = vadd.f32 %v535, %v891
    %v893 = vpop.f32.mrb[0].mxu0
    %v894 = vadd.f32 %v535, %v893
    %895 = vmatprep.mubr.f32.mxu0 0.0
    %896 = vmatmul.mubr.f32.gmra.mrb[0].mxu0 %v611
    %v897 = vpop.f32.mrb[0].mxu0
    %v898 = vadd.f32 %v540, %v897
    %v899 = vpop.f32.mrb[0].mxu0
    %v900 = vadd.f32 %v540, %v899
    %901 = vmatprep.mubr.f32.mxu0 0.0
    %902 = vmatmul.mubr.f32.gmra.mrb[0].mxu0 %v614
    %v903 = vpop.f32.mrb[0].mxu0
    %v904 = vadd.f32 %v545, %v903
    %v905 = vpop.f32.mrb[0].mxu0
    %v906 = vadd.f32 %v545, %v905
    %907 = vmatprep.mubr.f32.mxu0 0.0
    %908 = vmatmul.mubr.f32.gmra.mrb[0].mxu0 %v617
    %v909 = vpop.f32.mrb[0].mxu0
    %v910 = vadd.f32 %v550, %v909
    %v911 = vpop.f32.mrb[0].mxu0
    %v912 = vadd.f32 %v550, %v911
    %913 = vmatprep.mubr.f32.mxu0 0.0
    %914 = vmatmul.mubr.f32.gmra.mrb[0].mxu0 %v620
    %v915 = vpop.f32.mrb[0].mxu0
    %v916 = vadd.f32 %v555, %v915
    %v917 = vpop.f32.mrb[0].mxu0
    %v918 = vadd.f32 %v555, %v917
    %919 = vmatprep.mubr.f32.mxu0 0.0
    %920 = vmatmul.mubr.f32.gmra.mrb[0].mxu0 %v623
    %v921 = vpop.f32.mrb[0].mxu0
    %v922 = vadd.f32 %v560, %v921
    %v923 = vpop.f32.mrb[0].mxu0
    %v924 = vadd.f32 %v560, %v923
    %925 = vmatprep.mubr.f32.mxu0 0.0
    %926 = vmatmul.mubr.f32.gmra.mrb[0].mxu0 %v626
    %v927 = vpop.f32.mrb[0].mxu0
    %v928 = vadd.f32 %v565, %v927
    %v929 = vpop.f32.mrb[0].mxu0
    %v930 = vadd.f32 %v565, %v929
    %931 = vmatprep.mubr.f32.mxu0 0.0
    %932 = vmatmul.mubr.f32.gmra.mrb[0].mxu0 %v629
    %v933 = vpop.f32.mrb[0].mxu0
    %v934 = vadd.f32 %v570, %v933
    %v935 = vpop.f32.mrb[0].mxu0
    %v936 = vadd.f32 %v570, %v935
    %937 = vmatprep.mubr.f32.mxu0 0.0
    %938 = vmatmul.mubr.f32.gmra.mrb[0].mxu0 %v632
    %v939 = vpop.f32.mrb[0].mxu0
    %v940 = vadd.f32 %v575, %v939
    %v941 = vpop.f32.mrb[0].mxu0
    %v942 = vadd.f32 %v575, %v941
    %943 = vmatprep.mubr.f32.mxu0 0.0
    %944 = vmatmul.mubr.f32.gmra.mrb[0].mxu0 %v635
    %v945 = vpop.f32.mrb[0].mxu0
    %v946 = vadd.f32 %v580, %v945
    %v947 = vpop.f32.mrb[0].mxu0
    %v948 = vadd.f32 %v580, %v947
    %949 = vmatprep.mubr.f32.mxu0 0.0
    %950 = vmatmul.mubr.f32.gmra.mrb[0].mxu0 %v638
    %v951 = vpop.f32.mrb[0].mxu0
    %v952 = vadd.f32 %v585, %v951
    %v953 = vpop.f32.mrb[0].mxu0
    %v954 = vadd.f32 %v585, %v953
    %955 = vmatprep.mubr.f32.mxu0 0.0
    %956 = vmatmul.mubr.f32.gmra.mrb[0].mxu0 %v641
    %v957 = vpop.f32.mrb[0].mxu0
    %v958 = vadd.f32 %v590, %v957
    %v959 = vpop.f32.mrb[0].mxu0
    %v960 = vadd.f32 %v590, %v959
    %961 = vmatprep.mubr.f32.mxu0 0.0
    %962 = vmatmul.mubr.f32.gmra.mrb[0].mxu0 %v644
    %v963 = vpop.f32.mrb[0].mxu0
    %v964 = vadd.f32 %v595, %v963
    %v965 = vpop.f32.mrb[0].mxu0
    %v966 = vadd.f32 %v595, %v965
    %967 = vdwg.mxu0
    %968 = vmatprep.subr.mxu0 %v458
    %969 = vmatpush1.msra.mxu0 %v457
    %970 = vmatprep.subr.mxu0 %v466
    %971 = vmatpush1.msra.mxu0 %v465
    %972 = vmatprep.subr.mxu0 %v474
    %973 = vmatpush1.msra.mxu0 %v473
    %974 = vmatprep.subr.mxu0 %v482
    %975 = vmatpush1.msra.mxu0 %v481
    %976 = vmatprep.subr.mxu0 0.0
    %977 = vmatpush1.msra.mxu0 0.0
    %978 = vmatprep.subr.mxu0 0.0
    %979 = vmatpush1.msra.mxu0 0.0
    %980 = vmatprep.subr.mxu0 0.0
    %981 = vmatpush1.msra.mxu0 0.0
    %982 = vmatprep.subr.mxu0 0.0
    %983 = vmatpush1.msra.mxu0 0.0
    %984 = vmatprep.subr.mxu0 0.0
    %985 = vmatpush1.msra.mxu0 0.0
    %986 = vmatprep.subr.mxu0 0.0
    %987 = vmatpush1.msra.mxu0 0.0
    %988 = vmatprep.subr.mxu0 0.0
    %989 = vmatpush1.msra.mxu0 0.0
    %990 = vmatprep.subr.mxu0 0.0
    %991 = vmatpush1.msra.mxu0 0.0
    %992 = vmatprep.subr.mxu0 0.0
    %993 = vmatpush1.msra.mxu0 0.0
    %994 = vmatprep.subr.mxu0 0.0
    %995 = vmatpush1.msra.mxu0 0.0
    %996 = vmatprep.subr.mxu0 0.0
    %997 = vmatpush1.msra.mxu0 0.0
    %998 = vmatprep.subr.mxu0 0.0
    %999 = vmatpush1.msra.mxu0 0.0
    %1000 = vmatprep.subr.mxu0 0.0
    %1001 = vmatpush1.msra.mxu0 0.0
    %1002 = vmatprep.subr.mxu0 0.0
    %1003 = vmatpush1.msra.mxu0 0.0
    %1004 = vmatprep.subr.mxu0 0.0
    %1005 = vmatpush1.msra.mxu0 0.0
    %1006 = vmatprep.subr.mxu0 0.0
    %1007 = vmatpush1.msra.mxu0 0.0
    %1008 = vmatprep.subr.mxu0 0.0
    %1009 = vmatpush1.msra.mxu0 0.0
    %1010 = vmatprep.subr.mxu0 0.0
    %1011 = vmatpush1.msra.mxu0 0.0
    %1012 = vmatprep.subr.mxu0 0.0
    %1013 = vmatpush1.msra.mxu0 0.0
    %1014 = vmatprep.subr.mxu0 0.0
    %1015 = vmatpush1.msra.mxu0 0.0
    %1016 = vmatprep.subr.mxu0 0.0
    %1017 = vmatpush1.msra.mxu0 0.0
    %1018 = vmatprep.subr.mxu0 0.0
    %1019 = vmatpush1.msra.mxu0 0.0
    %1020 = vmatprep.subr.mxu0 0.0
    %1021 = vmatpush1.msra.mxu0 0.0
    %1022 = vmatprep.subr.mxu0 0.0
    %1023 = vmatpush1.msra.mxu0 0.0
    %1024 = vmatprep.subr.mxu0 0.0
    %1025 = vmatpush1.msra.mxu0 0.0
    %1026 = vmatprep.subr.mxu0 0.0
    %1027 = vmatpush1.msra.mxu0 0.0
    %1028 = vmatprep.subr.mxu0 0.0
    %1029 = vmatpush1.msra.mxu0 0.0
    %1030 = vmatprep.subr.mxu0 0.0
    %1031 = vmatpush1.msra.mxu0 0.0
    %1032 = vmatprep.mubr.f32.mxu0 0.0
    %1033 = vmatmul.mubr.f32.gmra.mrb[0].mxu0 %v599
    %v1034 = vpop.f32.mrb[0].mxu0
    %v1035 = vadd.f32 %v520, %v1034
    %v1036 = vpop.f32.mrb[0].mxu0
    %v1037 = vadd.f32 %v520, %v1036
    %1038 = vmatprep.mubr.f32.mxu0 0.0
    %1039 = vmatmul.mubr.f32.gmra.mrb[0].mxu0 %v602
    %v1040 = vpop.f32.mrb[0].mxu0
    %v1041 = vadd.f32 %v525, %v1040
    %v1042 = vpop.f32.mrb[0].mxu0
    %v1043 = vadd.f32 %v525, %v1042
    %1044 = vmatprep.mubr.f32.mxu0 0.0
    %1045 = vmatmul.mubr.f32.gmra.mrb[0].mxu0 %v605
    %v1046 = vpop.f32.mrb[0].mxu0
    %v1047 = vadd.f32 %v530, %v1046
    %v1048 = vpop.f32.mrb[0].mxu0
    %v1049 = vadd.f32 %v530, %v1048
    %1050 = vmatprep.mubr.f32.mxu0 0.0
    %1051 = vmatmul.mubr.f32.gmra.mrb[0].mxu0 %v608
    %v1052 = vpop.f32.mrb[0].mxu0
    %v1053 = vadd.f32 %v535, %v1052
    %v1054 = vpop.f32.mrb[0].mxu0
    %v1055 = vadd.f32 %v535, %v1054
    %1056 = vmatprep.mubr.f32.mxu0 0.0
    %1057 = vmatmul.mubr.f32.gmra.mrb[0].mxu0 %v611
    %v1058 = vpop.f32.mrb[0].mxu0
    %v1059 = vadd.f32 %v540, %v1058
    %v1060 = vpop.f32.mrb[0].mxu0
    %v1061 = vadd.f32 %v540, %v1060
    %1062 = vmatprep.mubr.f32.mxu0 0.0
    %1063 = vmatmul.mubr.f32.gmra.mrb[0].mxu0 %v614
    %v1064 = vpop.f32.mrb[0].mxu0
    %v1065 = vadd.f32 %v545, %v1064
    %v1066 = vpop.f32.mrb[0].mxu0
    %v1067 = vadd.f32 %v545, %v1066
    %1068 = vmatprep.mubr.f32.mxu0 0.0
    %1069 = vmatmul.mubr.f32.gmra.mrb[0].mxu0 %v617
    %v1070 = vpop.f32.mrb[0].mxu0
    %v1071 = vadd.f32 %v550, %v1070
    %v1072 = vpop.f32.mrb[0].mxu0
    %v1073 = vadd.f32 %v550, %v1072
    %1074 = vmatprep.mubr.f32.mxu0 0.0
    %1075 = vmatmul.mubr.f32.gmra.mrb[0].mxu0 %v620
    %v1076 = vpop.f32.mrb[0].mxu0
    %v1077 = vadd.f32 %v555, %v1076
    %v1078 = vpop.f32.mrb[0].mxu0
    %v1079 = vadd.f32 %v555, %v1078
    %1080 = vmatprep.mubr.f32.mxu0 0.0
    %1081 = vmatmul.mubr.f32.gmra.mrb[0].mxu0 %v623
    %v1082 = vpop.f32.mrb[0].mxu0
    %v1083 = vadd.f32 %v560, %v1082
    %v1084 = vpop.f32.mrb[0].mxu0
    %v1085 = vadd.f32 %v560, %v1084
    %1086 = vmatprep.mubr.f32.mxu0 0.0
    %1087 = vmatmul.mubr.f32.gmra.mrb[0].mxu0 %v626
    %v1088 = vpop.f32.mrb[0].mxu0
    %v1089 = vadd.f32 %v565, %v1088
    %v1090 = vpop.f32.mrb[0].mxu0
    %v1091 = vadd.f32 %v565, %v1090
    %1092 = vmatprep.mubr.f32.mxu0 0.0
    %1093 = vmatmul.mubr.f32.gmra.mrb[0].mxu0 %v629
    %v1094 = vpop.f32.mrb[0].mxu0
    %v1095 = vadd.f32 %v570, %v1094
    %v1096 = vpop.f32.mrb[0].mxu0
    %v1097 = vadd.f32 %v570, %v1096
    %1098 = vmatprep.mubr.f32.mxu0 0.0
    %1099 = vmatmul.mubr.f32.gmra.mrb[0].mxu0 %v632
    %v1100 = vpop.f32.mrb[0].mxu0
    %v1101 = vadd.f32 %v575, %v1100
    %v1102 = vpop.f32.mrb[0].mxu0
    %v1103 = vadd.f32 %v575, %v1102
    %1104 = vmatprep.mubr.f32.mxu0 0.0
    %1105 = vmatmul.mubr.f32.gmra.mrb[0].mxu0 %v635
    %v1106 = vpop.f32.mrb[0].mxu0
    %v1107 = vadd.f32 %v580, %v1106
    %v1108 = vpop.f32.mrb[0].mxu0
    %v1109 = vadd.f32 %v580, %v1108
    %1110 = vmatprep.mubr.f32.mxu0 0.0
    %1111 = vmatmul.mubr.f32.gmra.mrb[0].mxu0 %v638
    %v1112 = vpop.f32.mrb[0].mxu0
    %v1113 = vadd.f32 %v585, %v1112
    %v1114 = vpop.f32.mrb[0].mxu0
    %v1115 = vadd.f32 %v585, %v1114
    %1116 = vmatprep.mubr.f32.mxu0 0.0
    %1117 = vmatmul.mubr.f32.gmra.mrb[0].mxu0 %v641
    %v1118 = vpop.f32.mrb[0].mxu0
    %v1119 = vadd.f32 %v590, %v1118
    %v1120 = vpop.f32.mrb[0].mxu0
    %v1121 = vadd.f32 %v590, %v1120
    %1122 = vmatprep.mubr.f32.mxu0 0.0
    %1123 = vmatmul.mubr.f32.gmra.mrb[0].mxu0 %v644
    %v1124 = vpop.f32.mrb[0].mxu0
    %v1125 = vadd.f32 %v595, %v1124
    %v1126 = vpop.f32.mrb[0].mxu0
    %v1127 = vadd.f32 %v595, %v1126
    %1128 = vdwg.mxu0
    %1129 = vmatprep.subr.mxu0 %v460
    %1130 = vmatpush1.msra.mxu0 %v459
    %1131 = vmatprep.subr.mxu0 %v468
    %1132 = vmatpush1.msra.mxu0 %v467
    %1133 = vmatprep.subr.mxu0 %v476
    %1134 = vmatpush1.msra.mxu0 %v475
    %1135 = vmatprep.subr.mxu0 %v484
    %1136 = vmatpush1.msra.mxu0 %v483
    %1137 = vmatprep.subr.mxu0 0.0
    %1138 = vmatpush1.msra.mxu0 0.0
    %1139 = vmatprep.subr.mxu0 0.0
    %1140 = vmatpush1.msra.mxu0 0.0
    %1141 = vmatprep.subr.mxu0 0.0
    %1142 = vmatpush1.msra.mxu0 0.0
    %1143 = vmatprep.subr.mxu0 0.0
    %1144 = vmatpush1.msra.mxu0 0.0
    %1145 = vmatprep.subr.mxu0 0.0
    %1146 = vmatpush1.msra.mxu0 0.0
    %1147 = vmatprep.subr.mxu0 0.0
    %1148 = vmatpush1.msra.mxu0 0.0
    %1149 = vmatprep.subr.mxu0 0.0
    %1150 = vmatpush1.msra.mxu0 0.0
    %1151 = vmatprep.subr.mxu0 0.0
    %1152 = vmatpush1.msra.mxu0 0.0
    %1153 = vmatprep.subr.mxu0 0.0
    %1154 = vmatpush1.msra.mxu0 0.0
    %1155 = vmatprep.subr.mxu0 0.0
    %1156 = vmatpush1.msra.mxu0 0.0
    %1157 = vmatprep.subr.mxu0 0.0
    %1158 = vmatpush1.msra.mxu0 0.0
    %1159 = vmatprep.subr.mxu0 0.0
    %1160 = vmatpush1.msra.mxu0 0.0
    %1161 = vmatprep.subr.mxu0 0.0
    %1162 = vmatpush1.msra.mxu0 0.0
    %1163 = vmatprep.subr.mxu0 0.0
    %1164 = vmatpush1.msra.mxu0 0.0
    %1165 = vmatprep.subr.mxu0 0.0
    %1166 = vmatpush1.msra.mxu0 0.0
    %1167 = vmatprep.subr.mxu0 0.0
    %1168 = vmatpush1.msra.mxu0 0.0
    %1169 = vmatprep.subr.mxu0 0.0
    %1170 = vmatpush1.msra.mxu0 0.0
    %1171 = vmatprep.subr.mxu0 0.0
    %1172 = vmatpush1.msra.mxu0 0.0
    %1173 = vmatprep.subr.mxu0 0.0
    %1174 = vmatpush1.msra.mxu0 0.0
    %1175 = vmatprep.subr.mxu0 0.0
    %1176 = vmatpush1.msra.mxu0 0.0
    %1177 = vmatprep.subr.mxu0 0.0
    %1178 = vmatpush1.msra.mxu0 0.0
    %1179 = vmatprep.subr.mxu0 0.0
    %1180 = vmatpush1.msra.mxu0 0.0
    %1181 = vmatprep.subr.mxu0 0.0
    %1182 = vmatpush1.msra.mxu0 0.0
    %1183 = vmatprep.subr.mxu0 0.0
    %1184 = vmatpush1.msra.mxu0 0.0
    %1185 = vmatprep.subr.mxu0 0.0
    %1186 = vmatpush1.msra.mxu0 0.0
    %1187 = vmatprep.subr.mxu0 0.0
    %1188 = vmatpush1.msra.mxu0 0.0
    %1189 = vmatprep.subr.mxu0 0.0
    %1190 = vmatpush1.msra.mxu0 0.0
    %1191 = vmatprep.subr.mxu0 0.0
    %1192 = vmatpush1.msra.mxu0 0.0
    %1193 = vmatprep.mubr.f32.mxu0 0.0
    %1194 = vmatmul.mubr.f32.gmra.mrb[0].mxu0 %v599
    %v1195 = vpop.f32.mrb[0].mxu0
    %v1196 = vadd.f32 %v520, %v1195
    %v1197 = vpop.f32.mrb[0].mxu0
    %v1198 = vadd.f32 %v520, %v1197
    %1199 = vmatprep.mubr.f32.mxu0 0.0
    %1200 = vmatmul.mubr.f32.gmra.mrb[0].mxu0 %v602
    %v1201 = vpop.f32.mrb[0].mxu0
    %v1202 = vadd.f32 %v525, %v1201
    %v1203 = vpop.f32.mrb[0].mxu0
    %v1204 = vadd.f32 %v525, %v1203
    %1205 = vmatprep.mubr.f32.mxu0 0.0
    %1206 = vmatmul.mubr.f32.gmra.mrb[0].mxu0 %v605
    %v1207 = vpop.f32.mrb[0].mxu0
    %v1208 = vadd.f32 %v530, %v1207
    %v1209 = vpop.f32.mrb[0].mxu0
    %v1210 = vadd.f32 %v530, %v1209
    %1211 = vmatprep.mubr.f32.mxu0 0.0
    %1212 = vmatmul.mubr.f32.gmra.mrb[0].mxu0 %v608
    %v1213 = vpop.f32.mrb[0].mxu0
    %v1214 = vadd.f32 %v535, %v1213
    %v1215 = vpop.f32.mrb[0].mxu0
    %v1216 = vadd.f32 %v535, %v1215
    %1217 = vmatprep.mubr.f32.mxu0 0.0
    %1218 = vmatmul.mubr.f32.gmra.mrb[0].mxu0 %v611
    %v1219 = vpop.f32.mrb[0].mxu0
    %v1220 = vadd.f32 %v540, %v1219
    %v1221 = vpop.f32.mrb[0].mxu0
    %v1222 = vadd.f32 %v540, %v1221
    %1223 = vmatprep.mubr.f32.mxu0 0.0
    %1224 = vmatmul.mubr.f32.gmra.mrb[0].mxu0 %v614
    %v1225 = vpop.f32.mrb[0].mxu0
    %v1226 = vadd.f32 %v545, %v1225
    %v1227 = vpop.f32.mrb[0].mxu0
    %v1228 = vadd.f32 %v545, %v1227
    %1229 = vmatprep.mubr.f32.mxu0 0.0
    %1230 = vmatmul.mubr.f32.gmra.mrb[0].mxu0 %v617
    %v1231 = vpop.f32.mrb[0].mxu0
    %v1232 = vadd.f32 %v550, %v1231
    %v1233 = vpop.f32.mrb[0].mxu0
    %v1234 = vadd.f32 %v550, %v1233
    %1235 = vmatprep.mubr.f32.mxu0 0.0
    %1236 = vmatmul.mubr.f32.gmra.mrb[0].mxu0 %v620
    %v1237 = vpop.f32.mrb[0].mxu0
    %v1238 = vadd.f32 %v555, %v1237
    %v1239 = vpop.f32.mrb[0].mxu0
    %v1240 = vadd.f32 %v555, %v1239
    %1241 = vmatprep.mubr.f32.mxu0 0.0
    %1242 = vmatmul.mubr.f32.gmra.mrb[0].mxu0 %v623
    %v1243 = vpop.f32.mrb[0].mxu0
    %v1244 = vadd.f32 %v560, %v1243
    %v1245 = vpop.f32.mrb[0].mxu0
    %v1246 = vadd.f32 %v560, %v1245
    %1247 = vmatprep.mubr.f32.mxu0 0.0
    %1248 = vmatmul.mubr.f32.gmra.mrb[0].mxu0 %v626
    %v1249 = vpop.f32.mrb[0].mxu0
    %v1250 = vadd.f32 %v565, %v1249
    %v1251 = vpop.f32.mrb[0].mxu0
    %v1252 = vadd.f32 %v565, %v1251
    %1253 = vmatprep.mubr.f32.mxu0 0.0
    %1254 = vmatmul.mubr.f32.gmra.mrb[0].mxu0 %v629
    %v1255 = vpop.f32.mrb[0].mxu0
    %v1256 = vadd.f32 %v570, %v1255
    %v1257 = vpop.f32.mrb[0].mxu0
    %v1258 = vadd.f32 %v570, %v1257
    %1259 = vmatprep.mubr.f32.mxu0 0.0
    %1260 = vmatmul.mubr.f32.gmra.mrb[0].mxu0 %v632
    %v1261 = vpop.f32.mrb[0].mxu0
    %v1262 = vadd.f32 %v575, %v1261
    %v1263 = vpop.f32.mrb[0].mxu0
    %v1264 = vadd.f32 %v575, %v1263
    %1265 = vmatprep.mubr.f32.mxu0 0.0
    %1266 = vmatmul.mubr.f32.gmra.mrb[0].mxu0 %v635
    %v1267 = vpop.f32.mrb[0].mxu0
    %v1268 = vadd.f32 %v580, %v1267
    %v1269 = vpop.f32.mrb[0].mxu0
    %v1270 = vadd.f32 %v580, %v1269
    %1271 = vmatprep.mubr.f32.mxu0 0.0
    %1272 = vmatmul.mubr.f32.gmra.mrb[0].mxu0 %v638
    %v1273 = vpop.f32.mrb[0].mxu0
    %v1274 = vadd.f32 %v585, %v1273
    %v1275 = vpop.f32.mrb[0].mxu0
    %v1276 = vadd.f32 %v585, %v1275
    %1277 = vmatprep.mubr.f32.mxu0 0.0
    %1278 = vmatmul.mubr.f32.gmra.mrb[0].mxu0 %v641
    %v1279 = vpop.f32.mrb[0].mxu0
    %v1280 = vadd.f32 %v590, %v1279
    %v1281 = vpop.f32.mrb[0].mxu0
    %v1282 = vadd.f32 %v590, %v1281
    %1283 = vmatprep.mubr.f32.mxu0 0.0
    %1284 = vmatmul.mubr.f32.gmra.mrb[0].mxu0 %v644
    %v1285 = vpop.f32.mrb[0].mxu0
    %v1286 = vadd.f32 %v595, %v1285
    %v1287 = vpop.f32.mrb[0].mxu0
    %v1288 = vadd.f32 %v595, %v1287
    %1289 = vdwg.mxu0
    %1290 = vst [vmem:[#allocation2] sm:$0xff] %v713
    %1291 = vst [vmem:[#allocation2 + $0x8] sm:$0xff] %v715
    %1292 = vst [vmem:[#allocation2 + $0x10] sm:$0xff] %v874
    %1293 = vst [vmem:[#allocation2 + $0x18] sm:$0xff] %v876
    %1294 = vst [vmem:[#allocation2 + $0x20] sm:$0xff] %v1035
    %1295 = vst [vmem:[#allocation2 + $0x28] sm:$0xff] %v1037
    %1296 = vst [vmem:[#allocation2 + $0x30] sm:$0xff] %v1196
    %1297 = vst [vmem:[#allocation2 + $0x38] sm:$0xff] %v1198
    %1298 = vst [vmem:[#allocation2 + $0x40] sm:$0xff] %v719
    %1299 = vst [vmem:[#allocation2 + $0x48] sm:$0xff] %v721
    %1300 = vst [vmem:[#allocation2 + $0x50] sm:$0xff] %v880
    %1301 = vst [vmem:[#allocation2 + $0x58] sm:$0xff] %v882
    %1302 = vst [vmem:[#allocation2 + $0x60] sm:$0xff] %v1041
    %1303 = vst [vmem:[#allocation2 + $0x68] sm:$0xff] %v1043
    %1304 = vst [vmem:[#allocation2 + $0x70] sm:$0xff] %v1202
    %1305 = vst [vmem:[#allocation2 + $0x78] sm:$0xff] %v1204
    %1306 = vst [vmem:[#allocation2 + $0x80] sm:$0xff] %v725
    %1307 = vst [vmem:[#allocation2 + $0x88] sm:$0xff] %v727
    %1308 = vst [vmem:[#allocation2 + $0x90] sm:$0xff] %v886
    %1309 = vst [vmem:[#allocation2 + $0x98] sm:$0xff] %v888
    %1310 = vst [vmem:[#allocation2 + $0xa0] sm:$0xff] %v1047
    %1311 = vst [vmem:[#allocation2 + $0xa8] sm:$0xff] %v1049
    %1312 = vst [vmem:[#allocation2 + $0xb0] sm:$0xff] %v1208
    %1313 = vst [vmem:[#allocation2 + $0xb8] sm:$0xff] %v1210
    %1314 = vst [vmem:[#allocation2 + $0xc0] sm:$0xff] %v731
    %1315 = vst [vmem:[#allocation2 + $0xc8] sm:$0xff] %v733
    %1316 = vst [vmem:[#allocation2 + $0xd0] sm:$0xff] %v892
    %1317 = vst [vmem:[#allocation2 + $0xd8] sm:$0xff] %v894
    %1318 = vst [vmem:[#allocation2 + $0xe0] sm:$0xff] %v1053
    %1319 = vst [vmem:[#allocation2 + $0xe8] sm:$0xff] %v1055
    %1320 = vst [vmem:[#allocation2 + $0xf0] sm:$0xff] %v1214
    %1321 = vst [vmem:[#allocation2 + $0xf8] sm:$0xff] %v1216
    %1322 = vst [vmem:[#allocation2 + $0x100] sm:$0xff] %v737
    %1323 = vst [vmem:[#allocation2 + $0x108] sm:$0xff] %v739
    %1324 = vst [vmem:[#allocation2 + $0x110] sm:$0xff] %v898
    %1325 = vst [vmem:[#allocation2 + $0x118] sm:$0xff] %v900
    %1326 = vst [vmem:[#allocation2 + $0x120] sm:$0xff] %v1059
    %1327 = vst [vmem:[#allocation2 + $0x128] sm:$0xff] %v1061
    %1328 = vst [vmem:[#allocation2 + $0x130] sm:$0xff] %v1220
    %1329 = vst [vmem:[#allocation2 + $0x138] sm:$0xff] %v1222
    %1330 = vst [vmem:[#allocation2 + $0x140] sm:$0xff] %v743
    %1331 = vst [vmem:[#allocation2 + $0x148] sm:$0xff] %v745
    %1332 = vst [vmem:[#allocation2 + $0x150] sm:$0xff] %v904
    %1333 = vst [vmem:[#allocation2 + $0x158] sm:$0xff] %v906
    %1334 = vst [vmem:[#allocation2 + $0x160] sm:$0xff] %v1065
    %1335 = vst [vmem:[#allocation2 + $0x168] sm:$0xff] %v1067
    %1336 = vst [vmem:[#allocation2 + $0x170] sm:$0xff] %v1226
    %1337 = vst [vmem:[#allocation2 + $0x178] sm:$0xff] %v1228
    %1338 = vst [vmem:[#allocation2 + $0x180] sm:$0xff] %v749
    %1339 = vst [vmem:[#allocation2 + $0x188] sm:$0xff] %v751
    %1340 = vst [vmem:[#allocation2 + $0x190] sm:$0xff] %v910
    %1341 = vst [vmem:[#allocation2 + $0x198] sm:$0xff] %v912
    %1342 = vst [vmem:[#allocation2 + $0x1a0] sm:$0xff] %v1071
    %1343 = vst [vmem:[#allocation2 + $0x1a8] sm:$0xff] %v1073
    %1344 = vst [vmem:[#allocation2 + $0x1b0] sm:$0xff] %v1232
    %1345 = vst [vmem:[#allocation2 + $0x1b8] sm:$0xff] %v1234
    %1346 = vst [vmem:[#allocation2 + $0x1c0] sm:$0xff] %v755
    %1347 = vst [vmem:[#allocation2 + $0x1c8] sm:$0xff] %v757
    %1348 = vst [vmem:[#allocation2 + $0x1d0] sm:$0xff] %v916
    %1349 = vst [vmem:[#allocation2 + $0x1d8] sm:$0xff] %v918
    %1350 = vst [vmem:[#allocation2 + $0x1e0] sm:$0xff] %v1077
    %1351 = vst [vmem:[#allocation2 + $0x1e8] sm:$0xff] %v1079
    %1352 = vst [vmem:[#allocation2 + $0x1f0] sm:$0xff] %v1238
    %1353 = vst [vmem:[#allocation2 + $0x1f8] sm:$0xff] %v1240
    %1354 = vst [vmem:[#allocation2 + $0x200] sm:$0xff] %v761
    %1355 = vst [vmem:[#allocation2 + $0x208] sm:$0xff] %v763
    %1356 = vst [vmem:[#allocation2 + $0x210] sm:$0xff] %v922
    %1357 = vst [vmem:[#allocation2 + $0x218] sm:$0xff] %v924
    %1358 = vst [vmem:[#allocation2 + $0x220] sm:$0xff] %v1083
    %1359 = vst [vmem:[#allocation2 + $0x228] sm:$0xff] %v1085
    %1360 = vst [vmem:[#allocation2 + $0x230] sm:$0xff] %v1244
    %1361 = vst [vmem:[#allocation2 + $0x238] sm:$0xff] %v1246
    %1362 = vst [vmem:[#allocation2 + $0x240] sm:$0xff] %v767
    %1363 = vst [vmem:[#allocation2 + $0x248] sm:$0xff] %v769
    %1364 = vst [vmem:[#allocation2 + $0x250] sm:$0xff] %v928
    %1365 = vst [vmem:[#allocation2 + $0x258] sm:$0xff] %v930
    %1366 = vst [vmem:[#allocation2 + $0x260] sm:$0xff] %v1089
    %1367 = vst [vmem:[#allocation2 + $0x268] sm:$0xff] %v1091
    %1368 = vst [vmem:[#allocation2 + $0x270] sm:$0xff] %v1250
    %1369 = vst [vmem:[#allocation2 + $0x278] sm:$0xff] %v1252
    %1370 = vst [vmem:[#allocation2 + $0x280] sm:$0xff] %v773
    %1371 = vst [vmem:[#allocation2 + $0x288] sm:$0xff] %v775
    %1372 = vst [vmem:[#allocation2 + $0x290] sm:$0xff] %v934
    %1373 = vst [vmem:[#allocation2 + $0x298] sm:$0xff] %v936
    %1374 = vst [vmem:[#allocation2 + $0x2a0] sm:$0xff] %v1095
    %1375 = vst [vmem:[#allocation2 + $0x2a8] sm:$0xff] %v1097
    %1376 = vst [vmem:[#allocation2 + $0x2b0] sm:$0xff] %v1256
    %1377 = vst [vmem:[#allocation2 + $0x2b8] sm:$0xff] %v1258
    %1378 = vst [vmem:[#allocation2 + $0x2c0] sm:$0xff] %v779
    %1379 = vst [vmem:[#allocation2 + $0x2c8] sm:$0xff] %v781
    %1380 = vst [vmem:[#allocation2 + $0x2d0] sm:$0xff] %v940
    %1381 = vst [vmem:[#allocation2 + $0x2d8] sm:$0xff] %v942
    %1382 = vst [vmem:[#allocation2 + $0x2e0] sm:$0xff] %v1101
    %1383 = vst [vmem:[#allocation2 + $0x2e8] sm:$0xff] %v1103
    %1384 = vst [vmem:[#allocation2 + $0x2f0] sm:$0xff] %v1262
    %1385 = vst [vmem:[#allocation2 + $0x2f8] sm:$0xff] %v1264
    %1386 = vst [vmem:[#allocation2 + $0x300] sm:$0xff] %v785
    %1387 = vst [vmem:[#allocation2 + $0x308] sm:$0xff] %v787
    %1388 = vst [vmem:[#allocation2 + $0x310] sm:$0xff] %v946
    %1389 = vst [vmem:[#allocation2 + $0x318] sm:$0xff] %v948
    %1390 = vst [vmem:[#allocation2 + $0x320] sm:$0xff] %v1107
    %1391 = vst [vmem:[#allocation2 + $0x328] sm:$0xff] %v1109
    %1392 = vst [vmem:[#allocation2 + $0x330] sm:$0xff] %v1268
    %1393 = vst [vmem:[#allocation2 + $0x338] sm:$0xff] %v1270
    %1394 = vst [vmem:[#allocation2 + $0x340] sm:$0xff] %v791
    %1395 = vst [vmem:[#allocation2 + $0x348] sm:$0xff] %v793
    %1396 = vst [vmem:[#allocation2 + $0x350] sm:$0xff] %v952
    %1397 = vst [vmem:[#allocation2 + $0x358] sm:$0xff] %v954
    %1398 = vst [vmem:[#allocation2 + $0x360] sm:$0xff] %v1113
    %1399 = vst [vmem:[#allocation2 + $0x368] sm:$0xff] %v1115
    %1400 = vst [vmem:[#allocation2 + $0x370] sm:$0xff] %v1274
    %1401 = vst [vmem:[#allocation2 + $0x378] sm:$0xff] %v1276
    %1402 = vst [vmem:[#allocation2 + $0x380] sm:$0xff] %v797
    %1403 = vst [vmem:[#allocation2 + $0x388] sm:$0xff] %v799
    %1404 = vst [vmem:[#allocation2 + $0x390] sm:$0xff] %v958
    %1405 = vst [vmem:[#allocation2 + $0x398] sm:$0xff] %v960
    %1406 = vst [vmem:[#allocation2 + $0x3a0] sm:$0xff] %v1119
    %1407 = vst [vmem:[#allocation2 + $0x3a8] sm:$0xff] %v1121
    %1408 = vst [vmem:[#allocation2 + $0x3b0] sm:$0xff] %v1280
    %1409 = vst [vmem:[#allocation2 + $0x3b8] sm:$0xff] %v1282
    %1410 = vst [vmem:[#allocation2 + $0x3c0] sm:$0xff] %v803
    %1411 = vst [vmem:[#allocation2 + $0x3c8] sm:$0xff] %v805
    %1412 = vst [vmem:[#allocation2 + $0x3d0] sm:$0xff] %v964
    %1413 = vst [vmem:[#allocation2 + $0x3d8] sm:$0xff] %v966
    %1414 = vst [vmem:[#allocation2 + $0x3e0] sm:$0xff] %v1125
    %1415 = vst [vmem:[#allocation2 + $0x3e8] sm:$0xff] %v1127
    %1416 = vst [vmem:[#allocation2 + $0x3f0] sm:$0xff] %v1286
    %1417 = vst [vmem:[#allocation2 + $0x3f8] sm:$0xff] %v1288
    %v1418 = vld [vmem:[%s4] sm:$0xff]
    %v1419 = vld [vmem:[%s4 + $0x8] sm:$0xff]
    %v1420 = vld [vmem:[%s4 + $0x10] sm:$0xff]
    %v1421 = vld [vmem:[%s4 + $0x18] sm:$0xff]
    %v1422 = vld [vmem:[%s4 + $0x20] sm:$0xff]
    %v1423 = vld [vmem:[%s4 + $0x28] sm:$0xff]
    %v1424 = vld [vmem:[%s4 + $0x30] sm:$0xff]
    %v1425 = vld [vmem:[%s4 + $0x38] sm:$0xff]
    %v1426 = vld [vmem:[%s4 + $0x40] sm:$0xff]
    %v1427 = vld [vmem:[%s4 + $0x48] sm:$0xff]
    %v1428 = vld [vmem:[%s4 + $0x50] sm:$0xff]
    %v1429 = vld [vmem:[%s4 + $0x58] sm:$0xff]
    %v1430 = vld [vmem:[%s4 + $0x60] sm:$0xff]
    %v1431 = vld [vmem:[%s4 + $0x68] sm:$0xff]
    %v1432 = vld [vmem:[%s4 + $0x70] sm:$0xff]
    %v1433 = vld [vmem:[%s4 + $0x78] sm:$0xff]
    %v1434 = vld [vmem:[#allocation2] sm:$0xff]
    %v1435 = vld [vmem:[#allocation2 + $0x40] sm:$0xff]
    %v1436 = vld [vmem:[#allocation2 + $0x80] sm:$0xff]
    %v1437 = vld [vmem:[#allocation2 + $0xc0] sm:$0xff]
    %v1438 = vld [vmem:[#allocation2 + $0x100] sm:$0xff]
    %v1439 = vld [vmem:[#allocation2 + $0x140] sm:$0xff]
    %v1440 = vld [vmem:[#allocation2 + $0x180] sm:$0xff]
    %v1441 = vld [vmem:[#allocation2 + $0x1c0] sm:$0xff]
    %v1442 = vld [vmem:[#allocation2 + $0x200] sm:$0xff]
    %v1443 = vld [vmem:[#allocation2 + $0x240] sm:$0xff]
    %v1444 = vld [vmem:[#allocation2 + $0x280] sm:$0xff]
    %v1445 = vld [vmem:[#allocation2 + $0x2c0] sm:$0xff]
    %v1446 = vld [vmem:[#allocation2 + $0x300] sm:$0xff]
    %v1447 = vld [vmem:[#allocation2 + $0x340] sm:$0xff]
    %v1448 = vld [vmem:[#allocation2 + $0x380] sm:$0xff]
    %v1449 = vld [vmem:[#allocation2 + $0x3c0] sm:$0xff]
    %v1451 = vsel %vm597, %v1418, 0
    %v1454 = vsel %vm597, %v1419, 0
    %v1457 = vsel %vm597, %v1420, 0
    %v1460 = vsel %vm597, %v1421, 0
    %v1463 = vsel %vm597, %v1422, 0
    %v1466 = vsel %vm597, %v1423, 0
    %v1469 = vsel %vm597, %v1424, 0
    %v1472 = vsel %vm597, %v1425, 0
    %v1475 = vsel %vm597, %v1426, 0
    %v1478 = vsel %vm597, %v1427, 0
    %v1481 = vsel %vm597, %v1428, 0
    %v1484 = vsel %vm597, %v1429, 0
    %v1487 = vsel %vm597, %v1430, 0
    %v1490 = vsel %vm597, %v1431, 0
    %v1493 = vsel %vm597, %v1432, 0
    %v1496 = vsel %vm597, %v1433, 0
    %1498 = vmatprep.subr.mxu0 0.0
    %1499 = vmatpush1.msra.mxu0 0.0
    %1500 = vmatprep.subr.mxu0 0.0
    %1501 = vmatpush1.msra.mxu0 0.0
    %1502 = vmatprep.subr.mxu0 0.0
    %1503 = vmatpush1.msra.mxu0 0.0
    %1504 = vmatprep.subr.mxu0 0.0
    %1505 = vmatpush1.msra.mxu0 0.0
    %1506 = vmatprep.subr.mxu0 0.0
    %1507 = vmatpush1.msra.mxu0 0.0
    %1508 = vmatprep.subr.mxu0 0.0
    %1509 = vmatpush1.msra.mxu0 0.0
    %1510 = vmatprep.subr.mxu0 0.0
    %1511 = vmatpush1.msra.mxu0 0.0
    %1512 = vmatprep.subr.mxu0 0.0
    %1513 = vmatpush1.msra.mxu0 0.0
    %1514 = vmatprep.subr.mxu0 0.0
    %1515 = vmatpush1.msra.mxu0 0.0
    %1516 = vmatprep.subr.mxu0 0.0
    %1517 = vmatpush1.msra.mxu0 0.0
    %1518 = vmatprep.subr.mxu0 0.0
    %1519 = vmatpush1.msra.mxu0 0.0
    %1520 = vmatprep.subr.mxu0 0.0
    %1521 = vmatpush1.msra.mxu0 0.0
    %1522 = vmatprep.subr.mxu0 0.0
    %1523 = vmatpush1.msra.mxu0 0.0
    %1524 = vmatprep.subr.mxu0 0.0
    %1525 = vmatpush1.msra.mxu0 0.0
    %1526 = vmatprep.subr.mxu0 0.0
    %1527 = vmatpush1.msra.mxu0 0.0
    %1528 = vmatprep.subr.mxu0 0.0
    %1529 = vmatpush1.msra.mxu0 0.0
    %1530 = vmatprep.subr.mxu0 0.0
    %1531 = vmatpush1.msra.mxu0 0.0
    %1532 = vmatprep.subr.mxu0 0.0
    %1533 = vmatpush1.msra.mxu0 0.0
    %1534 = vmatprep.subr.mxu0 0.0
    %1535 = vmatpush1.msra.mxu0 0.0
    %1536 = vmatprep.subr.mxu0 0.0
    %1537 = vmatpush1.msra.mxu0 0.0
    %1538 = vmatprep.subr.mxu0 0.0
    %1539 = vmatpush1.msra.mxu0 0.0
    %1540 = vmatprep.subr.mxu0 0.0
    %1541 = vmatpush1.msra.mxu0 0.0
    %1542 = vmatprep.subr.mxu0 0.0
    %1543 = vmatpush1.msra.mxu0 0.0
    %1544 = vmatprep.subr.mxu0 0.0
    %1545 = vmatpush1.msra.mxu0 0.0
    %1546 = vmatprep.subr.mxu0 0.0
    %1547 = vmatpush1.msra.mxu0 0.0
    %1548 = vmatprep.subr.mxu0 0.0
    %1549 = vmatpush1.msra.mxu0 0.0
    %1550 = vmatprep.subr.mxu0 0.0
    %1551 = vmatpush1.msra.mxu0 0.0
    %1552 = vmatprep.subr.mxu0 0.0
    %1553 = vmatpush1.msra.mxu0 0.0
    %1554 = vmatprep.subr.mxu0 0.0
    %1555 = vmatpush1.msra.mxu0 0.0
    %1556 = vmatprep.subr.mxu0 0.0
    %1557 = vmatpush1.msra.mxu0 0.0
    %1558 = vmatprep.subr.mxu0 0.0
    %1559 = vmatpush1.msra.mxu0 0.0
    %1560 = vmatprep.subr.mxu0 0.0
    %1561 = vmatpush1.msra.mxu0 0.0
    %1562 = vmatprep.mubr.f32.mxu0 0.0
    %1563 = vmatmul.mubr.f32.gmra.mrb[0].mxu0 %v1451
    %v1564 = vpop.f32.mrb[0].mxu0
    %v1565 = vadd.f32 0.0, %v1564
    %v1566 = vpop.f32.mrb[0].mxu0
    %1567 = vmatprep.mubr.f32.mxu0 0.0
    %1568 = vmatmul.mubr.f32.gmra.mrb[0].mxu0 %v1454
    %v1569 = vpop.f32.mrb[0].mxu0
    %v1570 = vadd.f32 0.0, %v1569
    %v1571 = vpop.f32.mrb[0].mxu0
    %1572 = vmatprep.mubr.f32.mxu0 0.0
    %1573 = vmatmul.mubr.f32.gmra.mrb[0].mxu0 %v1457
    %v1574 = vpop.f32.mrb[0].mxu0
    %v1575 = vadd.f32 0.0, %v1574
    %v1576 = vpop.f32.mrb[0].mxu0
    %1577 = vmatprep.mubr.f32.mxu0 0.0
    %1578 = vmatmul.mubr.f32.gmra.mrb[0].mxu0 %v1460
    %v1579 = vpop.f32.mrb[0].mxu0
    %v1580 = vadd.f32 0.0, %v1579
    %v1581 = vpop.f32.mrb[0].mxu0
    %1582 = vmatprep.mubr.f32.mxu0 0.0
    %1583 = vmatmul.mubr.f32.gmra.mrb[0].mxu0 %v1463
    %v1584 = vpop.f32.mrb[0].mxu0
    %v1585 = vadd.f32 0.0, %v1584
    %v1586 = vpop.f32.mrb[0].mxu0
    %1587 = vmatprep.mubr.f32.mxu0 0.0
    %1588 = vmatmul.mubr.f32.gmra.mrb[0].mxu0 %v1466
    %v1589 = vpop.f32.mrb[0].mxu0
    %v1590 = vadd.f32 0.0, %v1589
    %v1591 = vpop.f32.mrb[0].mxu0
    %1592 = vmatprep.mubr.f32.mxu0 0.0
    %1593 = vmatmul.mubr.f32.gmra.mrb[0].mxu0 %v1469
    %v1594 = vpop.f32.mrb[0].mxu0
    %v1595 = vadd.f32 0.0, %v1594
    %v1596 = vpop.f32.mrb[0].mxu0
    %1597 = vmatprep.mubr.f32.mxu0 0.0
    %1598 = vmatmul.mubr.f32.gmra.mrb[0].mxu0 %v1472
    %v1599 = vpop.f32.mrb[0].mxu0
    %v1600 = vadd.f32 0.0, %v1599
    %v1601 = vpop.f32.mrb[0].mxu0
    %1602 = vmatprep.mubr.f32.mxu0 0.0
    %1603 = vmatmul.mubr.f32.gmra.mrb[0].mxu0 %v1475
    %v1604 = vpop.f32.mrb[0].mxu0
    %v1605 = vadd.f32 0.0, %v1604
    %v1606 = vpop.f32.mrb[0].mxu0
    %1607 = vmatprep.mubr.f32.mxu0 0.0
    %1608 = vmatmul.mubr.f32.gmra.mrb[0].mxu0 %v1478
    %v1609 = vpop.f32.mrb[0].mxu0
    %v1610 = vadd.f32 0.0, %v1609
    %v1611 = vpop.f32.mrb[0].mxu0
    %1612 = vmatprep.mubr.f32.mxu0 0.0
    %1613 = vmatmul.mubr.f32.gmra.mrb[0].mxu0 %v1481
    %v1614 = vpop.f32.mrb[0].mxu0
    %v1615 = vadd.f32 0.0, %v1614
    %v1616 = vpop.f32.mrb[0].mxu0
    %1617 = vmatprep.mubr.f32.mxu0 0.0
    %1618 = vmatmul.mubr.f32.gmra.mrb[0].mxu0 %v1484
    %v1619 = vpop.f32.mrb[0].mxu0
    %v1620 = vadd.f32 0.0, %v1619
    %v1621 = vpop.f32.mrb[0].mxu0
    %1622 = vmatprep.mubr.f32.mxu0 0.0
    %1623 = vmatmul.mubr.f32.gmra.mrb[0].mxu0 %v1487
    %v1624 = vpop.f32.mrb[0].mxu0
    %v1625 = vadd.f32 0.0, %v1624
    %v1626 = vpop.f32.mrb[0].mxu0
    %1627 = vmatprep.mubr.f32.mxu0 0.0
    %1628 = vmatmul.mubr.f32.gmra.mrb[0].mxu0 %v1490
    %v1629 = vpop.f32.mrb[0].mxu0
    %v1630 = vadd.f32 0.0, %v1629
    %v1631 = vpop.f32.mrb[0].mxu0
    %1632 = vmatprep.mubr.f32.mxu0 0.0
    %1633 = vmatmul.mubr.f32.gmra.mrb[0].mxu0 %v1493
    %v1634 = vpop.f32.mrb[0].mxu0
    %v1635 = vadd.f32 0.0, %v1634
    %v1636 = vpop.f32.mrb[0].mxu0
    %1637 = vmatprep.mubr.f32.mxu0 0.0
    %1638 = vmatmul.mubr.f32.gmra.mrb[0].mxu0 %v1496
    %v1639 = vpop.f32.mrb[0].mxu0
    %v1640 = vadd.f32 0.0, %v1639
    %v1641 = vpop.f32.mrb[0].mxu0
    %1642 = vdwg.mxu0
    %v1643 = vadd.f32 %v1434, %v1565
    %v1644 = vadd.f32 %v1435, %v1570
    %v1645 = vadd.f32 %v1436, %v1575
    %v1646 = vadd.f32 %v1437, %v1580
    %v1647 = vadd.f32 %v1438, %v1585
    %v1648 = vadd.f32 %v1439, %v1590
    %v1649 = vadd.f32 %v1440, %v1595
    %v1650 = vadd.f32 %v1441, %v1600
    %v1651 = vadd.f32 %v1442, %v1605
    %v1652 = vadd.f32 %v1443, %v1610
    %v1653 = vadd.f32 %v1444, %v1615
    %v1654 = vadd.f32 %v1445, %v1620
    %v1655 = vadd.f32 %v1446, %v1625
    %v1656 = vadd.f32 %v1447, %v1630
    %v1657 = vadd.f32 %v1448, %v1635
    %v1658 = vadd.f32 %v1449, %v1640
    %v1659 = vxor.u32 %v1643, 2147483648
    %v1660 = vxor.u32 %v1644, 2147483648
    %v1661 = vxor.u32 %v1645, 2147483648
    %v1662 = vxor.u32 %v1646, 2147483648
    %v1663 = vmul.f32 %v1659, 1.442695
    %v1664 = vpow.pop %v1663
    %v1665 = vmul.f32 %v1660, 1.442695
    %v1666 = vpow.pop %v1665
    %v1667 = vmul.f32 %v1661, 1.442695
    %v1668 = vpow.pop %v1667
    %v1669 = vmul.f32 %v1662, 1.442695
    %v1670 = vpow.pop %v1669
    %v1671 = vadd.f32 %v1664, 1.0
    %v1672 = vadd.f32 %v1666, 1.0
    %v1673 = vadd.f32 %v1668, 1.0
    %v1674 = vadd.f32 %v1670, 1.0
    %v1675 = vrcp.pop %v1671
    %v1676 = vmul.f32 1.0, %v1675
    %v1677 = vrcp.pop %v1672
    %v1678 = vmul.f32 1.0, %v1677
    %v1679 = vrcp.pop %v1673
    %v1680 = vmul.f32 1.0, %v1679
    %v1681 = vrcp.pop %v1674
    %v1682 = vmul.f32 1.0, %v1681
    %v1683 = vxor.u32 %v1647, 2147483648
    %v1684 = vxor.u32 %v1648, 2147483648
    %v1685 = vxor.u32 %v1649, 2147483648
    %v1686 = vxor.u32 %v1650, 2147483648
    %v1687 = vmul.f32 %v1683, 1.442695
    %v1688 = vpow.pop %v1687
    %v1689 = vmul.f32 %v1684, 1.442695
    %v1690 = vpow.pop %v1689
    %v1691 = vmul.f32 %v1685, 1.442695
    %v1692 = vpow.pop %v1691
    %v1693 = vmul.f32 %v1686, 1.442695
    %v1694 = vpow.pop %v1693
    %v1695 = vadd.f32 %v1688, 1.0
    %v1696 = vadd.f32 %v1690, 1.0
    %v1697 = vadd.f32 %v1692, 1.0
    %v1698 = vadd.f32 %v1694, 1.0
    %v1699 = vrcp.pop %v1695
    %v1700 = vmul.f32 1.0, %v1699
    %v1701 = vrcp.pop %v1696
    %v1702 = vmul.f32 1.0, %v1701
    %v1703 = vrcp.pop %v1697
    %v1704 = vmul.f32 1.0, %v1703
    %v1705 = vrcp.pop %v1698
    %v1706 = vmul.f32 1.0, %v1705
    %v1707 = vtanh.pop %v1651
    %v1708 = vtanh.pop %v1652
    %v1709 = vtanh.pop %v1653
    %v1710 = vtanh.pop %v1654
    %v1711 = vxor.u32 %v1655, 2147483648
    %v1712 = vxor.u32 %v1656, 2147483648
    %v1713 = vxor.u32 %v1657, 2147483648
    %v1714 = vxor.u32 %v1658, 2147483648
    %v1715 = vmul.f32 %v1711, 1.442695
    %v1716 = vpow.pop %v1715
    %v1717 = vmul.f32 %v1712, 1.442695
    %v1718 = vpow.pop %v1717
    %v1719 = vmul.f32 %v1713, 1.442695
    %v1720 = vpow.pop %v1719
    %v1721 = vmul.f32 %v1714, 1.442695
    %v1722 = vpow.pop %v1721
    %v1723 = vadd.f32 %v1716, 1.0
    %v1724 = vadd.f32 %v1718, 1.0
    %v1725 = vadd.f32 %v1720, 1.0
    %v1726 = vadd.f32 %v1722, 1.0
    %v1727 = vrcp.pop %v1723
    %v1728 = vmul.f32 1.0, %v1727
    %v1729 = vrcp.pop %v1724
    %v1730 = vmul.f32 1.0, %v1729
    %v1731 = vrcp.pop %v1725
    %v1732 = vmul.f32 1.0, %v1731
    %v1733 = vrcp.pop %v1726
    %v1734 = vmul.f32 1.0, %v1733
    %v1735 = vmul.f32 %v1700, 0.0
    %v1736 = vmul.f32 %v1702, 0.0
    %v1737 = vmul.f32 %v1704, 0.0
    %v1738 = vmul.f32 %v1706, 0.0
    %v1739 = vmul.f32 %v1676, %v1707
    %v1740 = vmul.f32 %v1678, %v1708
    %v1741 = vmul.f32 %v1680, %v1709
    %v1742 = vmul.f32 %v1682, %v1710
    %v1743 = vadd.f32 %v1735, %v1739
    %v1744 = vadd.f32 %v1736, %v1740
    %v1745 = vadd.f32 %v1737, %v1741
    %v1746 = vadd.f32 %v1738, %v1742
    %v1747 = vtanh.pop %v1743
    %v1748 = vtanh.pop %v1744
    %v1749 = vtanh.pop %v1745
    %v1750 = vtanh.pop %v1746
    %v1751 = vmul.f32 %v1728, %v1747
    %v1752 = vmul.f32 %v1730, %v1748
    %v1753 = vmul.f32 %v1732, %v1749
    %v1754 = vmul.f32 %v1734, %v1750
    %1755 = vst [vmem:[#allocation3] sm:$0xff] %v1751
    %1756 = vst [vmem:[#allocation3 + $0x8] sm:$0xff] %v1752
    %1757 = vst [vmem:[#allocation3 + $0x10] sm:$0xff] %v1753
    %1758 = vst [vmem:[#allocation3 + $0x18] sm:$0xff] %v1754
    %s1759 = scalar_lea.vmem [#allocation2], 8
    %v1760 = vld [vmem:[%s1759] sm:$0xff]
    %v1761 = vld [vmem:[%s1759 + $0x40] sm:$0xff]
    %v1762 = vld [vmem:[%s1759 + $0x80] sm:$0xff]
    %v1763 = vld [vmem:[%s1759 + $0xc0] sm:$0xff]
    %v1764 = vld [vmem:[%s1759 + $0x100] sm:$0xff]
    %v1765 = vld [vmem:[%s1759 + $0x140] sm:$0xff]
    %v1766 = vld [vmem:[%s1759 + $0x180] sm:$0xff]
    %v1767 = vld [vmem:[%s1759 + $0x1c0] sm:$0xff]
    %v1768 = vld [vmem:[%s1759 + $0x200] sm:$0xff]
    %v1769 = vld [vmem:[%s1759 + $0x240] sm:$0xff]
    %v1770 = vld [vmem:[%s1759 + $0x280] sm:$0xff]
    %v1771 = vld [vmem:[%s1759 + $0x2c0] sm:$0xff]
    %v1772 = vld [vmem:[%s1759 + $0x300] sm:$0xff]
    %v1773 = vld [vmem:[%s1759 + $0x340] sm:$0xff]
    %v1774 = vld [vmem:[%s1759 + $0x380] sm:$0xff]
    %v1775 = vld [vmem:[%s1759 + $0x3c0] sm:$0xff]
    %1776 = vmatprep.subr.mxu0 0.0
    %1777 = vmatpush1.msra.mxu0 %v1751
    %1778 = vmatprep.subr.mxu0 0.0
    %1779 = vmatpush1.msra.mxu0 %v1752
    %1780 = vmatprep.subr.mxu0 0.0
    %1781 = vmatpush1.msra.mxu0 %v1753
    %1782 = vmatprep.subr.mxu0 0.0
    %1783 = vmatpush1.msra.mxu0 %v1754
    %1784 = vmatprep.subr.mxu0 0.0
    %1785 = vmatpush1.msra.mxu0 0.0
    %1786 = vmatprep.subr.mxu0 0.0
    %1787 = vmatpush1.msra.mxu0 0.0
    %1788 = vmatprep.subr.mxu0 0.0
    %1789 = vmatpush1.msra.mxu0 0.0
    %1790 = vmatprep.subr.mxu0 0.0
    %1791 = vmatpush1.msra.mxu0 0.0
    %1792 = vmatprep.subr.mxu0 0.0
    %1793 = vmatpush1.msra.mxu0 0.0
    %1794 = vmatprep.subr.mxu0 0.0
    %1795 = vmatpush1.msra.mxu0 0.0
    %1796 = vmatprep.subr.mxu0 0.0
    %1797 = vmatpush1.msra.mxu0 0.0
    %1798 = vmatprep.subr.mxu0 0.0
    %1799 = vmatpush1.msra.mxu0 0.0
    %1800 = vmatprep.subr.mxu0 0.0
    %1801 = vmatpush1.msra.mxu0 0.0
    %1802 = vmatprep.subr.mxu0 0.0
    %1803 = vmatpush1.msra.mxu0 0.0
    %1804 = vmatprep.subr.mxu0 0.0
    %1805 = vmatpush1.msra.mxu0 0.0
    %1806 = vmatprep.subr.mxu0 0.0
    %1807 = vmatpush1.msra.mxu0 0.0
    %1808 = vmatprep.subr.mxu0 0.0
    %1809 = vmatpush1.msra.mxu0 0.0
    %1810 = vmatprep.subr.mxu0 0.0
    %1811 = vmatpush1.msra.mxu0 0.0
    %1812 = vmatprep.subr.mxu0 0.0
    %1813 = vmatpush1.msra.mxu0 0.0
    %1814 = vmatprep.subr.mxu0 0.0
    %1815 = vmatpush1.msra.mxu0 0.0
    %1816 = vmatprep.subr.mxu0 0.0
    %1817 = vmatpush1.msra.mxu0 0.0
    %1818 = vmatprep.subr.mxu0 0.0
    %1819 = vmatpush1.msra.mxu0 0.0
    %1820 = vmatprep.subr.mxu0 0.0
    %1821 = vmatpush1.msra.mxu0 0.0
    %1822 = vmatprep.subr.mxu0 0.0
    %1823 = vmatpush1.msra.mxu0 0.0
    %1824 = vmatprep.subr.mxu0 0.0
    %1825 = vmatpush1.msra.mxu0 0.0
    %1826 = vmatprep.subr.mxu0 0.0
    %1827 = vmatpush1.msra.mxu0 0.0
    %1828 = vmatprep.subr.mxu0 0.0
    %1829 = vmatpush1.msra.mxu0 0.0
    %1830 = vmatprep.subr.mxu0 0.0
    %1831 = vmatpush1.msra.mxu0 0.0
    %1832 = vmatprep.subr.mxu0 0.0
    %1833 = vmatpush1.msra.mxu0 0.0
    %1834 = vmatprep.subr.mxu0 0.0
    %1835 = vmatpush1.msra.mxu0 0.0
    %1836 = vmatprep.subr.mxu0 0.0
    %1837 = vmatpush1.msra.mxu0 0.0
    %1838 = vmatprep.subr.mxu0 0.0
    %1839 = vmatpush1.msra.mxu0 0.0
    %1840 = vmatprep.mubr.f32.mxu0 0.0
    %1841 = vmatmul.mubr.f32.gmra.mrb[0].mxu0 %v1451
    %v1842 = vpop.f32.mrb[0].mxu0
    %v1843 = vadd.f32 0.0, %v1842
    %v1844 = vpop.f32.mrb[0].mxu0
    %1845 = vmatprep.mubr.f32.mxu0 0.0
    %1846 = vmatmul.mubr.f32.gmra.mrb[0].mxu0 %v1454
    %v1847 = vpop.f32.mrb[0].mxu0
    %v1848 = vadd.f32 0.0, %v1847
    %v1849 = vpop.f32.mrb[0].mxu0
    %1850 = vmatprep.mubr.f32.mxu0 0.0
    %1851 = vmatmul.mubr.f32.gmra.mrb[0].mxu0 %v1457
    %v1852 = vpop.f32.mrb[0].mxu0
    %v1853 = vadd.f32 0.0, %v1852
    %v1854 = vpop.f32.mrb[0].mxu0
    %1855 = vmatprep.mubr.f32.mxu0 0.0
    %1856 = vmatmul.mubr.f32.gmra.mrb[0].mxu0 %v1460
    %v1857 = vpop.f32.mrb[0].mxu0
    %v1858 = vadd.f32 0.0, %v1857
    %v1859 = vpop.f32.mrb[0].mxu0
    %1860 = vmatprep.mubr.f32.mxu0 0.0
    %1861 = vmatmul.mubr.f32.gmra.mrb[0].mxu0 %v1463
    %v1862 = vpop.f32.mrb[0].mxu0
    %v1863 = vadd.f32 0.0, %v1862
    %v1864 = vpop.f32.mrb[0].mxu0
    %1865 = vmatprep.mubr.f32.mxu0 0.0
    %1866 = vmatmul.mubr.f32.gmra.mrb[0].mxu0 %v1466
    %v1867 = vpop.f32.mrb[0].mxu0
    %v1868 = vadd.f32 0.0, %v1867
    %v1869 = vpop.f32.mrb[0].mxu0
    %1870 = vmatprep.mubr.f32.mxu0 0.0
    %1871 = vmatmul.mubr.f32.gmra.mrb[0].mxu0 %v1469
    %v1872 = vpop.f32.mrb[0].mxu0
    %v1873 = vadd.f32 0.0, %v1872
    %v1874 = vpop.f32.mrb[0].mxu0
    %1875 = vmatprep.mubr.f32.mxu0 0.0
    %1876 = vmatmul.mubr.f32.gmra.mrb[0].mxu0 %v1472
    %v1877 = vpop.f32.mrb[0].mxu0
    %v1878 = vadd.f32 0.0, %v1877
    %v1879 = vpop.f32.mrb[0].mxu0
    %1880 = vmatprep.mubr.f32.mxu0 0.0
    %1881 = vmatmul.mubr.f32.gmra.mrb[0].mxu0 %v1475
    %v1882 = vpop.f32.mrb[0].mxu0
    %v1883 = vadd.f32 0.0, %v1882
    %v1884 = vpop.f32.mrb[0].mxu0
    %1885 = vmatprep.mubr.f32.mxu0 0.0
    %1886 = vmatmul.mubr.f32.gmra.mrb[0].mxu0 %v1478
    %v1887 = vpop.f32.mrb[0].mxu0
    %v1888 = vadd.f32 0.0, %v1887
    %v1889 = vpop.f32.mrb[0].mxu0
    %1890 = vmatprep.mubr.f32.mxu0 0.0
    %1891 = vmatmul.mubr.f32.gmra.mrb[0].mxu0 %v1481
    %v1892 = vpop.f32.mrb[0].mxu0
    %v1893 = vadd.f32 0.0, %v1892
    %v1894 = vpop.f32.mrb[0].mxu0
    %1895 = vmatprep.mubr.f32.mxu0 0.0
    %1896 = vmatmul.mubr.f32.gmra.mrb[0].mxu0 %v1484
    %v1897 = vpop.f32.mrb[0].mxu0
    %v1898 = vadd.f32 0.0, %v1897
    %v1899 = vpop.f32.mrb[0].mxu0
    %1900 = vmatprep.mubr.f32.mxu0 0.0
    %1901 = vmatmul.mubr.f32.gmra.mrb[0].mxu0 %v1487
    %v1902 = vpop.f32.mrb[0].mxu0
    %v1903 = vadd.f32 0.0, %v1902
    %v1904 = vpop.f32.mrb[0].mxu0
    %1905 = vmatprep.mubr.f32.mxu0 0.0
    %1906 = vmatmul.mubr.f32.gmra.mrb[0].mxu0 %v1490
    %v1907 = vpop.f32.mrb[0].mxu0
    %v1908 = vadd.f32 0.0, %v1907
    %v1909 = vpop.f32.mrb[0].mxu0
    %1910 = vmatprep.mubr.f32.mxu0 0.0
    %1911 = vmatmul.mubr.f32.gmra.mrb[0].mxu0 %v1493
    %v1912 = vpop.f32.mrb[0].mxu0
    %v1913 = vadd.f32 0.0, %v1912
    %v1914 = vpop.f32.mrb[0].mxu0
    %1915 = vmatprep.mubr.f32.mxu0 0.0
    %1916 = vmatmul.mubr.f32.gmra.mrb[0].mxu0 %v1496
    %v1917 = vpop.f32.mrb[0].mxu0
    %v1918 = vadd.f32 0.0, %v1917
    %v1919 = vpop.f32.mrb[0].mxu0
    %1920 = vdwg.mxu0
    %v1921 = vadd.f32 %v1760, %v1843
    %v1922 = vadd.f32 %v1761, %v1848
    %v1923 = vadd.f32 %v1762, %v1853
    %v1924 = vadd.f32 %v1763, %v1858
    %v1925 = vadd.f32 %v1764, %v1863
    %v1926 = vadd.f32 %v1765, %v1868
    %v1927 = vadd.f32 %v1766, %v1873
    %v1928 = vadd.f32 %v1767, %v1878
    %v1929 = vadd.f32 %v1768, %v1883
    %v1930 = vadd.f32 %v1769, %v1888
    %v1931 = vadd.f32 %v1770, %v1893
    %v1932 = vadd.f32 %v1771, %v1898
    %v1933 = vadd.f32 %v1772, %v1903
    %v1934 = vadd.f32 %v1773, %v1908
    %v1935 = vadd.f32 %v1774, %v1913
    %v1936 = vadd.f32 %v1775, %v1918
    %v1937 = vxor.u32 %v1921, 2147483648
    %v1938 = vxor.u32 %v1922, 2147483648
    %v1939 = vxor.u32 %v1923, 2147483648
    %v1940 = vxor.u32 %v1924, 2147483648
    %v1941 = vmul.f32 %v1937, 1.442695
    %v1942 = vpow.pop %v1941
    %v1943 = vmul.f32 %v1938, 1.442695
    %v1944 = vpow.pop %v1943
    %v1945 = vmul.f32 %v1939, 1.442695
    %v1946 = vpow.pop %v1945
    %v1947 = vmul.f32 %v1940, 1.442695
    %v1948 = vpow.pop %v1947
    %v1949 = vadd.f32 %v1942, 1.0
    %v1950 = vadd.f32 %v1944, 1.0
    %v1951 = vadd.f32 %v1946, 1.0
    %v1952 = vadd.f32 %v1948, 1.0
    %v1953 = vrcp.pop %v1949
    %v1954 = vmul.f32 1.0, %v1953
    %v1955 = vrcp.pop %v1950
    %v1956 = vmul.f32 1.0, %v1955
    %v1957 = vrcp.pop %v1951
    %v1958 = vmul.f32 1.0, %v1957
    %v1959 = vrcp.pop %v1952
    %v1960 = vmul.f32 1.0, %v1959
    %v1961 = vxor.u32 %v1925, 2147483648
    %v1962 = vxor.u32 %v1926, 2147483648
    %v1963 = vxor.u32 %v1927, 2147483648
    %v1964 = vxor.u32 %v1928, 2147483648
    %v1965 = vmul.f32 %v1961, 1.442695
    %v1966 = vpow.pop %v1965
    %v1967 = vmul.f32 %v1962, 1.442695
    %v1968 = vpow.pop %v1967
    %v1969 = vmul.f32 %v1963, 1.442695
    %v1970 = vpow.pop %v1969
    %v1971 = vmul.f32 %v1964, 1.442695
    %v1972 = vpow.pop %v1971
    %v1973 = vadd.f32 %v1966, 1.0
    %v1974 = vadd.f32 %v1968, 1.0
    %v1975 = vadd.f32 %v1970, 1.0
    %v1976 = vadd.f32 %v1972, 1.0
    %v1977 = vrcp.pop %v1973
    %v1978 = vmul.f32 1.0, %v1977
    %v1979 = vrcp.pop %v1974
    %v1980 = vmul.f32 1.0, %v1979
    %v1981 = vrcp.pop %v1975
    %v1982 = vmul.f32 1.0, %v1981
    %v1983 = vrcp.pop %v1976
    %v1984 = vmul.f32 1.0, %v1983
    %v1985 = vtanh.pop %v1929
    %v1986 = vtanh.pop %v1930
    %v1987 = vtanh.pop %v1931
    %v1988 = vtanh.pop %v1932
    %v1989 = vxor.u32 %v1933, 2147483648
    %v1990 = vxor.u32 %v1934, 2147483648
    %v1991 = vxor.u32 %v1935, 2147483648
    %v1992 = vxor.u32 %v1936, 2147483648
    %v1993 = vmul.f32 %v1989, 1.442695
    %v1994 = vpow.pop %v1993
    %v1995 = vmul.f32 %v1990, 1.442695
    %v1996 = vpow.pop %v1995
    %v1997 = vmul.f32 %v1991, 1.442695
    %v1998 = vpow.pop %v1997
    %v1999 = vmul.f32 %v1992, 1.442695
    %v2000 = vpow.pop %v1999
    %v2001 = vadd.f32 %v1994, 1.0
    %v2002 = vadd.f32 %v1996, 1.0
    %v2003 = vadd.f32 %v1998, 1.0
    %v2004 = vadd.f32 %v2000, 1.0
    %v2005 = vrcp.pop %v2001
    %v2006 = vmul.f32 1.0, %v2005
    %v2007 = vrcp.pop %v2002
    %v2008 = vmul.f32 1.0, %v2007
    %v2009 = vrcp.pop %v2003
    %v2010 = vmul.f32 1.0, %v2009
    %v2011 = vrcp.pop %v2004
    %v2012 = vmul.f32 1.0, %v2011
    %v2013 = vmul.f32 %v1978, %v1743
    %v2014 = vmul.f32 %v1980, %v1744
    %v2015 = vmul.f32 %v1982, %v1745
    %v2016 = vmul.f32 %v1984, %v1746
    %v2017 = vmul.f32 %v1954, %v1985
    %v2018 = vmul.f32 %v1956, %v1986
    %v2019 = vmul.f32 %v1958, %v1987
    %v2020 = vmul.f32 %v1960, %v1988
    %v2021 = vadd.f32 %v2013, %v2017
    %v2022 = vadd.f32 %v2014, %v2018
    %v2023 = vadd.f32 %v2015, %v2019
    %v2024 = vadd.f32 %v2016, %v2020
    %v2025 = vtanh.pop %v2021
    %v2026 = vtanh.pop %v2022
    %v2027 = vtanh.pop %v2023
    %v2028 = vtanh.pop %v2024
    %v2029 = vmul.f32 %v2006, %v2025
    %v2030 = vmul.f32 %v2008, %v2026
    %v2031 = vmul.f32 %v2010, %v2027
    %v2032 = vmul.f32 %v2012, %v2028
    %s2033 = scalar_lea.vmem [#allocation3], 32
    %2034 = vst [vmem:[%s2033] sm:$0xff] %v2029
    %2035 = vst [vmem:[%s2033 + $0x8] sm:$0xff] %v2030
    %2036 = vst [vmem:[%s2033 + $0x10] sm:$0xff] %v2031
    %2037 = vst [vmem:[%s2033 + $0x18] sm:$0xff] %v2032
    %s2038 = scalar_lea.vmem [#allocation2], 16
    %v2039 = vld [vmem:[%s2038] sm:$0xff]
    %v2040 = vld [vmem:[%s2038 + $0x40] sm:$0xff]
    %v2041 = vld [vmem:[%s2038 + $0x80] sm:$0xff]
    %v2042 = vld [vmem:[%s2038 + $0xc0] sm:$0xff]
    %v2043 = vld [vmem:[%s2038 + $0x100] sm:$0xff]
    %v2044 = vld [vmem:[%s2038 + $0x140] sm:$0xff]
    %v2045 = vld [vmem:[%s2038 + $0x180] sm:$0xff]
    %v2046 = vld [vmem:[%s2038 + $0x1c0] sm:$0xff]
    %v2047 = vld [vmem:[%s2038 + $0x200] sm:$0xff]
    %v2048 = vld [vmem:[%s2038 + $0x240] sm:$0xff]
    %v2049 = vld [vmem:[%s2038 + $0x280] sm:$0xff]
    %v2050 = vld [vmem:[%s2038 + $0x2c0] sm:$0xff]
    %v2051 = vld [vmem:[%s2038 + $0x300] sm:$0xff]
    %v2052 = vld [vmem:[%s2038 + $0x340] sm:$0xff]
    %v2053 = vld [vmem:[%s2038 + $0x380] sm:$0xff]
    %v2054 = vld [vmem:[%s2038 + $0x3c0] sm:$0xff]
    %2055 = vmatprep.subr.mxu0 0.0
    %2056 = vmatpush1.msra.mxu0 %v2029
    %2057 = vmatprep.subr.mxu0 0.0
    %2058 = vmatpush1.msra.mxu0 %v2030
    %2059 = vmatprep.subr.mxu0 0.0
    %2060 = vmatpush1.msra.mxu0 %v2031
    %2061 = vmatprep.subr.mxu0 0.0
    %2062 = vmatpush1.msra.mxu0 %v2032
    %2063 = vmatprep.subr.mxu0 0.0
    %2064 = vmatpush1.msra.mxu0 0.0
    %2065 = vmatprep.subr.mxu0 0.0
    %2066 = vmatpush1.msra.mxu0 0.0
    %2067 = vmatprep.subr.mxu0 0.0
    %2068 = vmatpush1.msra.mxu0 0.0
    %2069 = vmatprep.subr.mxu0 0.0
    %2070 = vmatpush1.msra.mxu0 0.0
    %2071 = vmatprep.subr.mxu0 0.0
    %2072 = vmatpush1.msra.mxu0 0.0
    %2073 = vmatprep.subr.mxu0 0.0
    %2074 = vmatpush1.msra.mxu0 0.0
    %2075 = vmatprep.subr.mxu0 0.0
    %2076 = vmatpush1.msra.mxu0 0.0
    %2077 = vmatprep.subr.mxu0 0.0
    %2078 = vmatpush1.msra.mxu0 0.0
    %2079 = vmatprep.subr.mxu0 0.0
    %2080 = vmatpush1.msra.mxu0 0.0
    %2081 = vmatprep.subr.mxu0 0.0
    %2082 = vmatpush1.msra.mxu0 0.0
    %2083 = vmatprep.subr.mxu0 0.0
    %2084 = vmatpush1.msra.mxu0 0.0
    %2085 = vmatprep.subr.mxu0 0.0
    %2086 = vmatpush1.msra.mxu0 0.0
    %2087 = vmatprep.subr.mxu0 0.0
    %2088 = vmatpush1.msra.mxu0 0.0
    %2089 = vmatprep.subr.mxu0 0.0
    %2090 = vmatpush1.msra.mxu0 0.0
    %2091 = vmatprep.subr.mxu0 0.0
    %2092 = vmatpush1.msra.mxu0 0.0
    %2093 = vmatprep.subr.mxu0 0.0
    %2094 = vmatpush1.msra.mxu0 0.0
    %2095 = vmatprep.subr.mxu0 0.0
    %2096 = vmatpush1.msra.mxu0 0.0
    %2097 = vmatprep.subr.mxu0 0.0
    %2098 = vmatpush1.msra.mxu0 0.0
    %2099 = vmatprep.subr.mxu0 0.0
    %2100 = vmatpush1.msra.mxu0 0.0
    %2101 = vmatprep.subr.mxu0 0.0
    %2102 = vmatpush1.msra.mxu0 0.0
    %2103 = vmatprep.subr.mxu0 0.0
    %2104 = vmatpush1.msra.mxu0 0.0
    %2105 = vmatprep.subr.mxu0 0.0
    %2106 = vmatpush1.msra.mxu0 0.0
    %2107 = vmatprep.subr.mxu0 0.0
    %2108 = vmatpush1.msra.mxu0 0.0
    %2109 = vmatprep.subr.mxu0 0.0
    %2110 = vmatpush1.msra.mxu0 0.0
    %2111 = vmatprep.subr.mxu0 0.0
    %2112 = vmatpush1.msra.mxu0 0.0
    %2113 = vmatprep.subr.mxu0 0.0
    %2114 = vmatpush1.msra.mxu0 0.0
    %2115 = vmatprep.subr.mxu0 0.0
    %2116 = vmatpush1.msra.mxu0 0.0
    %2117 = vmatprep.subr.mxu0 0.0
    %2118 = vmatpush1.msra.mxu0 0.0
    %2119 = vmatprep.mubr.f32.mxu0 0.0
    %2120 = vmatmul.mubr.f32.gmra.mrb[0].mxu0 %v1451
    %v2121 = vpop.f32.mrb[0].mxu0
    %v2122 = vadd.f32 0.0, %v2121
    %v2123 = vpop.f32.mrb[0].mxu0
    %2124 = vmatprep.mubr.f32.mxu0 0.0
    %2125 = vmatmul.mubr.f32.gmra.mrb[0].mxu0 %v1454
    %v2126 = vpop.f32.mrb[0].mxu0
    %v2127 = vadd.f32 0.0, %v2126
    %v2128 = vpop.f32.mrb[0].mxu0
    %2129 = vmatprep.mubr.f32.mxu0 0.0
    %2130 = vmatmul.mubr.f32.gmra.mrb[0].mxu0 %v1457
    %v2131 = vpop.f32.mrb[0].mxu0
    %v2132 = vadd.f32 0.0, %v2131
    %v2133 = vpop.f32.mrb[0].mxu0
    %2134 = vmatprep.mubr.f32.mxu0 0.0
    %2135 = vmatmul.mubr.f32.gmra.mrb[0].mxu0 %v1460
    %v2136 = vpop.f32.mrb[0].mxu0
    %v2137 = vadd.f32 0.0, %v2136
    %v2138 = vpop.f32.mrb[0].mxu0
    %2139 = vmatprep.mubr.f32.mxu0 0.0
    %2140 = vmatmul.mubr.f32.gmra.mrb[0].mxu0 %v1463
    %v2141 = vpop.f32.mrb[0].mxu0
    %v2142 = vadd.f32 0.0, %v2141
    %v2143 = vpop.f32.mrb[0].mxu0
    %2144 = vmatprep.mubr.f32.mxu0 0.0
    %2145 = vmatmul.mubr.f32.gmra.mrb[0].mxu0 %v1466
    %v2146 = vpop.f32.mrb[0].mxu0
    %v2147 = vadd.f32 0.0, %v2146
    %v2148 = vpop.f32.mrb[0].mxu0
    %2149 = vmatprep.mubr.f32.mxu0 0.0
    %2150 = vmatmul.mubr.f32.gmra.mrb[0].mxu0 %v1469
    %v2151 = vpop.f32.mrb[0].mxu0
    %v2152 = vadd.f32 0.0, %v2151
    %v2153 = vpop.f32.mrb[0].mxu0
    %2154 = vmatprep.mubr.f32.mxu0 0.0
    %2155 = vmatmul.mubr.f32.gmra.mrb[0].mxu0 %v1472
    %v2156 = vpop.f32.mrb[0].mxu0
    %v2157 = vadd.f32 0.0, %v2156
    %v2158 = vpop.f32.mrb[0].mxu0
    %2159 = vmatprep.mubr.f32.mxu0 0.0
    %2160 = vmatmul.mubr.f32.gmra.mrb[0].mxu0 %v1475
    %v2161 = vpop.f32.mrb[0].mxu0
    %v2162 = vadd.f32 0.0, %v2161
    %v2163 = vpop.f32.mrb[0].mxu0
    %2164 = vmatprep.mubr.f32.mxu0 0.0
    %2165 = vmatmul.mubr.f32.gmra.mrb[0].mxu0 %v1478
    %v2166 = vpop.f32.mrb[0].mxu0
    %v2167 = vadd.f32 0.0, %v2166
    %v2168 = vpop.f32.mrb[0].mxu0
    %2169 = vmatprep.mubr.f32.mxu0 0.0
    %2170 = vmatmul.mubr.f32.gmra.mrb[0].mxu0 %v1481
    %v2171 = vpop.f32.mrb[0].mxu0
    %v2172 = vadd.f32 0.0, %v2171
    %v2173 = vpop.f32.mrb[0].mxu0
    %2174 = vmatprep.mubr.f32.mxu0 0.0
    %2175 = vmatmul.mubr.f32.gmra.mrb[0].mxu0 %v1484
    %v2176 = vpop.f32.mrb[0].mxu0
    %v2177 = vadd.f32 0.0, %v2176
    %v2178 = vpop.f32.mrb[0].mxu0
    %2179 = vmatprep.mubr.f32.mxu0 0.0
    %2180 = vmatmul.mubr.f32.gmra.mrb[0].mxu0 %v1487
    %v2181 = vpop.f32.mrb[0].mxu0
    %v2182 = vadd.f32 0.0, %v2181
    %v2183 = vpop.f32.mrb[0].mxu0
    %2184 = vmatprep.mubr.f32.mxu0 0.0
    %2185 = vmatmul.mubr.f32.gmra.mrb[0].mxu0 %v1490
    %v2186 = vpop.f32.mrb[0].mxu0
    %v2187 = vadd.f32 0.0, %v2186
    %v2188 = vpop.f32.mrb[0].mxu0
    %2189 = vmatprep.mubr.f32.mxu0 0.0
    %2190 = vmatmul.mubr.f32.gmra.mrb[0].mxu0 %v1493
    %v2191 = vpop.f32.mrb[0].mxu0
    %v2192 = vadd.f32 0.0, %v2191
    %v2193 = vpop.f32.mrb[0].mxu0
    %2194 = vmatprep.mubr.f32.mxu0 0.0
    %2195 = vmatmul.mubr.f32.gmra.mrb[0].mxu0 %v1496
    %v2196 = vpop.f32.mrb[0].mxu0
    %v2197 = vadd.f32 0.0, %v2196
    %v2198 = vpop.f32.mrb[0].mxu0
    %2199 = vdwg.mxu0
    %v2200 = vadd.f32 %v2039, %v2122
    %v2201 = vadd.f32 %v2040, %v2127
    %v2202 = vadd.f32 %v2041, %v2132
    %v2203 = vadd.f32 %v2042, %v2137
    %v2204 = vadd.f32 %v2043, %v2142
    %v2205 = vadd.f32 %v2044, %v2147
    %v2206 = vadd.f32 %v2045, %v2152
    %v2207 = vadd.f32 %v2046, %v2157
    %v2208 = vadd.f32 %v2047, %v2162
    %v2209 = vadd.f32 %v2048, %v2167
    %v2210 = vadd.f32 %v2049, %v2172
    %v2211 = vadd.f32 %v2050, %v2177
    %v2212 = vadd.f32 %v2051, %v2182
    %v2213 = vadd.f32 %v2052, %v2187
    %v2214 = vadd.f32 %v2053, %v2192
    %v2215 = vadd.f32 %v2054, %v2197
    %v2216 = vxor.u32 %v2200, 2147483648
    %v2217 = vxor.u32 %v2201, 2147483648
    %v2218 = vxor.u32 %v2202, 2147483648
    %v2219 = vxor.u32 %v2203, 2147483648
    %v2220 = vmul.f32 %v2216, 1.442695
    %v2221 = vpow.pop %v2220
    %v2222 = vmul.f32 %v2217, 1.442695
    %v2223 = vpow.pop %v2222
    %v2224 = vmul.f32 %v2218, 1.442695
    %v2225 = vpow.pop %v2224
    %v2226 = vmul.f32 %v2219, 1.442695
    %v2227 = vpow.pop %v2226
    %v2228 = vadd.f32 %v2221, 1.0
    %v2229 = vadd.f32 %v2223, 1.0
    %v2230 = vadd.f32 %v2225, 1.0
    %v2231 = vadd.f32 %v2227, 1.0
    %v2232 = vrcp.pop %v2228
    %v2233 = vmul.f32 1.0, %v2232
    %v2234 = vrcp.pop %v2229
    %v2235 = vmul.f32 1.0, %v2234
    %v2236 = vrcp.pop %v2230
    %v2237 = vmul.f32 1.0, %v2236
    %v2238 = vrcp.pop %v2231
    %v2239 = vmul.f32 1.0, %v2238
    %v2240 = vxor.u32 %v2204, 2147483648
    %v2241 = vxor.u32 %v2205, 2147483648
    %v2242 = vxor.u32 %v2206, 2147483648
    %v2243 = vxor.u32 %v2207, 2147483648
    %v2244 = vmul.f32 %v2240, 1.442695
    %v2245 = vpow.pop %v2244
    %v2246 = vmul.f32 %v2241, 1.442695
    %v2247 = vpow.pop %v2246
    %v2248 = vmul.f32 %v2242, 1.442695
    %v2249 = vpow.pop %v2248
    %v2250 = vmul.f32 %v2243, 1.442695
    %v2251 = vpow.pop %v2250
    %v2252 = vadd.f32 %v2245, 1.0
    %v2253 = vadd.f32 %v2247, 1.0
    %v2254 = vadd.f32 %v2249, 1.0
    %v2255 = vadd.f32 %v2251, 1.0
    %v2256 = vrcp.pop %v2252
    %v2257 = vmul.f32 1.0, %v2256
    %v2258 = vrcp.pop %v2253
    %v2259 = vmul.f32 1.0, %v2258
    %v2260 = vrcp.pop %v2254
    %v2261 = vmul.f32 1.0, %v2260
    %v2262 = vrcp.pop %v2255
    %v2263 = vmul.f32 1.0, %v2262
    %v2264 = vtanh.pop %v2208
    %v2265 = vtanh.pop %v2209
    %v2266 = vtanh.pop %v2210
    %v2267 = vtanh.pop %v2211
    %v2268 = vxor.u32 %v2212, 2147483648
    %v2269 = vxor.u32 %v2213, 2147483648
    %v2270 = vxor.u32 %v2214, 2147483648
    %v2271 = vxor.u32 %v2215, 2147483648
    %v2272 = vmul.f32 %v2268, 1.442695
    %v2273 = vpow.pop %v2272
    %v2274 = vmul.f32 %v2269, 1.442695
    %v2275 = vpow.pop %v2274
    %v2276 = vmul.f32 %v2270, 1.442695
    %v2277 = vpow.pop %v2276
    %v2278 = vmul.f32 %v2271, 1.442695
    %v2279 = vpow.pop %v2278
    %v2280 = vadd.f32 %v2273, 1.0
    %v2281 = vadd.f32 %v2275, 1.0
    %v2282 = vadd.f32 %v2277, 1.0
    %v2283 = vadd.f32 %v2279, 1.0
    %v2284 = vrcp.pop %v2280
    %v2285 = vmul.f32 1.0, %v2284
    %v2286 = vrcp.pop %v2281
    %v2287 = vmul.f32 1.0, %v2286
    %v2288 = vrcp.pop %v2282
    %v2289 = vmul.f32 1.0, %v2288
    %v2290 = vrcp.pop %v2283
    %v2291 = vmul.f32 1.0, %v2290
    %v2292 = vmul.f32 %v2257, %v2021
    %v2293 = vmul.f32 %v2259, %v2022
    %v2294 = vmul.f32 %v2261, %v2023
    %v2295 = vmul.f32 %v2263, %v2024
    %v2296 = vmul.f32 %v2233, %v2264
    %v2297 = vmul.f32 %v2235, %v2265
    %v2298 = vmul.f32 %v2237, %v2266
    %v2299 = vmul.f32 %v2239, %v2267
    %v2300 = vadd.f32 %v2292, %v2296
    %v2301 = vadd.f32 %v2293, %v2297
    %v2302 = vadd.f32 %v2294, %v2298
    %v2303 = vadd.f32 %v2295, %v2299
    %v2304 = vtanh.pop %v2300
    %v2305 = vtanh.pop %v2301
    %v2306 = vtanh.pop %v2302
    %v2307 = vtanh.pop %v2303
    %v2308 = vmul.f32 %v2285, %v2304
    %v2309 = vmul.f32 %v2287, %v2305
    %v2310 = vmul.f32 %v2289, %v2306
    %v2311 = vmul.f32 %v2291, %v2307
    %s2312 = scalar_lea.vmem [#allocation3], 64
    %2313 = vst [vmem:[%s2312] sm:$0xff] %v2308
    %2314 = vst [vmem:[%s2312 + $0x8] sm:$0xff] %v2309
    %2315 = vst [vmem:[%s2312 + $0x10] sm:$0xff] %v2310
    %2316 = vst [vmem:[%s2312 + $0x18] sm:$0xff] %v2311
    %s2317 = scalar_lea.vmem [#allocation2], 24
    %v2318 = vld [vmem:[%s2317] sm:$0xff]
    %v2319 = vld [vmem:[%s2317 + $0x40] sm:$0xff]
    %v2320 = vld [vmem:[%s2317 + $0x80] sm:$0xff]
    %v2321 = vld [vmem:[%s2317 + $0xc0] sm:$0xff]
    %v2322 = vld [vmem:[%s2317 + $0x100] sm:$0xff]
    %v2323 = vld [vmem:[%s2317 + $0x140] sm:$0xff]
    %v2324 = vld [vmem:[%s2317 + $0x180] sm:$0xff]
    %v2325 = vld [vmem:[%s2317 + $0x1c0] sm:$0xff]
    %v2326 = vld [vmem:[%s2317 + $0x200] sm:$0xff]
    %v2327 = vld [vmem:[%s2317 + $0x240] sm:$0xff]
    %v2328 = vld [vmem:[%s2317 + $0x280] sm:$0xff]
    %v2329 = vld [vmem:[%s2317 + $0x2c0] sm:$0xff]
    %v2330 = vld [vmem:[%s2317 + $0x300] sm:$0xff]
    %v2331 = vld [vmem:[%s2317 + $0x340] sm:$0xff]
    %v2332 = vld [vmem:[%s2317 + $0x380] sm:$0xff]
    %v2333 = vld [vmem:[%s2317 + $0x3c0] sm:$0xff]
    %2334 = vmatprep.subr.mxu0 0.0
    %2335 = vmatpush1.msra.mxu0 %v2308
    %2336 = vmatprep.subr.mxu0 0.0
    %2337 = vmatpush1.msra.mxu0 %v2309
    %2338 = vmatprep.subr.mxu0 0.0
    %2339 = vmatpush1.msra.mxu0 %v2310
    %2340 = vmatprep.subr.mxu0 0.0
    %2341 = vmatpush1.msra.mxu0 %v2311
    %2342 = vmatprep.subr.mxu0 0.0
    %2343 = vmatpush1.msra.mxu0 0.0
    %2344 = vmatprep.subr.mxu0 0.0
    %2345 = vmatpush1.msra.mxu0 0.0
    %2346 = vmatprep.subr.mxu0 0.0
    %2347 = vmatpush1.msra.mxu0 0.0
    %2348 = vmatprep.subr.mxu0 0.0
    %2349 = vmatpush1.msra.mxu0 0.0
    %2350 = vmatprep.subr.mxu0 0.0
    %2351 = vmatpush1.msra.mxu0 0.0
    %2352 = vmatprep.subr.mxu0 0.0
    %2353 = vmatpush1.msra.mxu0 0.0
    %2354 = vmatprep.subr.mxu0 0.0
    %2355 = vmatpush1.msra.mxu0 0.0
    %2356 = vmatprep.subr.mxu0 0.0
    %2357 = vmatpush1.msra.mxu0 0.0
    %2358 = vmatprep.subr.mxu0 0.0
    %2359 = vmatpush1.msra.mxu0 0.0
    %2360 = vmatprep.subr.mxu0 0.0
    %2361 = vmatpush1.msra.mxu0 0.0
    %2362 = vmatprep.subr.mxu0 0.0
    %2363 = vmatpush1.msra.mxu0 0.0
    %2364 = vmatprep.subr.mxu0 0.0
    %2365 = vmatpush1.msra.mxu0 0.0
    %2366 = vmatprep.subr.mxu0 0.0
    %2367 = vmatpush1.msra.mxu0 0.0
    %2368 = vmatprep.subr.mxu0 0.0
    %2369 = vmatpush1.msra.mxu0 0.0
    %2370 = vmatprep.subr.mxu0 0.0
    %2371 = vmatpush1.msra.mxu0 0.0
    %2372 = vmatprep.subr.mxu0 0.0
    %2373 = vmatpush1.msra.mxu0 0.0
    %2374 = vmatprep.subr.mxu0 0.0
    %2375 = vmatpush1.msra.mxu0 0.0
    %2376 = vmatprep.subr.mxu0 0.0
    %2377 = vmatpush1.msra.mxu0 0.0
    %2378 = vmatprep.subr.mxu0 0.0
    %2379 = vmatpush1.msra.mxu0 0.0
    %2380 = vmatprep.subr.mxu0 0.0
    %2381 = vmatpush1.msra.mxu0 0.0
    %2382 = vmatprep.subr.mxu0 0.0
    %2383 = vmatpush1.msra.mxu0 0.0
    %2384 = vmatprep.subr.mxu0 0.0
    %2385 = vmatpush1.msra.mxu0 0.0
    %2386 = vmatprep.subr.mxu0 0.0
    %2387 = vmatpush1.msra.mxu0 0.0
    %2388 = vmatprep.subr.mxu0 0.0
    %2389 = vmatpush1.msra.mxu0 0.0
    %2390 = vmatprep.subr.mxu0 0.0
    %2391 = vmatpush1.msra.mxu0 0.0
    %2392 = vmatprep.subr.mxu0 0.0
    %2393 = vmatpush1.msra.mxu0 0.0
    %2394 = vmatprep.subr.mxu0 0.0
    %2395 = vmatpush1.msra.mxu0 0.0
    %2396 = vmatprep.subr.mxu0 0.0
    %2397 = vmatpush1.msra.mxu0 0.0
    %2398 = vmatprep.mubr.f32.mxu0 0.0
    %2399 = vmatmul.mubr.f32.gmra.mrb[0].mxu0 %v1451
    %v2400 = vpop.f32.mrb[0].mxu0
    %v2401 = vadd.f32 0.0, %v2400
    %v2402 = vpop.f32.mrb[0].mxu0
    %2403 = vmatprep.mubr.f32.mxu0 0.0
    %2404 = vmatmul.mubr.f32.gmra.mrb[0].mxu0 %v1454
    %v2405 = vpop.f32.mrb[0].mxu0
    %v2406 = vadd.f32 0.0, %v2405
    %v2407 = vpop.f32.mrb[0].mxu0
    %2408 = vmatprep.mubr.f32.mxu0 0.0
    %2409 = vmatmul.mubr.f32.gmra.mrb[0].mxu0 %v1457
    %v2410 = vpop.f32.mrb[0].mxu0
    %v2411 = vadd.f32 0.0, %v2410
    %v2412 = vpop.f32.mrb[0].mxu0
    %2413 = vmatprep.mubr.f32.mxu0 0.0
    %2414 = vmatmul.mubr.f32.gmra.mrb[0].mxu0 %v1460
    %v2415 = vpop.f32.mrb[0].mxu0
    %v2416 = vadd.f32 0.0, %v2415
    %v2417 = vpop.f32.mrb[0].mxu0
    %2418 = vmatprep.mubr.f32.mxu0 0.0
    %2419 = vmatmul.mubr.f32.gmra.mrb[0].mxu0 %v1463
    %v2420 = vpop.f32.mrb[0].mxu0
    %v2421 = vadd.f32 0.0, %v2420
    %v2422 = vpop.f32.mrb[0].mxu0
    %2423 = vmatprep.mubr.f32.mxu0 0.0
    %2424 = vmatmul.mubr.f32.gmra.mrb[0].mxu0 %v1466
    %v2425 = vpop.f32.mrb[0].mxu0
    %v2426 = vadd.f32 0.0, %v2425
    %v2427 = vpop.f32.mrb[0].mxu0
    %2428 = vmatprep.mubr.f32.mxu0 0.0
    %2429 = vmatmul.mubr.f32.gmra.mrb[0].mxu0 %v1469
    %v2430 = vpop.f32.mrb[0].mxu0
    %v2431 = vadd.f32 0.0, %v2430
    %v2432 = vpop.f32.mrb[0].mxu0
    %2433 = vmatprep.mubr.f32.mxu0 0.0
    %2434 = vmatmul.mubr.f32.gmra.mrb[0].mxu0 %v1472
    %v2435 = vpop.f32.mrb[0].mxu0
    %v2436 = vadd.f32 0.0, %v2435
    %v2437 = vpop.f32.mrb[0].mxu0
    %2438 = vmatprep.mubr.f32.mxu0 0.0
    %2439 = vmatmul.mubr.f32.gmra.mrb[0].mxu0 %v1475
    %v2440 = vpop.f32.mrb[0].mxu0
    %v2441 = vadd.f32 0.0, %v2440
    %v2442 = vpop.f32.mrb[0].mxu0
    %2443 = vmatprep.mubr.f32.mxu0 0.0
    %2444 = vmatmul.mubr.f32.gmra.mrb[0].mxu0 %v1478
    %v2445 = vpop.f32.mrb[0].mxu0
    %v2446 = vadd.f32 0.0, %v2445
    %v2447 = vpop.f32.mrb[0].mxu0
    %2448 = vmatprep.mubr.f32.mxu0 0.0
    %2449 = vmatmul.mubr.f32.gmra.mrb[0].mxu0 %v1481
    %v2450 = vpop.f32.mrb[0].mxu0
    %v2451 = vadd.f32 0.0, %v2450
    %v2452 = vpop.f32.mrb[0].mxu0
    %2453 = vmatprep.mubr.f32.mxu0 0.0
    %2454 = vmatmul.mubr.f32.gmra.mrb[0].mxu0 %v1484
    %v2455 = vpop.f32.mrb[0].mxu0
    %v2456 = vadd.f32 0.0, %v2455
    %v2457 = vpop.f32.mrb[0].mxu0
    %2458 = vmatprep.mubr.f32.mxu0 0.0
    %2459 = vmatmul.mubr.f32.gmra.mrb[0].mxu0 %v1487
    %v2460 = vpop.f32.mrb[0].mxu0
    %v2461 = vadd.f32 0.0, %v2460
    %v2462 = vpop.f32.mrb[0].mxu0
    %2463 = vmatprep.mubr.f32.mxu0 0.0
    %2464 = vmatmul.mubr.f32.gmra.mrb[0].mxu0 %v1490
    %v2465 = vpop.f32.mrb[0].mxu0
    %v2466 = vadd.f32 0.0, %v2465
    %v2467 = vpop.f32.mrb[0].mxu0
    %2468 = vmatprep.mubr.f32.mxu0 0.0
    %2469 = vmatmul.mubr.f32.gmra.mrb[0].mxu0 %v1493
    %v2470 = vpop.f32.mrb[0].mxu0
    %v2471 = vadd.f32 0.0, %v2470
    %v2472 = vpop.f32.mrb[0].mxu0
    %2473 = vmatprep.mubr.f32.mxu0 0.0
    %2474 = vmatmul.mubr.f32.gmra.mrb[0].mxu0 %v1496
    %v2475 = vpop.f32.mrb[0].mxu0
    %v2476 = vadd.f32 0.0, %v2475
    %v2477 = vpop.f32.mrb[0].mxu0
    %2478 = vdwg.mxu0
    %v2479 = vadd.f32 %v2318, %v2401
    %v2480 = vadd.f32 %v2319, %v2406
    %v2481 = vadd.f32 %v2320, %v2411
    %v2482 = vadd.f32 %v2321, %v2416
    %v2483 = vadd.f32 %v2322, %v2421
    %v2484 = vadd.f32 %v2323, %v2426
    %v2485 = vadd.f32 %v2324, %v2431
    %v2486 = vadd.f32 %v2325, %v2436
    %v2487 = vadd.f32 %v2326, %v2441
    %v2488 = vadd.f32 %v2327, %v2446
    %v2489 = vadd.f32 %v2328, %v2451
    %v2490 = vadd.f32 %v2329, %v2456
    %v2491 = vadd.f32 %v2330, %v2461
    %v2492 = vadd.f32 %v2331, %v2466
    %v2493 = vadd.f32 %v2332, %v2471
    %v2494 = vadd.f32 %v2333, %v2476
    %v2495 = vxor.u32 %v2479, 2147483648
    %v2496 = vxor.u32 %v2480, 2147483648
    %v2497 = vxor.u32 %v2481, 2147483648
    %v2498 = vxor.u32 %v2482, 2147483648
    %v2499 = vmul.f32 %v2495, 1.442695
    %v2500 = vpow.pop %v2499
    %v2501 = vmul.f32 %v2496, 1.442695
    %v2502 = vpow.pop %v2501
    %v2503 = vmul.f32 %v2497, 1.442695
    %v2504 = vpow.pop %v2503
    %v2505 = vmul.f32 %v2498, 1.442695
    %v2506 = vpow.pop %v2505
    %v2507 = vadd.f32 %v2500, 1.0
    %v2508 = vadd.f32 %v2502, 1.0
    %v2509 = vadd.f32 %v2504, 1.0
    %v2510 = vadd.f32 %v2506, 1.0
    %v2511 = vrcp.pop %v2507
    %v2512 = vmul.f32 1.0, %v2511
    %v2513 = vrcp.pop %v2508
    %v2514 = vmul.f32 1.0, %v2513
    %v2515 = vrcp.pop %v2509
    %v2516 = vmul.f32 1.0, %v2515
    %v2517 = vrcp.pop %v2510
    %v2518 = vmul.f32 1.0, %v2517
    %v2519 = vxor.u32 %v2483, 2147483648
    %v2520 = vxor.u32 %v2484, 2147483648
    %v2521 = vxor.u32 %v2485, 2147483648
    %v2522 = vxor.u32 %v2486, 2147483648
    %v2523 = vmul.f32 %v2519, 1.442695
    %v2524 = vpow.pop %v2523
    %v2525 = vmul.f32 %v2520, 1.442695
    %v2526 = vpow.pop %v2525
    %v2527 = vmul.f32 %v2521, 1.442695
    %v2528 = vpow.pop %v2527
    %v2529 = vmul.f32 %v2522, 1.442695
    %v2530 = vpow.pop %v2529
    %v2531 = vadd.f32 %v2524, 1.0
    %v2532 = vadd.f32 %v2526, 1.0
    %v2533 = vadd.f32 %v2528, 1.0
    %v2534 = vadd.f32 %v2530, 1.0
    %v2535 = vrcp.pop %v2531
    %v2536 = vmul.f32 1.0, %v2535
    %v2537 = vrcp.pop %v2532
    %v2538 = vmul.f32 1.0, %v2537
    %v2539 = vrcp.pop %v2533
    %v2540 = vmul.f32 1.0, %v2539
    %v2541 = vrcp.pop %v2534
    %v2542 = vmul.f32 1.0, %v2541
    %v2543 = vtanh.pop %v2487
    %v2544 = vtanh.pop %v2488
    %v2545 = vtanh.pop %v2489
    %v2546 = vtanh.pop %v2490
    %v2547 = vxor.u32 %v2491, 2147483648
    %v2548 = vxor.u32 %v2492, 2147483648
    %v2549 = vxor.u32 %v2493, 2147483648
    %v2550 = vxor.u32 %v2494, 2147483648
    %v2551 = vmul.f32 %v2547, 1.442695
    %v2552 = vpow.pop %v2551
    %v2553 = vmul.f32 %v2548, 1.442695
    %v2554 = vpow.pop %v2553
    %v2555 = vmul.f32 %v2549, 1.442695
    %v2556 = vpow.pop %v2555
    %v2557 = vmul.f32 %v2550, 1.442695
    %v2558 = vpow.pop %v2557
    %v2559 = vadd.f32 %v2552, 1.0
    %v2560 = vadd.f32 %v2554, 1.0
    %v2561 = vadd.f32 %v2556, 1.0
    %v2562 = vadd.f32 %v2558, 1.0
    %v2563 = vrcp.pop %v2559
    %v2564 = vmul.f32 1.0, %v2563
    %v2565 = vrcp.pop %v2560
    %v2566 = vmul.f32 1.0, %v2565
    %v2567 = vrcp.pop %v2561
    %v2568 = vmul.f32 1.0, %v2567
    %v2569 = vrcp.pop %v2562
    %v2570 = vmul.f32 1.0, %v2569
    %v2571 = vmul.f32 %v2536, %v2300
    %v2572 = vmul.f32 %v2538, %v2301
    %v2573 = vmul.f32 %v2540, %v2302
    %v2574 = vmul.f32 %v2542, %v2303
    %v2575 = vmul.f32 %v2512, %v2543
    %v2576 = vmul.f32 %v2514, %v2544
    %v2577 = vmul.f32 %v2516, %v2545
    %v2578 = vmul.f32 %v2518, %v2546
    %v2579 = vadd.f32 %v2571, %v2575
    %v2580 = vadd.f32 %v2572, %v2576
    %v2581 = vadd.f32 %v2573, %v2577
    %v2582 = vadd.f32 %v2574, %v2578
    %v2583 = vtanh.pop %v2579
    %v2584 = vtanh.pop %v2580
    %v2585 = vtanh.pop %v2581
    %v2586 = vtanh.pop %v2582
    %v2587 = vmul.f32 %v2564, %v2583
    %v2588 = vmul.f32 %v2566, %v2584
    %v2589 = vmul.f32 %v2568, %v2585
    %v2590 = vmul.f32 %v2570, %v2586
    %s2591 = scalar_lea.vmem [#allocation3], 96
    %2592 = vst [vmem:[%s2591] sm:$0xff] %v2587
    %2593 = vst [vmem:[%s2591 + $0x8] sm:$0xff] %v2588
    %2594 = vst [vmem:[%s2591 + $0x10] sm:$0xff] %v2589
    %2595 = vst [vmem:[%s2591 + $0x18] sm:$0xff] %v2590
    %s2596 = scalar_lea.vmem [#allocation2], 32
    %v2597 = vld [vmem:[%s2596] sm:$0xff]
    %v2598 = vld [vmem:[%s2596 + $0x40] sm:$0xff]
    %v2599 = vld [vmem:[%s2596 + $0x80] sm:$0xff]
    %v2600 = vld [vmem:[%s2596 + $0xc0] sm:$0xff]
    %v2601 = vld [vmem:[%s2596 + $0x100] sm:$0xff]
    %v2602 = vld [vmem:[%s2596 + $0x140] sm:$0xff]
    %v2603 = vld [vmem:[%s2596 + $0x180] sm:$0xff]
    %v2604 = vld [vmem:[%s2596 + $0x1c0] sm:$0xff]
    %v2605 = vld [vmem:[%s2596 + $0x200] sm:$0xff]
    %v2606 = vld [vmem:[%s2596 + $0x240] sm:$0xff]
    %v2607 = vld [vmem:[%s2596 + $0x280] sm:$0xff]
    %v2608 = vld [vmem:[%s2596 + $0x2c0] sm:$0xff]
    %v2609 = vld [vmem:[%s2596 + $0x300] sm:$0xff]
    %v2610 = vld [vmem:[%s2596 + $0x340] sm:$0xff]
    %v2611 = vld [vmem:[%s2596 + $0x380] sm:$0xff]
    %v2612 = vld [vmem:[%s2596 + $0x3c0] sm:$0xff]
    %2613 = vmatprep.subr.mxu0 0.0
    %2614 = vmatpush1.msra.mxu0 %v2587
    %2615 = vmatprep.subr.mxu0 0.0
    %2616 = vmatpush1.msra.mxu0 %v2588
    %2617 = vmatprep.subr.mxu0 0.0
    %2618 = vmatpush1.msra.mxu0 %v2589
    %2619 = vmatprep.subr.mxu0 0.0
    %2620 = vmatpush1.msra.mxu0 %v2590
    %2621 = vmatprep.subr.mxu0 0.0
    %2622 = vmatpush1.msra.mxu0 0.0
    %2623 = vmatprep.subr.mxu0 0.0
    %2624 = vmatpush1.msra.mxu0 0.0
    %2625 = vmatprep.subr.mxu0 0.0
    %2626 = vmatpush1.msra.mxu0 0.0
    %2627 = vmatprep.subr.mxu0 0.0
    %2628 = vmatpush1.msra.mxu0 0.0
    %2629 = vmatprep.subr.mxu0 0.0
    %2630 = vmatpush1.msra.mxu0 0.0
    %2631 = vmatprep.subr.mxu0 0.0
    %2632 = vmatpush1.msra.mxu0 0.0
    %2633 = vmatprep.subr.mxu0 0.0
    %2634 = vmatpush1.msra.mxu0 0.0
    %2635 = vmatprep.subr.mxu0 0.0
    %2636 = vmatpush1.msra.mxu0 0.0
    %2637 = vmatprep.subr.mxu0 0.0
    %2638 = vmatpush1.msra.mxu0 0.0
    %2639 = vmatprep.subr.mxu0 0.0
    %2640 = vmatpush1.msra.mxu0 0.0
    %2641 = vmatprep.subr.mxu0 0.0
    %2642 = vmatpush1.msra.mxu0 0.0
    %2643 = vmatprep.subr.mxu0 0.0
    %2644 = vmatpush1.msra.mxu0 0.0
    %2645 = vmatprep.subr.mxu0 0.0
    %2646 = vmatpush1.msra.mxu0 0.0
    %2647 = vmatprep.subr.mxu0 0.0
    %2648 = vmatpush1.msra.mxu0 0.0
    %2649 = vmatprep.subr.mxu0 0.0
    %2650 = vmatpush1.msra.mxu0 0.0
    %2651 = vmatprep.subr.mxu0 0.0
    %2652 = vmatpush1.msra.mxu0 0.0
    %2653 = vmatprep.subr.mxu0 0.0
    %2654 = vmatpush1.msra.mxu0 0.0
    %2655 = vmatprep.subr.mxu0 0.0
    %2656 = vmatpush1.msra.mxu0 0.0
    %2657 = vmatprep.subr.mxu0 0.0
    %2658 = vmatpush1.msra.mxu0 0.0
    %2659 = vmatprep.subr.mxu0 0.0
    %2660 = vmatpush1.msra.mxu0 0.0
    %2661 = vmatprep.subr.mxu0 0.0
    %2662 = vmatpush1.msra.mxu0 0.0
    %2663 = vmatprep.subr.mxu0 0.0
    %2664 = vmatpush1.msra.mxu0 0.0
    %2665 = vmatprep.subr.mxu0 0.0
    %2666 = vmatpush1.msra.mxu0 0.0
    %2667 = vmatprep.subr.mxu0 0.0
    %2668 = vmatpush1.msra.mxu0 0.0
    %2669 = vmatprep.subr.mxu0 0.0
    %2670 = vmatpush1.msra.mxu0 0.0
    %2671 = vmatprep.subr.mxu0 0.0
    %2672 = vmatpush1.msra.mxu0 0.0
    %2673 = vmatprep.subr.mxu0 0.0
    %2674 = vmatpush1.msra.mxu0 0.0
    %2675 = vmatprep.subr.mxu0 0.0
    %2676 = vmatpush1.msra.mxu0 0.0
    %2677 = vmatprep.mubr.f32.mxu0 0.0
    %2678 = vmatmul.mubr.f32.gmra.mrb[0].mxu0 %v1451
    %v2679 = vpop.f32.mrb[0].mxu0
    %v2680 = vadd.f32 0.0, %v2679
    %v2681 = vpop.f32.mrb[0].mxu0
    %2682 = vmatprep.mubr.f32.mxu0 0.0
    %2683 = vmatmul.mubr.f32.gmra.mrb[0].mxu0 %v1454
    %v2684 = vpop.f32.mrb[0].mxu0
    %v2685 = vadd.f32 0.0, %v2684
    %v2686 = vpop.f32.mrb[0].mxu0
    %2687 = vmatprep.mubr.f32.mxu0 0.0
    %2688 = vmatmul.mubr.f32.gmra.mrb[0].mxu0 %v1457
    %v2689 = vpop.f32.mrb[0].mxu0
    %v2690 = vadd.f32 0.0, %v2689
    %v2691 = vpop.f32.mrb[0].mxu0
    %2692 = vmatprep.mubr.f32.mxu0 0.0
    %2693 = vmatmul.mubr.f32.gmra.mrb[0].mxu0 %v1460
    %v2694 = vpop.f32.mrb[0].mxu0
    %v2695 = vadd.f32 0.0, %v2694
    %v2696 = vpop.f32.mrb[0].mxu0
    %2697 = vmatprep.mubr.f32.mxu0 0.0
    %2698 = vmatmul.mubr.f32.gmra.mrb[0].mxu0 %v1463
    %v2699 = vpop.f32.mrb[0].mxu0
    %v2700 = vadd.f32 0.0, %v2699
    %v2701 = vpop.f32.mrb[0].mxu0
    %2702 = vmatprep.mubr.f32.mxu0 0.0
    %2703 = vmatmul.mubr.f32.gmra.mrb[0].mxu0 %v1466
    %v2704 = vpop.f32.mrb[0].mxu0
    %v2705 = vadd.f32 0.0, %v2704
    %v2706 = vpop.f32.mrb[0].mxu0
    %2707 = vmatprep.mubr.f32.mxu0 0.0
    %2708 = vmatmul.mubr.f32.gmra.mrb[0].mxu0 %v1469
    %v2709 = vpop.f32.mrb[0].mxu0
    %v2710 = vadd.f32 0.0, %v2709
    %v2711 = vpop.f32.mrb[0].mxu0
    %2712 = vmatprep.mubr.f32.mxu0 0.0
    %2713 = vmatmul.mubr.f32.gmra.mrb[0].mxu0 %v1472
    %v2714 = vpop.f32.mrb[0].mxu0
    %v2715 = vadd.f32 0.0, %v2714
    %v2716 = vpop.f32.mrb[0].mxu0
    %2717 = vmatprep.mubr.f32.mxu0 0.0
    %2718 = vmatmul.mubr.f32.gmra.mrb[0].mxu0 %v1475
    %v2719 = vpop.f32.mrb[0].mxu0
    %v2720 = vadd.f32 0.0, %v2719
    %v2721 = vpop.f32.mrb[0].mxu0
    %2722 = vmatprep.mubr.f32.mxu0 0.0
    %2723 = vmatmul.mubr.f32.gmra.mrb[0].mxu0 %v1478
    %v2724 = vpop.f32.mrb[0].mxu0
    %v2725 = vadd.f32 0.0, %v2724
    %v2726 = vpop.f32.mrb[0].mxu0
    %2727 = vmatprep.mubr.f32.mxu0 0.0
    %2728 = vmatmul.mubr.f32.gmra.mrb[0].mxu0 %v1481
    %v2729 = vpop.f32.mrb[0].mxu0
    %v2730 = vadd.f32 0.0, %v2729
    %v2731 = vpop.f32.mrb[0].mxu0
    %2732 = vmatprep.mubr.f32.mxu0 0.0
    %2733 = vmatmul.mubr.f32.gmra.mrb[0].mxu0 %v1484
    %v2734 = vpop.f32.mrb[0].mxu0
    %v2735 = vadd.f32 0.0, %v2734
    %v2736 = vpop.f32.mrb[0].mxu0
    %2737 = vmatprep.mubr.f32.mxu0 0.0
    %2738 = vmatmul.mubr.f32.gmra.mrb[0].mxu0 %v1487
    %v2739 = vpop.f32.mrb[0].mxu0
    %v2740 = vadd.f32 0.0, %v2739
    %v2741 = vpop.f32.mrb[0].mxu0
    %2742 = vmatprep.mubr.f32.mxu0 0.0
    %2743 = vmatmul.mubr.f32.gmra.mrb[0].mxu0 %v1490
    %v2744 = vpop.f32.mrb[0].mxu0
    %v2745 = vadd.f32 0.0, %v2744
    %v2746 = vpop.f32.mrb[0].mxu0
    %2747 = vmatprep.mubr.f32.mxu0 0.0
    %2748 = vmatmul.mubr.f32.gmra.mrb[0].mxu0 %v1493
    %v2749 = vpop.f32.mrb[0].mxu0
    %v2750 = vadd.f32 0.0, %v2749
    %v2751 = vpop.f32.mrb[0].mxu0
    %2752 = vmatprep.mubr.f32.mxu0 0.0
    %2753 = vmatmul.mubr.f32.gmra.mrb[0].mxu0 %v1496
    %v2754 = vpop.f32.mrb[0].mxu0
    %v2755 = vadd.f32 0.0, %v2754
    %v2756 = vpop.f32.mrb[0].mxu0
    %2757 = vdwg.mxu0
    %v2758 = vadd.f32 %v2597, %v2680
    %v2759 = vadd.f32 %v2598, %v2685
    %v2760 = vadd.f32 %v2599, %v2690
    %v2761 = vadd.f32 %v2600, %v2695
    %v2762 = vadd.f32 %v2601, %v2700
    %v2763 = vadd.f32 %v2602, %v2705
    %v2764 = vadd.f32 %v2603, %v2710
    %v2765 = vadd.f32 %v2604, %v2715
    %v2766 = vadd.f32 %v2605, %v2720
    %v2767 = vadd.f32 %v2606, %v2725
    %v2768 = vadd.f32 %v2607, %v2730
    %v2769 = vadd.f32 %v2608, %v2735
    %v2770 = vadd.f32 %v2609, %v2740
    %v2771 = vadd.f32 %v2610, %v2745
    %v2772 = vadd.f32 %v2611, %v2750
    %v2773 = vadd.f32 %v2612, %v2755
    %v2774 = vxor.u32 %v2758, 2147483648
    %v2775 = vxor.u32 %v2759, 2147483648
    %v2776 = vxor.u32 %v2760, 2147483648
    %v2777 = vxor.u32 %v2761, 2147483648
    %v2778 = vmul.f32 %v2774, 1.442695
    %v2779 = vpow.pop %v2778
    %v2780 = vmul.f32 %v2775, 1.442695
    %v2781 = vpow.pop %v2780
    %v2782 = vmul.f32 %v2776, 1.442695
    %v2783 = vpow.pop %v2782
    %v2784 = vmul.f32 %v2777, 1.442695
    %v2785 = vpow.pop %v2784
    %v2786 = vadd.f32 %v2779, 1.0
    %v2787 = vadd.f32 %v2781, 1.0
    %v2788 = vadd.f32 %v2783, 1.0
    %v2789 = vadd.f32 %v2785, 1.0
    %v2790 = vrcp.pop %v2786
    %v2791 = vmul.f32 1.0, %v2790
    %v2792 = vrcp.pop %v2787
    %v2793 = vmul.f32 1.0, %v2792
    %v2794 = vrcp.pop %v2788
    %v2795 = vmul.f32 1.0, %v2794
    %v2796 = vrcp.pop %v2789
    %v2797 = vmul.f32 1.0, %v2796
    %v2798 = vxor.u32 %v2762, 2147483648
    %v2799 = vxor.u32 %v2763, 2147483648
    %v2800 = vxor.u32 %v2764, 2147483648
    %v2801 = vxor.u32 %v2765, 2147483648
    %v2802 = vmul.f32 %v2798, 1.442695
    %v2803 = vpow.pop %v2802
    %v2804 = vmul.f32 %v2799, 1.442695
    %v2805 = vpow.pop %v2804
    %v2806 = vmul.f32 %v2800, 1.442695
    %v2807 = vpow.pop %v2806
    %v2808 = vmul.f32 %v2801, 1.442695
    %v2809 = vpow.pop %v2808
    %v2810 = vadd.f32 %v2803, 1.0
    %v2811 = vadd.f32 %v2805, 1.0
    %v2812 = vadd.f32 %v2807, 1.0
    %v2813 = vadd.f32 %v2809, 1.0
    %v2814 = vrcp.pop %v2810
    %v2815 = vmul.f32 1.0, %v2814
    %v2816 = vrcp.pop %v2811
    %v2817 = vmul.f32 1.0, %v2816
    %v2818 = vrcp.pop %v2812
    %v2819 = vmul.f32 1.0, %v2818
    %v2820 = vrcp.pop %v2813
    %v2821 = vmul.f32 1.0, %v2820
    %v2822 = vtanh.pop %v2766
    %v2823 = vtanh.pop %v2767
    %v2824 = vtanh.pop %v2768
    %v2825 = vtanh.pop %v2769
    %v2826 = vxor.u32 %v2770, 2147483648
    %v2827 = vxor.u32 %v2771, 2147483648
    %v2828 = vxor.u32 %v2772, 2147483648
    %v2829 = vxor.u32 %v2773, 2147483648
    %v2830 = vmul.f32 %v2826, 1.442695
    %v2831 = vpow.pop %v2830
    %v2832 = vmul.f32 %v2827, 1.442695
    %v2833 = vpow.pop %v2832
    %v2834 = vmul.f32 %v2828, 1.442695
    %v2835 = vpow.pop %v2834
    %v2836 = vmul.f32 %v2829, 1.442695
    %v2837 = vpow.pop %v2836
    %v2838 = vadd.f32 %v2831, 1.0
    %v2839 = vadd.f32 %v2833, 1.0
    %v2840 = vadd.f32 %v2835, 1.0
    %v2841 = vadd.f32 %v2837, 1.0
    %v2842 = vrcp.pop %v2838
    %v2843 = vmul.f32 1.0, %v2842
    %v2844 = vrcp.pop %v2839
    %v2845 = vmul.f32 1.0, %v2844
    %v2846 = vrcp.pop %v2840
    %v2847 = vmul.f32 1.0, %v2846
    %v2848 = vrcp.pop %v2841
    %v2849 = vmul.f32 1.0, %v2848
    %v2850 = vmul.f32 %v2815, %v2579
    %v2851 = vmul.f32 %v2817, %v2580
    %v2852 = vmul.f32 %v2819, %v2581
    %v2853 = vmul.f32 %v2821, %v2582
    %v2854 = vmul.f32 %v2791, %v2822
    %v2855 = vmul.f32 %v2793, %v2823
    %v2856 = vmul.f32 %v2795, %v2824
    %v2857 = vmul.f32 %v2797, %v2825
    %v2858 = vadd.f32 %v2850, %v2854
    %v2859 = vadd.f32 %v2851, %v2855
    %v2860 = vadd.f32 %v2852, %v2856
    %v2861 = vadd.f32 %v2853, %v2857
    %v2862 = vtanh.pop %v2858
    %v2863 = vtanh.pop %v2859
    %v2864 = vtanh.pop %v2860
    %v2865 = vtanh.pop %v2861
    %v2866 = vmul.f32 %v2843, %v2862
    %v2867 = vmul.f32 %v2845, %v2863
    %v2868 = vmul.f32 %v2847, %v2864
    %v2869 = vmul.f32 %v2849, %v2865
    %s2870 = scalar_lea.vmem [#allocation3], 128
    %2871 = vst [vmem:[%s2870] sm:$0xff] %v2866
    %2872 = vst [vmem:[%s2870 + $0x8] sm:$0xff] %v2867
    %2873 = vst [vmem:[%s2870 + $0x10] sm:$0xff] %v2868
    %2874 = vst [vmem:[%s2870 + $0x18] sm:$0xff] %v2869
    %s2875 = scalar_lea.vmem [#allocation2], 40
    %v2876 = vld [vmem:[%s2875] sm:$0xff]
    %v2877 = vld [vmem:[%s2875 + $0x40] sm:$0xff]
    %v2878 = vld [vmem:[%s2875 + $0x80] sm:$0xff]
    %v2879 = vld [vmem:[%s2875 + $0xc0] sm:$0xff]
    %v2880 = vld [vmem:[%s2875 + $0x100] sm:$0xff]
    %v2881 = vld [vmem:[%s2875 + $0x140] sm:$0xff]
    %v2882 = vld [vmem:[%s2875 + $0x180] sm:$0xff]
    %v2883 = vld [vmem:[%s2875 + $0x1c0] sm:$0xff]
    %v2884 = vld [vmem:[%s2875 + $0x200] sm:$0xff]
    %v2885 = vld [vmem:[%s2875 + $0x240] sm:$0xff]
    %v2886 = vld [vmem:[%s2875 + $0x280] sm:$0xff]
    %v2887 = vld [vmem:[%s2875 + $0x2c0] sm:$0xff]
    %v2888 = vld [vmem:[%s2875 + $0x300] sm:$0xff]
    %v2889 = vld [vmem:[%s2875 + $0x340] sm:$0xff]
    %v2890 = vld [vmem:[%s2875 + $0x380] sm:$0xff]
    %v2891 = vld [vmem:[%s2875 + $0x3c0] sm:$0xff]
    %2892 = vmatprep.subr.mxu0 0.0
    %2893 = vmatpush1.msra.mxu0 %v2866
    %2894 = vmatprep.subr.mxu0 0.0
    %2895 = vmatpush1.msra.mxu0 %v2867
    %2896 = vmatprep.subr.mxu0 0.0
    %2897 = vmatpush1.msra.mxu0 %v2868
    %2898 = vmatprep.subr.mxu0 0.0
    %2899 = vmatpush1.msra.mxu0 %v2869
    %2900 = vmatprep.subr.mxu0 0.0
    %2901 = vmatpush1.msra.mxu0 0.0
    %2902 = vmatprep.subr.mxu0 0.0
    %2903 = vmatpush1.msra.mxu0 0.0
    %2904 = vmatprep.subr.mxu0 0.0
    %2905 = vmatpush1.msra.mxu0 0.0
    %2906 = vmatprep.subr.mxu0 0.0
    %2907 = vmatpush1.msra.mxu0 0.0
    %2908 = vmatprep.subr.mxu0 0.0
    %2909 = vmatpush1.msra.mxu0 0.0
    %2910 = vmatprep.subr.mxu0 0.0
    %2911 = vmatpush1.msra.mxu0 0.0
    %2912 = vmatprep.subr.mxu0 0.0
    %2913 = vmatpush1.msra.mxu0 0.0
    %2914 = vmatprep.subr.mxu0 0.0
    %2915 = vmatpush1.msra.mxu0 0.0
    %2916 = vmatprep.subr.mxu0 0.0
    %2917 = vmatpush1.msra.mxu0 0.0
    %2918 = vmatprep.subr.mxu0 0.0
    %2919 = vmatpush1.msra.mxu0 0.0
    %2920 = vmatprep.subr.mxu0 0.0
    %2921 = vmatpush1.msra.mxu0 0.0
    %2922 = vmatprep.subr.mxu0 0.0
    %2923 = vmatpush1.msra.mxu0 0.0
    %2924 = vmatprep.subr.mxu0 0.0
    %2925 = vmatpush1.msra.mxu0 0.0
    %2926 = vmatprep.subr.mxu0 0.0
    %2927 = vmatpush1.msra.mxu0 0.0
    %2928 = vmatprep.subr.mxu0 0.0
    %2929 = vmatpush1.msra.mxu0 0.0
    %2930 = vmatprep.subr.mxu0 0.0
    %2931 = vmatpush1.msra.mxu0 0.0
    %2932 = vmatprep.subr.mxu0 0.0
    %2933 = vmatpush1.msra.mxu0 0.0
    %2934 = vmatprep.subr.mxu0 0.0
    %2935 = vmatpush1.msra.mxu0 0.0
    %2936 = vmatprep.subr.mxu0 0.0
    %2937 = vmatpush1.msra.mxu0 0.0
    %2938 = vmatprep.subr.mxu0 0.0
    %2939 = vmatpush1.msra.mxu0 0.0
    %2940 = vmatprep.subr.mxu0 0.0
    %2941 = vmatpush1.msra.mxu0 0.0
    %2942 = vmatprep.subr.mxu0 0.0
    %2943 = vmatpush1.msra.mxu0 0.0
    %2944 = vmatprep.subr.mxu0 0.0
    %2945 = vmatpush1.msra.mxu0 0.0
    %2946 = vmatprep.subr.mxu0 0.0
    %2947 = vmatpush1.msra.mxu0 0.0
    %2948 = vmatprep.subr.mxu0 0.0
    %2949 = vmatpush1.msra.mxu0 0.0
    %2950 = vmatprep.subr.mxu0 0.0
    %2951 = vmatpush1.msra.mxu0 0.0
    %2952 = vmatprep.subr.mxu0 0.0
    %2953 = vmatpush1.msra.mxu0 0.0
    %2954 = vmatprep.subr.mxu0 0.0
    %2955 = vmatpush1.msra.mxu0 0.0
    %2956 = vmatprep.mubr.f32.mxu0 0.0
    %2957 = vmatmul.mubr.f32.gmra.mrb[0].mxu0 %v1451
    %v2958 = vpop.f32.mrb[0].mxu0
    %v2959 = vadd.f32 0.0, %v2958
    %v2960 = vpop.f32.mrb[0].mxu0
    %2961 = vmatprep.mubr.f32.mxu0 0.0
    %2962 = vmatmul.mubr.f32.gmra.mrb[0].mxu0 %v1454
    %v2963 = vpop.f32.mrb[0].mxu0
    %v2964 = vadd.f32 0.0, %v2963
    %v2965 = vpop.f32.mrb[0].mxu0
    %2966 = vmatprep.mubr.f32.mxu0 0.0
    %2967 = vmatmul.mubr.f32.gmra.mrb[0].mxu0 %v1457
    %v2968 = vpop.f32.mrb[0].mxu0
    %v2969 = vadd.f32 0.0, %v2968
    %v2970 = vpop.f32.mrb[0].mxu0
    %2971 = vmatprep.mubr.f32.mxu0 0.0
    %2972 = vmatmul.mubr.f32.gmra.mrb[0].mxu0 %v1460
    %v2973 = vpop.f32.mrb[0].mxu0
    %v2974 = vadd.f32 0.0, %v2973
    %v2975 = vpop.f32.mrb[0].mxu0
    %2976 = vmatprep.mubr.f32.mxu0 0.0
    %2977 = vmatmul.mubr.f32.gmra.mrb[0].mxu0 %v1463
    %v2978 = vpop.f32.mrb[0].mxu0
    %v2979 = vadd.f32 0.0, %v2978
    %v2980 = vpop.f32.mrb[0].mxu0
    %2981 = vmatprep.mubr.f32.mxu0 0.0
    %2982 = vmatmul.mubr.f32.gmra.mrb[0].mxu0 %v1466
    %v2983 = vpop.f32.mrb[0].mxu0
    %v2984 = vadd.f32 0.0, %v2983
    %v2985 = vpop.f32.mrb[0].mxu0
    %2986 = vmatprep.mubr.f32.mxu0 0.0
    %2987 = vmatmul.mubr.f32.gmra.mrb[0].mxu0 %v1469
    %v2988 = vpop.f32.mrb[0].mxu0
    %v2989 = vadd.f32 0.0, %v2988
    %v2990 = vpop.f32.mrb[0].mxu0
    %2991 = vmatprep.mubr.f32.mxu0 0.0
    %2992 = vmatmul.mubr.f32.gmra.mrb[0].mxu0 %v1472
    %v2993 = vpop.f32.mrb[0].mxu0
    %v2994 = vadd.f32 0.0, %v2993
    %v2995 = vpop.f32.mrb[0].mxu0
    %2996 = vmatprep.mubr.f32.mxu0 0.0
    %2997 = vmatmul.mubr.f32.gmra.mrb[0].mxu0 %v1475
    %v2998 = vpop.f32.mrb[0].mxu0
    %v2999 = vadd.f32 0.0, %v2998
    %v3000 = vpop.f32.mrb[0].mxu0
    %3001 = vmatprep.mubr.f32.mxu0 0.0
    %3002 = vmatmul.mubr.f32.gmra.mrb[0].mxu0 %v1478
    %v3003 = vpop.f32.mrb[0].mxu0
    %v3004 = vadd.f32 0.0, %v3003
    %v3005 = vpop.f32.mrb[0].mxu0
    %3006 = vmatprep.mubr.f32.mxu0 0.0
    %3007 = vmatmul.mubr.f32.gmra.mrb[0].mxu0 %v1481
    %v3008 = vpop.f32.mrb[0].mxu0
    %v3009 = vadd.f32 0.0, %v3008
    %v3010 = vpop.f32.mrb[0].mxu0
    %3011 = vmatprep.mubr.f32.mxu0 0.0
    %3012 = vmatmul.mubr.f32.gmra.mrb[0].mxu0 %v1484
    %v3013 = vpop.f32.mrb[0].mxu0
    %v3014 = vadd.f32 0.0, %v3013
    %v3015 = vpop.f32.mrb[0].mxu0
    %3016 = vmatprep.mubr.f32.mxu0 0.0
    %3017 = vmatmul.mubr.f32.gmra.mrb[0].mxu0 %v1487
    %v3018 = vpop.f32.mrb[0].mxu0
    %v3019 = vadd.f32 0.0, %v3018
    %v3020 = vpop.f32.mrb[0].mxu0
    %3021 = vmatprep.mubr.f32.mxu0 0.0
    %3022 = vmatmul.mubr.f32.gmra.mrb[0].mxu0 %v1490
    %v3023 = vpop.f32.mrb[0].mxu0
    %v3024 = vadd.f32 0.0, %v3023
    %v3025 = vpop.f32.mrb[0].mxu0
    %3026 = vmatprep.mubr.f32.mxu0 0.0
    %3027 = vmatmul.mubr.f32.gmra.mrb[0].mxu0 %v1493
    %v3028 = vpop.f32.mrb[0].mxu0
    %v3029 = vadd.f32 0.0, %v3028
    %v3030 = vpop.f32.mrb[0].mxu0
    %3031 = vmatprep.mubr.f32.mxu0 0.0
    %3032 = vmatmul.mubr.f32.gmra.mrb[0].mxu0 %v1496
    %v3033 = vpop.f32.mrb[0].mxu0
    %v3034 = vadd.f32 0.0, %v3033
    %v3035 = vpop.f32.mrb[0].mxu0
    %3036 = vdwg.mxu0
    %v3037 = vadd.f32 %v2876, %v2959
    %v3038 = vadd.f32 %v2877, %v2964
    %v3039 = vadd.f32 %v2878, %v2969
    %v3040 = vadd.f32 %v2879, %v2974
    %v3041 = vadd.f32 %v2880, %v2979
    %v3042 = vadd.f32 %v2881, %v2984
    %v3043 = vadd.f32 %v2882, %v2989
    %v3044 = vadd.f32 %v2883, %v2994
    %v3045 = vadd.f32 %v2884, %v2999
    %v3046 = vadd.f32 %v2885, %v3004
    %v3047 = vadd.f32 %v2886, %v3009
    %v3048 = vadd.f32 %v2887, %v3014
    %v3049 = vadd.f32 %v2888, %v3019
    %v3050 = vadd.f32 %v2889, %v3024
    %v3051 = vadd.f32 %v2890, %v3029
    %v3052 = vadd.f32 %v2891, %v3034
    %v3053 = vxor.u32 %v3037, 2147483648
    %v3054 = vxor.u32 %v3038, 2147483648
    %v3055 = vxor.u32 %v3039, 2147483648
    %v3056 = vxor.u32 %v3040, 2147483648
    %v3057 = vmul.f32 %v3053, 1.442695
    %v3058 = vpow.pop %v3057
    %v3059 = vmul.f32 %v3054, 1.442695
    %v3060 = vpow.pop %v3059
    %v3061 = vmul.f32 %v3055, 1.442695
    %v3062 = vpow.pop %v3061
    %v3063 = vmul.f32 %v3056, 1.442695
    %v3064 = vpow.pop %v3063
    %v3065 = vadd.f32 %v3058, 1.0
    %v3066 = vadd.f32 %v3060, 1.0
    %v3067 = vadd.f32 %v3062, 1.0
    %v3068 = vadd.f32 %v3064, 1.0
    %v3069 = vrcp.pop %v3065
    %v3070 = vmul.f32 1.0, %v3069
    %v3071 = vrcp.pop %v3066
    %v3072 = vmul.f32 1.0, %v3071
    %v3073 = vrcp.pop %v3067
    %v3074 = vmul.f32 1.0, %v3073
    %v3075 = vrcp.pop %v3068
    %v3076 = vmul.f32 1.0, %v3075
    %v3077 = vxor.u32 %v3041, 2147483648
    %v3078 = vxor.u32 %v3042, 2147483648
    %v3079 = vxor.u32 %v3043, 2147483648
    %v3080 = vxor.u32 %v3044, 2147483648
    %v3081 = vmul.f32 %v3077, 1.442695
    %v3082 = vpow.pop %v3081
    %v3083 = vmul.f32 %v3078, 1.442695
    %v3084 = vpow.pop %v3083
    %v3085 = vmul.f32 %v3079, 1.442695
    %v3086 = vpow.pop %v3085
    %v3087 = vmul.f32 %v3080, 1.442695
    %v3088 = vpow.pop %v3087
    %v3089 = vadd.f32 %v3082, 1.0
    %v3090 = vadd.f32 %v3084, 1.0
    %v3091 = vadd.f32 %v3086, 1.0
    %v3092 = vadd.f32 %v3088, 1.0
    %v3093 = vrcp.pop %v3089
    %v3094 = vmul.f32 1.0, %v3093
    %v3095 = vrcp.pop %v3090
    %v3096 = vmul.f32 1.0, %v3095
    %v3097 = vrcp.pop %v3091
    %v3098 = vmul.f32 1.0, %v3097
    %v3099 = vrcp.pop %v3092
    %v3100 = vmul.f32 1.0, %v3099
    %v3101 = vtanh.pop %v3045
    %v3102 = vtanh.pop %v3046
    %v3103 = vtanh.pop %v3047
    %v3104 = vtanh.pop %v3048
    %v3105 = vxor.u32 %v3049, 2147483648
    %v3106 = vxor.u32 %v3050, 2147483648
    %v3107 = vxor.u32 %v3051, 2147483648
    %v3108 = vxor.u32 %v3052, 2147483648
    %v3109 = vmul.f32 %v3105, 1.442695
    %v3110 = vpow.pop %v3109
    %v3111 = vmul.f32 %v3106, 1.442695
    %v3112 = vpow.pop %v3111
    %v3113 = vmul.f32 %v3107, 1.442695
    %v3114 = vpow.pop %v3113
    %v3115 = vmul.f32 %v3108, 1.442695
    %v3116 = vpow.pop %v3115
    %v3117 = vadd.f32 %v3110, 1.0
    %v3118 = vadd.f32 %v3112, 1.0
    %v3119 = vadd.f32 %v3114, 1.0
    %v3120 = vadd.f32 %v3116, 1.0
    %v3121 = vrcp.pop %v3117
    %v3122 = vmul.f32 1.0, %v3121
    %v3123 = vrcp.pop %v3118
    %v3124 = vmul.f32 1.0, %v3123
    %v3125 = vrcp.pop %v3119
    %v3126 = vmul.f32 1.0, %v3125
    %v3127 = vrcp.pop %v3120
    %v3128 = vmul.f32 1.0, %v3127
    %v3129 = vmul.f32 %v3094, %v2858
    %v3130 = vmul.f32 %v3096, %v2859
    %v3131 = vmul.f32 %v3098, %v2860
    %v3132 = vmul.f32 %v3100, %v2861
    %v3133 = vmul.f32 %v3070, %v3101
    %v3134 = vmul.f32 %v3072, %v3102
    %v3135 = vmul.f32 %v3074, %v3103
    %v3136 = vmul.f32 %v3076, %v3104
    %v3137 = vadd.f32 %v3129, %v3133
    %v3138 = vadd.f32 %v3130, %v3134
    %v3139 = vadd.f32 %v3131, %v3135
    %v3140 = vadd.f32 %v3132, %v3136
    %v3141 = vtanh.pop %v3137
    %v3142 = vtanh.pop %v3138
    %v3143 = vtanh.pop %v3139
    %v3144 = vtanh.pop %v3140
    %v3145 = vmul.f32 %v3122, %v3141
    %v3146 = vmul.f32 %v3124, %v3142
    %v3147 = vmul.f32 %v3126, %v3143
    %v3148 = vmul.f32 %v3128, %v3144
    %s3149 = scalar_lea.vmem [#allocation3], 160
    %3150 = vst [vmem:[%s3149] sm:$0xff] %v3145
    %3151 = vst [vmem:[%s3149 + $0x8] sm:$0xff] %v3146
    %3152 = vst [vmem:[%s3149 + $0x10] sm:$0xff] %v3147
    %3153 = vst [vmem:[%s3149 + $0x18] sm:$0xff] %v3148
    %s3154 = scalar_lea.vmem [#allocation2], 48
    %v3155 = vld [vmem:[%s3154] sm:$0xff]
    %v3156 = vld [vmem:[%s3154 + $0x40] sm:$0xff]
    %v3157 = vld [vmem:[%s3154 + $0x80] sm:$0xff]
    %v3158 = vld [vmem:[%s3154 + $0xc0] sm:$0xff]
    %v3159 = vld [vmem:[%s3154 + $0x100] sm:$0xff]
    %v3160 = vld [vmem:[%s3154 + $0x140] sm:$0xff]
    %v3161 = vld [vmem:[%s3154 + $0x180] sm:$0xff]
    %v3162 = vld [vmem:[%s3154 + $0x1c0] sm:$0xff]
    %v3163 = vld [vmem:[%s3154 + $0x200] sm:$0xff]
    %v3164 = vld [vmem:[%s3154 + $0x240] sm:$0xff]
    %v3165 = vld [vmem:[%s3154 + $0x280] sm:$0xff]
    %v3166 = vld [vmem:[%s3154 + $0x2c0] sm:$0xff]
    %v3167 = vld [vmem:[%s3154 + $0x300] sm:$0xff]
    %v3168 = vld [vmem:[%s3154 + $0x340] sm:$0xff]
    %v3169 = vld [vmem:[%s3154 + $0x380] sm:$0xff]
    %v3170 = vld [vmem:[%s3154 + $0x3c0] sm:$0xff]
    %3171 = vmatprep.subr.mxu0 0.0
    %3172 = vmatpush1.msra.mxu0 %v3145
    %3173 = vmatprep.subr.mxu0 0.0
    %3174 = vmatpush1.msra.mxu0 %v3146
    %3175 = vmatprep.subr.mxu0 0.0
    %3176 = vmatpush1.msra.mxu0 %v3147
    %3177 = vmatprep.subr.mxu0 0.0
    %3178 = vmatpush1.msra.mxu0 %v3148
    %3179 = vmatprep.subr.mxu0 0.0
    %3180 = vmatpush1.msra.mxu0 0.0
    %3181 = vmatprep.subr.mxu0 0.0
    %3182 = vmatpush1.msra.mxu0 0.0
    %3183 = vmatprep.subr.mxu0 0.0
    %3184 = vmatpush1.msra.mxu0 0.0
    %3185 = vmatprep.subr.mxu0 0.0
    %3186 = vmatpush1.msra.mxu0 0.0
    %3187 = vmatprep.subr.mxu0 0.0
    %3188 = vmatpush1.msra.mxu0 0.0
    %3189 = vmatprep.subr.mxu0 0.0
    %3190 = vmatpush1.msra.mxu0 0.0
    %3191 = vmatprep.subr.mxu0 0.0
    %3192 = vmatpush1.msra.mxu0 0.0
    %3193 = vmatprep.subr.mxu0 0.0
    %3194 = vmatpush1.msra.mxu0 0.0
    %3195 = vmatprep.subr.mxu0 0.0
    %3196 = vmatpush1.msra.mxu0 0.0
    %3197 = vmatprep.subr.mxu0 0.0
    %3198 = vmatpush1.msra.mxu0 0.0
    %3199 = vmatprep.subr.mxu0 0.0
    %3200 = vmatpush1.msra.mxu0 0.0
    %3201 = vmatprep.subr.mxu0 0.0
    %3202 = vmatpush1.msra.mxu0 0.0
    %3203 = vmatprep.subr.mxu0 0.0
    %3204 = vmatpush1.msra.mxu0 0.0
    %3205 = vmatprep.subr.mxu0 0.0
    %3206 = vmatpush1.msra.mxu0 0.0
    %3207 = vmatprep.subr.mxu0 0.0
    %3208 = vmatpush1.msra.mxu0 0.0
    %3209 = vmatprep.subr.mxu0 0.0
    %3210 = vmatpush1.msra.mxu0 0.0
    %3211 = vmatprep.subr.mxu0 0.0
    %3212 = vmatpush1.msra.mxu0 0.0
    %3213 = vmatprep.subr.mxu0 0.0
    %3214 = vmatpush1.msra.mxu0 0.0
    %3215 = vmatprep.subr.mxu0 0.0
    %3216 = vmatpush1.msra.mxu0 0.0
    %3217 = vmatprep.subr.mxu0 0.0
    %3218 = vmatpush1.msra.mxu0 0.0
    %3219 = vmatprep.subr.mxu0 0.0
    %3220 = vmatpush1.msra.mxu0 0.0
    %3221 = vmatprep.subr.mxu0 0.0
    %3222 = vmatpush1.msra.mxu0 0.0
    %3223 = vmatprep.subr.mxu0 0.0
    %3224 = vmatpush1.msra.mxu0 0.0
    %3225 = vmatprep.subr.mxu0 0.0
    %3226 = vmatpush1.msra.mxu0 0.0
    %3227 = vmatprep.subr.mxu0 0.0
    %3228 = vmatpush1.msra.mxu0 0.0
    %3229 = vmatprep.subr.mxu0 0.0
    %3230 = vmatpush1.msra.mxu0 0.0
    %3231 = vmatprep.subr.mxu0 0.0
    %3232 = vmatpush1.msra.mxu0 0.0
    %3233 = vmatprep.subr.mxu0 0.0
    %3234 = vmatpush1.msra.mxu0 0.0
    %3235 = vmatprep.mubr.f32.mxu0 0.0
    %3236 = vmatmul.mubr.f32.gmra.mrb[0].mxu0 %v1451
    %v3237 = vpop.f32.mrb[0].mxu0
    %v3238 = vadd.f32 0.0, %v3237
    %v3239 = vpop.f32.mrb[0].mxu0
    %3240 = vmatprep.mubr.f32.mxu0 0.0
    %3241 = vmatmul.mubr.f32.gmra.mrb[0].mxu0 %v1454
    %v3242 = vpop.f32.mrb[0].mxu0
    %v3243 = vadd.f32 0.0, %v3242
    %v3244 = vpop.f32.mrb[0].mxu0
    %3245 = vmatprep.mubr.f32.mxu0 0.0
    %3246 = vmatmul.mubr.f32.gmra.mrb[0].mxu0 %v1457
    %v3247 = vpop.f32.mrb[0].mxu0
    %v3248 = vadd.f32 0.0, %v3247
    %v3249 = vpop.f32.mrb[0].mxu0
    %3250 = vmatprep.mubr.f32.mxu0 0.0
    %3251 = vmatmul.mubr.f32.gmra.mrb[0].mxu0 %v1460
    %v3252 = vpop.f32.mrb[0].mxu0
    %v3253 = vadd.f32 0.0, %v3252
    %v3254 = vpop.f32.mrb[0].mxu0
    %3255 = vmatprep.mubr.f32.mxu0 0.0
    %3256 = vmatmul.mubr.f32.gmra.mrb[0].mxu0 %v1463
    %v3257 = vpop.f32.mrb[0].mxu0
    %v3258 = vadd.f32 0.0, %v3257
    %v3259 = vpop.f32.mrb[0].mxu0
    %3260 = vmatprep.mubr.f32.mxu0 0.0
    %3261 = vmatmul.mubr.f32.gmra.mrb[0].mxu0 %v1466
    %v3262 = vpop.f32.mrb[0].mxu0
    %v3263 = vadd.f32 0.0, %v3262
    %v3264 = vpop.f32.mrb[0].mxu0
    %3265 = vmatprep.mubr.f32.mxu0 0.0
    %3266 = vmatmul.mubr.f32.gmra.mrb[0].mxu0 %v1469
    %v3267 = vpop.f32.mrb[0].mxu0
    %v3268 = vadd.f32 0.0, %v3267
    %v3269 = vpop.f32.mrb[0].mxu0
    %3270 = vmatprep.mubr.f32.mxu0 0.0
    %3271 = vmatmul.mubr.f32.gmra.mrb[0].mxu0 %v1472
    %v3272 = vpop.f32.mrb[0].mxu0
    %v3273 = vadd.f32 0.0, %v3272
    %v3274 = vpop.f32.mrb[0].mxu0
    %3275 = vmatprep.mubr.f32.mxu0 0.0
    %3276 = vmatmul.mubr.f32.gmra.mrb[0].mxu0 %v1475
    %v3277 = vpop.f32.mrb[0].mxu0
    %v3278 = vadd.f32 0.0, %v3277
    %v3279 = vpop.f32.mrb[0].mxu0
    %3280 = vmatprep.mubr.f32.mxu0 0.0
    %3281 = vmatmul.mubr.f32.gmra.mrb[0].mxu0 %v1478
    %v3282 = vpop.f32.mrb[0].mxu0
    %v3283 = vadd.f32 0.0, %v3282
    %v3284 = vpop.f32.mrb[0].mxu0
    %3285 = vmatprep.mubr.f32.mxu0 0.0
    %3286 = vmatmul.mubr.f32.gmra.mrb[0].mxu0 %v1481
    %v3287 = vpop.f32.mrb[0].mxu0
    %v3288 = vadd.f32 0.0, %v3287
    %v3289 = vpop.f32.mrb[0].mxu0
    %3290 = vmatprep.mubr.f32.mxu0 0.0
    %3291 = vmatmul.mubr.f32.gmra.mrb[0].mxu0 %v1484
    %v3292 = vpop.f32.mrb[0].mxu0
    %v3293 = vadd.f32 0.0, %v3292
    %v3294 = vpop.f32.mrb[0].mxu0
    %3295 = vmatprep.mubr.f32.mxu0 0.0
    %3296 = vmatmul.mubr.f32.gmra.mrb[0].mxu0 %v1487
    %v3297 = vpop.f32.mrb[0].mxu0
    %v3298 = vadd.f32 0.0, %v3297
    %v3299 = vpop.f32.mrb[0].mxu0
    %3300 = vmatprep.mubr.f32.mxu0 0.0
    %3301 = vmatmul.mubr.f32.gmra.mrb[0].mxu0 %v1490
    %v3302 = vpop.f32.mrb[0].mxu0
    %v3303 = vadd.f32 0.0, %v3302
    %v3304 = vpop.f32.mrb[0].mxu0
    %3305 = vmatprep.mubr.f32.mxu0 0.0
    %3306 = vmatmul.mubr.f32.gmra.mrb[0].mxu0 %v1493
    %v3307 = vpop.f32.mrb[0].mxu0
    %v3308 = vadd.f32 0.0, %v3307
    %v3309 = vpop.f32.mrb[0].mxu0
    %3310 = vmatprep.mubr.f32.mxu0 0.0
    %3311 = vmatmul.mubr.f32.gmra.mrb[0].mxu0 %v1496
    %v3312 = vpop.f32.mrb[0].mxu0
    %v3313 = vadd.f32 0.0, %v3312
    %v3314 = vpop.f32.mrb[0].mxu0
    %3315 = vdwg.mxu0
    %v3316 = vadd.f32 %v3155, %v3238
    %v3317 = vadd.f32 %v3156, %v3243
    %v3318 = vadd.f32 %v3157, %v3248
    %v3319 = vadd.f32 %v3158, %v3253
    %v3320 = vadd.f32 %v3159, %v3258
    %v3321 = vadd.f32 %v3160, %v3263
    %v3322 = vadd.f32 %v3161, %v3268
    %v3323 = vadd.f32 %v3162, %v3273
    %v3324 = vadd.f32 %v3163, %v3278
    %v3325 = vadd.f32 %v3164, %v3283
    %v3326 = vadd.f32 %v3165, %v3288
    %v3327 = vadd.f32 %v3166, %v3293
    %v3328 = vadd.f32 %v3167, %v3298
    %v3329 = vadd.f32 %v3168, %v3303
    %v3330 = vadd.f32 %v3169, %v3308
    %v3331 = vadd.f32 %v3170, %v3313
    %v3332 = vxor.u32 %v3316, 2147483648
    %v3333 = vxor.u32 %v3317, 2147483648
    %v3334 = vxor.u32 %v3318, 2147483648
    %v3335 = vxor.u32 %v3319, 2147483648
    %v3336 = vmul.f32 %v3332, 1.442695
    %v3337 = vpow.pop %v3336
    %v3338 = vmul.f32 %v3333, 1.442695
    %v3339 = vpow.pop %v3338
    %v3340 = vmul.f32 %v3334, 1.442695
    %v3341 = vpow.pop %v3340
    %v3342 = vmul.f32 %v3335, 1.442695
    %v3343 = vpow.pop %v3342
    %v3344 = vadd.f32 %v3337, 1.0
    %v3345 = vadd.f32 %v3339, 1.0
    %v3346 = vadd.f32 %v3341, 1.0
    %v3347 = vadd.f32 %v3343, 1.0
    %v3348 = vrcp.pop %v3344
    %v3349 = vmul.f32 1.0, %v3348
    %v3350 = vrcp.pop %v3345
    %v3351 = vmul.f32 1.0, %v3350
    %v3352 = vrcp.pop %v3346
    %v3353 = vmul.f32 1.0, %v3352
    %v3354 = vrcp.pop %v3347
    %v3355 = vmul.f32 1.0, %v3354
    %v3356 = vxor.u32 %v3320, 2147483648
    %v3357 = vxor.u32 %v3321, 2147483648
    %v3358 = vxor.u32 %v3322, 2147483648
    %v3359 = vxor.u32 %v3323, 2147483648
    %v3360 = vmul.f32 %v3356, 1.442695
    %v3361 = vpow.pop %v3360
    %v3362 = vmul.f32 %v3357, 1.442695
    %v3363 = vpow.pop %v3362
    %v3364 = vmul.f32 %v3358, 1.442695
    %v3365 = vpow.pop %v3364
    %v3366 = vmul.f32 %v3359, 1.442695
    %v3367 = vpow.pop %v3366
    %v3368 = vadd.f32 %v3361, 1.0
    %v3369 = vadd.f32 %v3363, 1.0
    %v3370 = vadd.f32 %v3365, 1.0
    %v3371 = vadd.f32 %v3367, 1.0
    %v3372 = vrcp.pop %v3368
    %v3373 = vmul.f32 1.0, %v3372
    %v3374 = vrcp.pop %v3369
    %v3375 = vmul.f32 1.0, %v3374
    %v3376 = vrcp.pop %v3370
    %v3377 = vmul.f32 1.0, %v3376
    %v3378 = vrcp.pop %v3371
    %v3379 = vmul.f32 1.0, %v3378
    %v3380 = vtanh.pop %v3324
    %v3381 = vtanh.pop %v3325
    %v3382 = vtanh.pop %v3326
    %v3383 = vtanh.pop %v3327
    %v3384 = vxor.u32 %v3328, 2147483648
    %v3385 = vxor.u32 %v3329, 2147483648
    %v3386 = vxor.u32 %v3330, 2147483648
    %v3387 = vxor.u32 %v3331, 2147483648
    %v3388 = vmul.f32 %v3384, 1.442695
    %v3389 = vpow.pop %v3388
    %v3390 = vmul.f32 %v3385, 1.442695
    %v3391 = vpow.pop %v3390
    %v3392 = vmul.f32 %v3386, 1.442695
    %v3393 = vpow.pop %v3392
    %v3394 = vmul.f32 %v3387, 1.442695
    %v3395 = vpow.pop %v3394
    %v3396 = vadd.f32 %v3389, 1.0
    %v3397 = vadd.f32 %v3391, 1.0
    %v3398 = vadd.f32 %v3393, 1.0
    %v3399 = vadd.f32 %v3395, 1.0
    %v3400 = vrcp.pop %v3396
    %v3401 = vmul.f32 1.0, %v3400
    %v3402 = vrcp.pop %v3397
    %v3403 = vmul.f32 1.0, %v3402
    %v3404 = vrcp.pop %v3398
    %v3405 = vmul.f32 1.0, %v3404
    %v3406 = vrcp.pop %v3399
    %v3407 = vmul.f32 1.0, %v3406
    %v3408 = vmul.f32 %v3373, %v3137
    %v3409 = vmul.f32 %v3375, %v3138
    %v3410 = vmul.f32 %v3377, %v3139
    %v3411 = vmul.f32 %v3379, %v3140
    %v3412 = vmul.f32 %v3349, %v3380
    %v3413 = vmul.f32 %v3351, %v3381
    %v3414 = vmul.f32 %v3353, %v3382
    %v3415 = vmul.f32 %v3355, %v3383
    %v3416 = vadd.f32 %v3408, %v3412
    %v3417 = vadd.f32 %v3409, %v3413
    %v3418 = vadd.f32 %v3410, %v3414
    %v3419 = vadd.f32 %v3411, %v3415
    %v3420 = vtanh.pop %v3416
    %v3421 = vtanh.pop %v3417
    %v3422 = vtanh.pop %v3418
    %v3423 = vtanh.pop %v3419
    %v3424 = vmul.f32 %v3401, %v3420
    %v3425 = vmul.f32 %v3403, %v3421
    %v3426 = vmul.f32 %v3405, %v3422
    %v3427 = vmul.f32 %v3407, %v3423
    %s3428 = scalar_lea.vmem [#allocation3], 192
    %3429 = vst [vmem:[%s3428] sm:$0xff] %v3424
    %3430 = vst [vmem:[%s3428 + $0x8] sm:$0xff] %v3425
    %3431 = vst [vmem:[%s3428 + $0x10] sm:$0xff] %v3426
    %3432 = vst [vmem:[%s3428 + $0x18] sm:$0xff] %v3427
    %s3433 = scalar_lea.vmem [#allocation2], 56
    %v3434 = vld [vmem:[%s3433] sm:$0xff]
    %v3435 = vld [vmem:[%s3433 + $0x40] sm:$0xff]
    %v3436 = vld [vmem:[%s3433 + $0x80] sm:$0xff]
    %v3437 = vld [vmem:[%s3433 + $0xc0] sm:$0xff]
    %v3438 = vld [vmem:[%s3433 + $0x100] sm:$0xff]
    %v3439 = vld [vmem:[%s3433 + $0x140] sm:$0xff]
    %v3440 = vld [vmem:[%s3433 + $0x180] sm:$0xff]
    %v3441 = vld [vmem:[%s3433 + $0x1c0] sm:$0xff]
    %v3442 = vld [vmem:[%s3433 + $0x200] sm:$0xff]
    %v3443 = vld [vmem:[%s3433 + $0x240] sm:$0xff]
    %v3444 = vld [vmem:[%s3433 + $0x280] sm:$0xff]
    %v3445 = vld [vmem:[%s3433 + $0x2c0] sm:$0xff]
    %v3446 = vld [vmem:[%s3433 + $0x300] sm:$0xff]
    %v3447 = vld [vmem:[%s3433 + $0x340] sm:$0xff]
    %v3448 = vld [vmem:[%s3433 + $0x380] sm:$0xff]
    %v3449 = vld [vmem:[%s3433 + $0x3c0] sm:$0xff]
    %3450 = vmatprep.subr.mxu0 0.0
    %3451 = vmatpush1.msra.mxu0 %v3424
    %3452 = vmatprep.subr.mxu0 0.0
    %3453 = vmatpush1.msra.mxu0 %v3425
    %3454 = vmatprep.subr.mxu0 0.0
    %3455 = vmatpush1.msra.mxu0 %v3426
    %3456 = vmatprep.subr.mxu0 0.0
    %3457 = vmatpush1.msra.mxu0 %v3427
    %3458 = vmatprep.subr.mxu0 0.0
    %3459 = vmatpush1.msra.mxu0 0.0
    %3460 = vmatprep.subr.mxu0 0.0
    %3461 = vmatpush1.msra.mxu0 0.0
    %3462 = vmatprep.subr.mxu0 0.0
    %3463 = vmatpush1.msra.mxu0 0.0
    %3464 = vmatprep.subr.mxu0 0.0
    %3465 = vmatpush1.msra.mxu0 0.0
    %3466 = vmatprep.subr.mxu0 0.0
    %3467 = vmatpush1.msra.mxu0 0.0
    %3468 = vmatprep.subr.mxu0 0.0
    %3469 = vmatpush1.msra.mxu0 0.0
    %3470 = vmatprep.subr.mxu0 0.0
    %3471 = vmatpush1.msra.mxu0 0.0
    %3472 = vmatprep.subr.mxu0 0.0
    %3473 = vmatpush1.msra.mxu0 0.0
    %3474 = vmatprep.subr.mxu0 0.0
    %3475 = vmatpush1.msra.mxu0 0.0
    %3476 = vmatprep.subr.mxu0 0.0
    %3477 = vmatpush1.msra.mxu0 0.0
    %3478 = vmatprep.subr.mxu0 0.0
    %3479 = vmatpush1.msra.mxu0 0.0
    %3480 = vmatprep.subr.mxu0 0.0
    %3481 = vmatpush1.msra.mxu0 0.0
    %3482 = vmatprep.subr.mxu0 0.0
    %3483 = vmatpush1.msra.mxu0 0.0
    %3484 = vmatprep.subr.mxu0 0.0
    %3485 = vmatpush1.msra.mxu0 0.0
    %3486 = vmatprep.subr.mxu0 0.0
    %3487 = vmatpush1.msra.mxu0 0.0
    %3488 = vmatprep.subr.mxu0 0.0
    %3489 = vmatpush1.msra.mxu0 0.0
    %3490 = vmatprep.subr.mxu0 0.0
    %3491 = vmatpush1.msra.mxu0 0.0
    %3492 = vmatprep.subr.mxu0 0.0
    %3493 = vmatpush1.msra.mxu0 0.0
    %3494 = vmatprep.subr.mxu0 0.0
    %3495 = vmatpush1.msra.mxu0 0.0
    %3496 = vmatprep.subr.mxu0 0.0
    %3497 = vmatpush1.msra.mxu0 0.0
    %3498 = vmatprep.subr.mxu0 0.0
    %3499 = vmatpush1.msra.mxu0 0.0
    %3500 = vmatprep.subr.mxu0 0.0
    %3501 = vmatpush1.msra.mxu0 0.0
    %3502 = vmatprep.subr.mxu0 0.0
    %3503 = vmatpush1.msra.mxu0 0.0
    %3504 = vmatprep.subr.mxu0 0.0
    %3505 = vmatpush1.msra.mxu0 0.0
    %3506 = vmatprep.subr.mxu0 0.0
    %3507 = vmatpush1.msra.mxu0 0.0
    %3508 = vmatprep.subr.mxu0 0.0
    %3509 = vmatpush1.msra.mxu0 0.0
    %3510 = vmatprep.subr.mxu0 0.0
    %3511 = vmatpush1.msra.mxu0 0.0
    %3512 = vmatprep.subr.mxu0 0.0
    %3513 = vmatpush1.msra.mxu0 0.0
    %3514 = vmatprep.mubr.f32.mxu0 0.0
    %3515 = vmatmul.mubr.f32.gmra.mrb[0].mxu0 %v1451
    %v3516 = vpop.f32.mrb[0].mxu0
    %v3517 = vadd.f32 0.0, %v3516
    %v3518 = vpop.f32.mrb[0].mxu0
    %3519 = vmatprep.mubr.f32.mxu0 0.0
    %3520 = vmatmul.mubr.f32.gmra.mrb[0].mxu0 %v1454
    %v3521 = vpop.f32.mrb[0].mxu0
    %v3522 = vadd.f32 0.0, %v3521
    %v3523 = vpop.f32.mrb[0].mxu0
    %3524 = vmatprep.mubr.f32.mxu0 0.0
    %3525 = vmatmul.mubr.f32.gmra.mrb[0].mxu0 %v1457
    %v3526 = vpop.f32.mrb[0].mxu0
    %v3527 = vadd.f32 0.0, %v3526
    %v3528 = vpop.f32.mrb[0].mxu0
    %3529 = vmatprep.mubr.f32.mxu0 0.0
    %3530 = vmatmul.mubr.f32.gmra.mrb[0].mxu0 %v1460
    %v3531 = vpop.f32.mrb[0].mxu0
    %v3532 = vadd.f32 0.0, %v3531
    %v3533 = vpop.f32.mrb[0].mxu0
    %3534 = vmatprep.mubr.f32.mxu0 0.0
    %3535 = vmatmul.mubr.f32.gmra.mrb[0].mxu0 %v1463
    %v3536 = vpop.f32.mrb[0].mxu0
    %v3537 = vadd.f32 0.0, %v3536
    %v3538 = vpop.f32.mrb[0].mxu0
    %3539 = vmatprep.mubr.f32.mxu0 0.0
    %3540 = vmatmul.mubr.f32.gmra.mrb[0].mxu0 %v1466
    %v3541 = vpop.f32.mrb[0].mxu0
    %v3542 = vadd.f32 0.0, %v3541
    %v3543 = vpop.f32.mrb[0].mxu0
    %3544 = vmatprep.mubr.f32.mxu0 0.0
    %3545 = vmatmul.mubr.f32.gmra.mrb[0].mxu0 %v1469
    %v3546 = vpop.f32.mrb[0].mxu0
    %v3547 = vadd.f32 0.0, %v3546
    %v3548 = vpop.f32.mrb[0].mxu0
    %3549 = vmatprep.mubr.f32.mxu0 0.0
    %3550 = vmatmul.mubr.f32.gmra.mrb[0].mxu0 %v1472
    %v3551 = vpop.f32.mrb[0].mxu0
    %v3552 = vadd.f32 0.0, %v3551
    %v3553 = vpop.f32.mrb[0].mxu0
    %3554 = vmatprep.mubr.f32.mxu0 0.0
    %3555 = vmatmul.mubr.f32.gmra.mrb[0].mxu0 %v1475
    %v3556 = vpop.f32.mrb[0].mxu0
    %v3557 = vadd.f32 0.0, %v3556
    %v3558 = vpop.f32.mrb[0].mxu0
    %3559 = vmatprep.mubr.f32.mxu0 0.0
    %3560 = vmatmul.mubr.f32.gmra.mrb[0].mxu0 %v1478
    %v3561 = vpop.f32.mrb[0].mxu0
    %v3562 = vadd.f32 0.0, %v3561
    %v3563 = vpop.f32.mrb[0].mxu0
    %3564 = vmatprep.mubr.f32.mxu0 0.0
    %3565 = vmatmul.mubr.f32.gmra.mrb[0].mxu0 %v1481
    %v3566 = vpop.f32.mrb[0].mxu0
    %v3567 = vadd.f32 0.0, %v3566
    %v3568 = vpop.f32.mrb[0].mxu0
    %3569 = vmatprep.mubr.f32.mxu0 0.0
    %3570 = vmatmul.mubr.f32.gmra.mrb[0].mxu0 %v1484
    %v3571 = vpop.f32.mrb[0].mxu0
    %v3572 = vadd.f32 0.0, %v3571
    %v3573 = vpop.f32.mrb[0].mxu0
    %3574 = vmatprep.mubr.f32.mxu0 0.0
    %3575 = vmatmul.mubr.f32.gmra.mrb[0].mxu0 %v1487
    %v3576 = vpop.f32.mrb[0].mxu0
    %v3577 = vadd.f32 0.0, %v3576
    %v3578 = vpop.f32.mrb[0].mxu0
    %3579 = vmatprep.mubr.f32.mxu0 0.0
    %3580 = vmatmul.mubr.f32.gmra.mrb[0].mxu0 %v1490
    %v3581 = vpop.f32.mrb[0].mxu0
    %v3582 = vadd.f32 0.0, %v3581
    %v3583 = vpop.f32.mrb[0].mxu0
    %3584 = vmatprep.mubr.f32.mxu0 0.0
    %3585 = vmatmul.mubr.f32.gmra.mrb[0].mxu0 %v1493
    %v3586 = vpop.f32.mrb[0].mxu0
    %v3587 = vadd.f32 0.0, %v3586
    %v3588 = vpop.f32.mrb[0].mxu0
    %3589 = vmatprep.mubr.f32.mxu0 0.0
    %3590 = vmatmul.mubr.f32.gmra.mrb[0].mxu0 %v1496
    %v3591 = vpop.f32.mrb[0].mxu0
    %v3592 = vadd.f32 0.0, %v3591
    %v3593 = vpop.f32.mrb[0].mxu0
    %3594 = vdwg.mxu0
    %v3595 = vadd.f32 %v3434, %v3517
    %v3596 = vadd.f32 %v3435, %v3522
    %v3597 = vadd.f32 %v3436, %v3527
    %v3598 = vadd.f32 %v3437, %v3532
    %v3599 = vadd.f32 %v3438, %v3537
    %v3600 = vadd.f32 %v3439, %v3542
    %v3601 = vadd.f32 %v3440, %v3547
    %v3602 = vadd.f32 %v3441, %v3552
    %v3603 = vadd.f32 %v3442, %v3557
    %v3604 = vadd.f32 %v3443, %v3562
    %v3605 = vadd.f32 %v3444, %v3567
    %v3606 = vadd.f32 %v3445, %v3572
    %v3607 = vadd.f32 %v3446, %v3577
    %v3608 = vadd.f32 %v3447, %v3582
    %v3609 = vadd.f32 %v3448, %v3587
    %v3610 = vadd.f32 %v3449, %v3592
    %v3611 = vxor.u32 %v3595, 2147483648
    %v3612 = vxor.u32 %v3596, 2147483648
    %v3613 = vxor.u32 %v3597, 2147483648
    %v3614 = vxor.u32 %v3598, 2147483648
    %v3615 = vmul.f32 %v3611, 1.442695
    %v3616 = vpow.pop %v3615
    %v3617 = vmul.f32 %v3612, 1.442695
    %v3618 = vpow.pop %v3617
    %v3619 = vmul.f32 %v3613, 1.442695
    %v3620 = vpow.pop %v3619
    %v3621 = vmul.f32 %v3614, 1.442695
    %v3622 = vpow.pop %v3621
    %v3623 = vadd.f32 %v3616, 1.0
    %v3624 = vadd.f32 %v3618, 1.0
    %v3625 = vadd.f32 %v3620, 1.0
    %v3626 = vadd.f32 %v3622, 1.0
    %v3627 = vrcp.pop %v3623
    %v3628 = vmul.f32 1.0, %v3627
    %v3629 = vrcp.pop %v3624
    %v3630 = vmul.f32 1.0, %v3629
    %v3631 = vrcp.pop %v3625
    %v3632 = vmul.f32 1.0, %v3631
    %v3633 = vrcp.pop %v3626
    %v3634 = vmul.f32 1.0, %v3633
    %v3635 = vxor.u32 %v3599, 2147483648
    %v3636 = vxor.u32 %v3600, 2147483648
    %v3637 = vxor.u32 %v3601, 2147483648
    %v3638 = vxor.u32 %v3602, 2147483648
    %v3639 = vmul.f32 %v3635, 1.442695
    %v3640 = vpow.pop %v3639
    %v3641 = vmul.f32 %v3636, 1.442695
    %v3642 = vpow.pop %v3641
    %v3643 = vmul.f32 %v3637, 1.442695
    %v3644 = vpow.pop %v3643
    %v3645 = vmul.f32 %v3638, 1.442695
    %v3646 = vpow.pop %v3645
    %v3647 = vadd.f32 %v3640, 1.0
    %v3648 = vadd.f32 %v3642, 1.0
    %v3649 = vadd.f32 %v3644, 1.0
    %v3650 = vadd.f32 %v3646, 1.0
    %v3651 = vrcp.pop %v3647
    %v3652 = vmul.f32 1.0, %v3651
    %v3653 = vrcp.pop %v3648
    %v3654 = vmul.f32 1.0, %v3653
    %v3655 = vrcp.pop %v3649
    %v3656 = vmul.f32 1.0, %v3655
    %v3657 = vrcp.pop %v3650
    %v3658 = vmul.f32 1.0, %v3657
    %v3659 = vtanh.pop %v3603
    %v3660 = vtanh.pop %v3604
    %v3661 = vtanh.pop %v3605
    %v3662 = vtanh.pop %v3606
    %v3663 = vxor.u32 %v3607, 2147483648
    %v3664 = vxor.u32 %v3608, 2147483648
    %v3665 = vxor.u32 %v3609, 2147483648
    %v3666 = vxor.u32 %v3610, 2147483648
    %v3667 = vmul.f32 %v3663, 1.442695
    %v3668 = vpow.pop %v3667
    %v3669 = vmul.f32 %v3664, 1.442695
    %v3670 = vpow.pop %v3669
    %v3671 = vmul.f32 %v3665, 1.442695
    %v3672 = vpow.pop %v3671
    %v3673 = vmul.f32 %v3666, 1.442695
    %v3674 = vpow.pop %v3673
    %v3675 = vadd.f32 %v3668, 1.0
    %v3676 = vadd.f32 %v3670, 1.0
    %v3677 = vadd.f32 %v3672, 1.0
    %v3678 = vadd.f32 %v3674, 1.0
    %v3679 = vrcp.pop %v3675
    %v3680 = vmul.f32 1.0, %v3679
    %v3681 = vrcp.pop %v3676
    %v3682 = vmul.f32 1.0, %v3681
    %v3683 = vrcp.pop %v3677
    %v3684 = vmul.f32 1.0, %v3683
    %v3685 = vrcp.pop %v3678
    %v3686 = vmul.f32 1.0, %v3685
    %v3687 = vmul.f32 %v3652, %v3416
    %v3688 = vmul.f32 %v3654, %v3417
    %v3689 = vmul.f32 %v3656, %v3418
    %v3690 = vmul.f32 %v3658, %v3419
    %v3691 = vmul.f32 %v3628, %v3659
    %v3692 = vmul.f32 %v3630, %v3660
    %v3693 = vmul.f32 %v3632, %v3661
    %v3694 = vmul.f32 %v3634, %v3662
    %v3695 = vadd.f32 %v3687, %v3691
    %v3696 = vadd.f32 %v3688, %v3692
    %v3697 = vadd.f32 %v3689, %v3693
    %v3698 = vadd.f32 %v3690, %v3694
    %v3699 = vtanh.pop %v3695
    %v3700 = vtanh.pop %v3696
    %v3701 = vtanh.pop %v3697
    %v3702 = vtanh.pop %v3698
    %v3703 = vmul.f32 %v3680, %v3699
    %v3704 = vmul.f32 %v3682, %v3700
    %v3705 = vmul.f32 %v3684, %v3701
    %v3706 = vmul.f32 %v3686, %v3702
    %s3707 = scalar_lea.vmem [#allocation3], 224
    %3708 = vst [vmem:[%s3707] sm:$0xff] %v3703
    %3709 = vst [vmem:[%s3707 + $0x8] sm:$0xff] %v3704
    %3710 = vst [vmem:[%s3707 + $0x10] sm:$0xff] %v3705
    %3711 = vst [vmem:[%s3707 + $0x18] sm:$0xff] %v3706
    %v3712 = vld [vmem:[#allocation3] sm:$0xff]
    %v3713 = vld [vmem:[#allocation3 + $0x8] sm:$0xff]
    %v3714 = vld [vmem:[#allocation3 + $0x10] sm:$0xff]
    %v3715 = vld [vmem:[#allocation3 + $0x18] sm:$0xff]
    %v3716 = vmul.f32 %v3712, %v3703
    %v3717 = vmul.f32 %v3713, %v3704
    %v3718 = vmul.f32 %v3714, %v3705
    %v3719 = vmul.f32 %v3715, %v3706
    %v3720 = vadd.f32 %v3716, %v3717
    %v3721 = vadd.f32 %v3720, %v3718
    %v3722 = vadd.f32 %v3721, %v3719
    %v3723 = vrot.slane %v3722, 4
    %v3724 = vadd.f32 %v3722, %v3723
    %v3725 = vrot.slane %v3724, 2
    %v3726 = vadd.f32 %v3724, %v3725
    %v3727 = vrot.slane %v3726, 1
    %v3728 = vadd.f32 %v3726, %v3727
    %v3729 = vld [vmem:[%s2033] sm:$0xff]
    %v3730 = vld [vmem:[%s2033 + $0x8] sm:$0xff]
    %v3731 = vld [vmem:[%s2033 + $0x10] sm:$0xff]
    %v3732 = vld [vmem:[%s2033 + $0x18] sm:$0xff]
    %v3733 = vmul.f32 %v3729, %v3703
    %v3734 = vmul.f32 %v3730, %v3704
    %v3735 = vmul.f32 %v3731, %v3705
    %v3736 = vmul.f32 %v3732, %v3706
    %v3737 = vadd.f32 %v3733, %v3734
    %v3738 = vadd.f32 %v3737, %v3735
    %v3739 = vadd.f32 %v3738, %v3736
    %v3740 = vrot.slane %v3739, 4
    %v3741 = vadd.f32 %v3739, %v3740
    %v3742 = vrot.slane %v3741, 2
    %v3743 = vadd.f32 %v3741, %v3742
    %v3744 = vrot.slane %v3743, 1
    %v3745 = vadd.f32 %v3743, %v3744
    %v3746 = vld [vmem:[%s2312] sm:$0xff]
    %v3747 = vld [vmem:[%s2312 + $0x8] sm:$0xff]
    %v3748 = vld [vmem:[%s2312 + $0x10] sm:$0xff]
    %v3749 = vld [vmem:[%s2312 + $0x18] sm:$0xff]
    %v3750 = vmul.f32 %v3746, %v3703
    %v3751 = vmul.f32 %v3747, %v3704
    %v3752 = vmul.f32 %v3748, %v3705
    %v3753 = vmul.f32 %v3749, %v3706
    %v3754 = vadd.f32 %v3750, %v3751
    %v3755 = vadd.f32 %v3754, %v3752
    %v3756 = vadd.f32 %v3755, %v3753
    %v3757 = vrot.slane %v3756, 4
    %v3758 = vadd.f32 %v3756, %v3757
    %v3759 = vrot.slane %v3758, 2
    %v3760 = vadd.f32 %v3758, %v3759
    %v3761 = vrot.slane %v3760, 1
    %v3762 = vadd.f32 %v3760, %v3761
    %v3763 = vld [vmem:[%s2591] sm:$0xff]
    %v3764 = vld [vmem:[%s2591 + $0x8] sm:$0xff]
    %v3765 = vld [vmem:[%s2591 + $0x10] sm:$0xff]
    %v3766 = vld [vmem:[%s2591 + $0x18] sm:$0xff]
    %v3767 = vmul.f32 %v3763, %v3703
    %v3768 = vmul.f32 %v3764, %v3704
    %v3769 = vmul.f32 %v3765, %v3705
    %v3770 = vmul.f32 %v3766, %v3706
    %v3771 = vadd.f32 %v3767, %v3768
    %v3772 = vadd.f32 %v3771, %v3769
    %v3773 = vadd.f32 %v3772, %v3770
    %v3774 = vrot.slane %v3773, 4
    %v3775 = vadd.f32 %v3773, %v3774
    %v3776 = vrot.slane %v3775, 2
    %v3777 = vadd.f32 %v3775, %v3776
    %v3778 = vrot.slane %v3777, 1
    %v3779 = vadd.f32 %v3777, %v3778
    %v3780 = vld [vmem:[%s2870] sm:$0xff]
    %v3781 = vld [vmem:[%s2870 + $0x8] sm:$0xff]
    %v3782 = vld [vmem:[%s2870 + $0x10] sm:$0xff]
    %v3783 = vld [vmem:[%s2870 + $0x18] sm:$0xff]
    %v3784 = vmul.f32 %v3780, %v3703
    %v3785 = vmul.f32 %v3781, %v3704
    %v3786 = vmul.f32 %v3782, %v3705
    %v3787 = vmul.f32 %v3783, %v3706
    %v3788 = vadd.f32 %v3784, %v3785
    %v3789 = vadd.f32 %v3788, %v3786
    %v3790 = vadd.f32 %v3789, %v3787
    %v3791 = vrot.slane %v3790, 4
    %v3792 = vadd.f32 %v3790, %v3791
    %v3793 = vrot.slane %v3792, 2
    %v3794 = vadd.f32 %v3792, %v3793
    %v3795 = vrot.slane %v3794, 1
    %v3796 = vadd.f32 %v3794, %v3795
    %v3797 = vld [vmem:[%s3149] sm:$0xff]
    %v3798 = vld [vmem:[%s3149 + $0x8] sm:$0xff]
    %v3799 = vld [vmem:[%s3149 + $0x10] sm:$0xff]
    %v3800 = vld [vmem:[%s3149 + $0x18] sm:$0xff]
    %v3801 = vmul.f32 %v3797, %v3703
    %v3802 = vmul.f32 %v3798, %v3704
    %v3803 = vmul.f32 %v3799, %v3705
    %v3804 = vmul.f32 %v3800, %v3706
    %v3805 = vadd.f32 %v3801, %v3802
    %v3806 = vadd.f32 %v3805, %v3803
    %v3807 = vadd.f32 %v3806, %v3804
    %v3808 = vrot.slane %v3807, 4
    %v3809 = vadd.f32 %v3807, %v3808
    %v3810 = vrot.slane %v3809, 2
    %v3811 = vadd.f32 %v3809, %v3810
    %v3812 = vrot.slane %v3811, 1
    %v3813 = vadd.f32 %v3811, %v3812
    %v3814 = vld [vmem:[%s3428] sm:$0xff]
    %v3815 = vld [vmem:[%s3428 + $0x8] sm:$0xff]
    %v3816 = vld [vmem:[%s3428 + $0x10] sm:$0xff]
    %v3817 = vld [vmem:[%s3428 + $0x18] sm:$0xff]
    %v3818 = vmul.f32 %v3814, %v3703
    %v3819 = vmul.f32 %v3815, %v3704
    %v3820 = vmul.f32 %v3816, %v3705
    %v3821 = vmul.f32 %v3817, %v3706
    %v3822 = vadd.f32 %v3818, %v3819
    %v3823 = vadd.f32 %v3822, %v3820
    %v3824 = vadd.f32 %v3823, %v3821
    %v3825 = vrot.slane %v3824, 4
    %v3826 = vadd.f32 %v3824, %v3825
    %v3827 = vrot.slane %v3826, 2
    %v3828 = vadd.f32 %v3826, %v3827
    %v3829 = vrot.slane %v3828, 1
    %v3830 = vadd.f32 %v3828, %v3829
    %v3831 = vld [vmem:[%s3707] sm:$0xff]
    %v3832 = vld [vmem:[%s3707 + $0x8] sm:$0xff]
    %v3833 = vld [vmem:[%s3707 + $0x10] sm:$0xff]
    %v3834 = vld [vmem:[%s3707 + $0x18] sm:$0xff]
    %v3835 = vmul.f32 %v3831, %v3703
    %v3836 = vmul.f32 %v3832, %v3704
    %v3837 = vmul.f32 %v3833, %v3705
    %v3838 = vmul.f32 %v3834, %v3706
    %v3839 = vadd.f32 %v3835, %v3836
    %v3840 = vadd.f32 %v3839, %v3837
    %v3841 = vadd.f32 %v3840, %v3838
    %v3842 = vrot.slane %v3841, 4
    %v3843 = vadd.f32 %v3841, %v3842
    %v3844 = vrot.slane %v3843, 2
    %v3845 = vadd.f32 %v3843, %v3844
    %v3846 = vrot.slane %v3845, 1
    %v3847 = vadd.f32 %v3845, %v3846
    %vm3848 = vcmask 1040384
    %v3849 = vsel %vm3848, %v3728, %v3745
    %vm3850 = vcmask 1041408
    %v3851 = vsel %vm3850, %v3849, %v3762
    %vm3852 = vcmask 1042432
    %v3853 = vsel %vm3852, %v3851, %v3779
    %v3854 = vsel %vm80, %v3853, %v3796
    %vm3855 = vcmask 1044480
    %v3856 = vsel %vm3855, %v3854, %v3813
    %vm3857 = vcmask 1045504
    %v3858 = vsel %vm3857, %v3856, %v3830
    %vm3859 = vcmask 1046528
    %v3860 = vsel %vm3859, %v3858, %v3847
    %v3861 = vrot.slane %v3860, 4
    %v3862 = vmax.f32 %v3860, %v3861
    %v3863 = vrot.slane %v3862, 2
    %v3864 = vmax.f32 %v3862, %v3863
    %v3865 = vrot.slane %v3864, 1
    %v3866 = vmax.f32 %v3864, %v3865
    %v3867 = vsub.f32 %v3860, %v3866
    %v3868 = vmul.f32 %v3867, 1.442695
    %v3869 = vpow.pop %v3868
    %v3870 = vrot.slane %v3869, 4
    %v3871 = vadd.f32 %v3869, %v3870
    %v3872 = vrot.slane %v3871, 2
    %v3873 = vadd.f32 %v3871, %v3872
    %v3874 = vrot.slane %v3873, 1
    %v3875 = vadd.f32 %v3873, %v3874
    %v3876 = vrcp.pop %v3875
    %v3877 = vmul.f32 %v3869, %v3876
    %v3878 = vld [vmem:[%s0 + $0x3] sm:$0x1]
    %v3879 = vld [vmem:[%s0 + $0x7] sm:$0x1]
    %v3880 = vld [vmem:[%s0 + $0xb] sm:$0x1]
    %v3881 = vld [vmem:[%s0 + $0xf] sm:$0x1]
    %v3882 = vld [vmem:[%s0 + $0x13] sm:$0x1]
    %v3883 = vld [vmem:[%s0 + $0x17] sm:$0x1]
    %v3884 = vld [vmem:[%s0 + $0x1b] sm:$0x1]
    %v3885 = vld [vmem:[%s0 + $0x1f] sm:$0x1]
    %v3887 = vlaneseq
    %v3888 = vshrl.u32 %v3887, 7
    %v3889 = vsub.s32 0, %v3888
    %v3890 = vrot.slane %v3879, %v3889
    %v3893 = vlaneseq
    %v3894 = vshrl.u32 %v3893, 7
    %v3895 = vsub.s32 0, %v3894
    %v3896 = vrot.slane %v3880, %v3895
    %v3899 = vlaneseq
    %v3900 = vshrl.u32 %v3899, 7
    %v3901 = vsub.s32 0, %v3900
    %v3902 = vrot.slane %v3881, %v3901
    %v3905 = vlaneseq
    %v3906 = vshrl.u32 %v3905, 7
    %v3907 = vsub.s32 0, %v3906
    %v3908 = vrot.slane %v3882, %v3907
    %v3911 = vlaneseq
    %v3912 = vshrl.u32 %v3911, 7
    %v3913 = vsub.s32 0, %v3912
    %v3914 = vrot.slane %v3883, %v3913
    %v3917 = vlaneseq
    %v3918 = vshrl.u32 %v3917, 7
    %v3919 = vsub.s32 0, %v3918
    %v3920 = vrot.slane %v3884, %v3919
    %v3923 = vlaneseq
    %v3924 = vshrl.u32 %v3923, 7
    %v3925 = vsub.s32 0, %v3924
    %v3926 = vrot.slane %v3885, %v3925
    %v3928 = vsel %vm3848, %v3878, %v3890
    %v3929 = vsel %vm3850, %v3928, %v3896
    %v3930 = vsel %vm3852, %v3929, %v3902
    %v3931 = vsel %vm80, %v3930, %v3908
    %v3932 = vsel %vm3855, %v3931, %v3914
    %v3933 = vsel %vm3857, %v3932, %v3920
    %v3934 = vsel %vm3859, %v3933, %v3926
    %v3935 = vmul.f32 %v3877, %v3934
    %v3936 = vrot.slane %v3935, 4
    %v3937 = vadd.f32 %v3935, %v3936
    %v3938 = vrot.slane %v3937, 2
    %v3939 = vadd.f32 %v3937, %v3938
    %v3940 = vrot.slane %v3939, 1
    %v3941 = vadd.f32 %v3939, %v3940
    %v3942 = vsub.f32 %v3934, %v3941
    %v3943 = vmul.f32 %v3942, %v3942
    %v3944 = vmul.f32 %v3877, %v3943
    %v3945 = vrot.slane %v3944, 4
    %v3946 = vadd.f32 %v3944, %v3945
    %v3947 = vrot.slane %v3946, 2
    %v3948 = vadd.f32 %v3946, %v3947
    %v3949 = vrot.slane %v3948, 1
    %v3950 = vadd.f32 %v3948, %v3949
    %v3951 = vrsqrt.pop %v3950
    %v3952 = vmul.f32 %v3950, %v3951
    %vm3953 = vcmp.eq.f32.partialorder %v3950, inf
    %v3954 = vsel %vm3953, %v3950, %v3952
    %vm3955 = vcmp.eq.f32.partialorder %v3950, 0.0
    %v3956 = vand.u32 %v3950, 2147483648
    %v3957 = vsel %vm3955, %v3956, %v3954
    %3958 = vst [vmem:[#allocation4] sm:$0x1] %v3941
    %3959 = vst [vmem:[#allocation6] sm:$0x1] %v3957
    // Predicated region
    $region26: #{tpu_custom_call.1} parent=1 // pred_check
      _
    $region27: #{tpu_custom_call.1} parent=1 // pred_check_branch
      %3961 = sbr.rel (0) target = $region29
    $region28: #{tpu_custom_call.1} parent=1 // pred_region
      %s3963 = ssub.s32 16, 16
      %3964 = vsyncadd [#allocation5], %s3963
      %s3966 = sshll.u32 [#allocation4], 4
      %s3967 = int_to_ptr.vmem [resolvable:$true] %s3966
      %3969 = dma.vmem_to_hbm [thread:$0]  %s3967, 16, %s6, [#allocation5]
    $region29: #{tpu_custom_call.1} parent=1 // pred_fallthru
      _
    // Predicated region
    $region30: #{tpu_custom_call.1} parent=1 // pred_check
      _
    $region31: #{tpu_custom_call.1} parent=1 // pred_check_branch
      %3971 = sbr.rel (0) target = $region33
    $region32: #{tpu_custom_call.1} parent=1 // pred_region
      %s3973 = ssub.s32 16, 16
      %3974 = vsyncadd [#allocation7], %s3973
      %s3976 = sshll.u32 [#allocation6], 4
      %s3977 = int_to_ptr.vmem [resolvable:$true] %s3976
      %3979 = dma.vmem_to_hbm [thread:$0]  %s3977, 16, %s7, [#allocation7]
    $region33: #{tpu_custom_call.1} parent=1 // pred_fallthru
      _
    // Predicated region
    $region34: #{tpu_custom_call.1} parent=1 // pred_check
      _
    $region35: #{tpu_custom_call.1} parent=1 // pred_check_branch
      %3981 = sbr.rel (0) target = $region37
    $region36: #{tpu_custom_call.1} parent=1 // pred_region
      %3982 = dma.done [#allocation5], 16
    $region37: #{tpu_custom_call.1} parent=1 // pred_fallthru
      _
    // Predicated region
    $region38: #{tpu_custom_call.1} parent=1 // pred_check
      _
    $region39: #{tpu_custom_call.1} parent=1 // pred_check_branch
      %3984 = sbr.rel (0) target = $region41
    $region40: #{tpu_custom_call.1} parent=1 // pred_region
      %3985 = dma.done [#allocation7], 16
    $region41: #{tpu_custom_call.1} parent=1 // pred_fallthru
      _
    %3986 = vsyncpa [#allocation5], 1
    %3987 = vsyncpa [#allocation7], 1

</llo_original>
